<compile_context>
chip_gen: v5e
topology: v5e:2x2
jax: 0.10.0
libtpu: 0.0.40
codegen_flags: <defaults>
</compile_context>

<pallas_src>
import jax
import jax.numpy as jnp
from jax import lax
from jax.experimental import pallas as pl
from jax.experimental.pallas import tpu as pltpu

# ------------------------- model hyper-parameters --------------------------
D_MODEL = 32        # t5-small: 512
D_KV = 8            # t5-small: 64
N_HEADS = 4         # t5-small: 8
D_FF = 64           # t5-small: 2048
N_ENC = 2           # t5-small: 6
N_DEC = 2           # t5-small: 6
VOCAB = 2944        # >= 2842 so token ids 1465 / 2841 exist (multiple of 128)
ENC_SEQ = 16        # t5-small tokenizer pads to 512; small shape here
DEC_SEQ = 2         # label ' ' tokenized with max_length=2 -> decoder length 2
NUM_BUCKETS = 32
MAX_DISTANCE = 128
EPS = 1e-6
POS_TOKEN = 1465
NEG_TOKEN = 2841


# ------------------------ in-kernel building blocks -------------------------
def _rms(x, w):
    # T5LayerNorm: no mean subtraction, no bias.
    var = jnp.mean(x * x, axis=-1, keepdims=True)
    return x * lax.rsqrt(var + EPS) * w


def _softmax_last(s):
    m = jnp.max(s, axis=-1, keepdims=True)
    p = jnp.exp(s - m)
    # approx=True -> EUP vrcp (separate bundle slot); ~2^-12 relative error.
    return p * pl.reciprocal(jnp.sum(p, axis=-1, keepdims=True), approx=True)


def _attention(xq, wq, wk, wv, wo, bias=None, kv_h=None):
    """Head-batched unscaled T5 attention.

    xq:   (Sq, D)   query source
    wq/wk/wv: (H, D, Dk) head-major projection weights
    wo:   (H, Dk, D) head-major output projection
    bias: (H, Sq, Skv) additive bias (relative position +/- causal) or None
    kv_h: (H, Skv, D) pre-broadcast key/value source, or None -> self-attention.
    """
    xq_h = jnp.broadcast_to(xq[None], (N_HEADS,) + xq.shape)
    if kv_h is None:
        kv_h = xq_h
    q = jnp.einsum('hsd,hdk->hsk', xq_h, wq, preferred_element_type=jnp.float32)
    k = jnp.einsum('hsd,hdk->hsk', kv_h, wk, preferred_element_type=jnp.float32)
    v = jnp.einsum('hsd,hdk->hsk', kv_h, wv, preferred_element_type=jnp.float32)
    # T5 attention is NOT scaled by 1/sqrt(d_kv).
    s = jnp.einsum('hqd,hkd->hqk', q, k, preferred_element_type=jnp.float32)
    if bias is not None:
        s = s + bias
    p = _softmax_last(s)
    ov = jnp.einsum('hqk,hkd->hqd', p, v, preferred_element_type=jnp.float32)
    # Single batched output projection + head-axis reduction (== concat-heads @ W_o).
    outh = jnp.einsum('hqd,hdm->hqm', ov, wo, preferred_element_type=jnp.float32)
    return jnp.sum(outh, axis=0)


def _ffn(x, wi, wo):
    # T5DenseReluDense: relu(x @ wi) @ wo
    h = jnp.dot(x, wi, preferred_element_type=jnp.float32)
    h = jnp.maximum(h, 0.0)
    return jnp.dot(h, wo, preferred_element_type=jnp.float32)


# ------------------------------- fused kernel --------------------------------
def _t5_kernel(
    # encoder inputs
    enc_emb_ref, enc_bias_ref, enc_final_ln_ref,
    e_ln1_ref, e_wq_ref, e_wk_ref, e_wv_ref, e_wo_ref,
    e_ln2_ref, e_wi_ref, e_wff_ref,
    # decoder inputs
    dec_emb_ref, dec_bias_ref, dec_final_ln_ref, lm_cols_ref,
    d_ln1_ref, d_swq_ref, d_swk_ref, d_swv_ref, d_swo_ref,
    d_ln2_ref, d_cwq_ref, d_cwk_ref, d_cwv_ref, d_cwo_ref,
    d_ln3_ref, d_wi_ref, d_wff_ref,
    # outputs
    hs_ref, logits_ref,
):
    # ---------------- encoder stack (layer loop unrolled in-kernel) ----------------
    h = enc_emb_ref[...]
    enc_bias = enc_bias_ref[...]
    for li in range(N_ENC):
        x = _rms(h, e_ln1_ref[li])
        h = h + _attention(x, e_wq_ref[li], e_wk_ref[li], e_wv_ref[li], e_wo_ref[li],
                           bias=enc_bias)
        x = _rms(h, e_ln2_ref[li])
        h = h + _ffn(x, e_wi_ref[li], e_wff_ref[li])
    enc_out = _rms(h, enc_final_ln_ref[...])                     # stays in VMEM

    # hoisted: cross-attention K/V source is the same for every decoder layer
    enc_h = jnp.broadcast_to(enc_out[None], (N_HEADS, ENC_SEQ, D_MODEL))

    # ---------------- decoder stack ----------------
    g = dec_emb_ref[...]
    dec_bias = dec_bias_ref[...]                                  # rel bias + causal mask
    for li in range(N_DEC):
        # masked self-attention
        x = _rms(g, d_ln1_ref[li])
        g = g + _attention(x, d_swq_ref[li], d_swk_ref[li], d_swv_ref[li], d_swo_ref[li],
                           bias=dec_bias)
        # cross-attention over encoder output (no bias / no mask)
        x = _rms(g, d_ln2_ref[li])
        g = g + _attention(x, d_cwq_ref[li], d_cwk_ref[li], d_cwv_ref[li], d_cwo_ref[li],
                           bias=None, kv_h=enc_h)
        # feed-forward
        x = _rms(g, d_ln3_ref[li])
        g = g + _ffn(x, d_wi_ref[li], d_wff_ref[li])
        if li < N_DEC - 1:
            hs_ref[li] = g            # HF hidden state for layer li (not final-normed)

    gf = _rms(g, dec_final_ln_ref[...])
    hs_ref[N_DEC - 1] = gf            # last hidden state = final_layernorm(layer out)

    # tied LM head: only decoder position 0 and the 2 sentinel tokens are needed.
    scaled = gf * (D_MODEL ** -0.5)
    logits_ref[...] = jnp.dot(scaled[0:1, :], lm_cols_ref[...],
                              preferred_element_type=jnp.float32)    # (1, 2)


# --------------------------- pallas_call wrapper -----------------------------
def run_t5(params, consts, enc_emb):
    enc, dec = params['enc'], params['dec']
    args = (
        enc_emb, consts['enc_bias'], params['enc_final_ln'],
        enc['ln1'], enc['wq'], enc['wk'], enc['wv'], enc['wo'],
        enc['ln2'], enc['wi'], enc['wo_ffn'],
        consts['dec_emb'], consts['dec_bias'], params['dec_final_ln'], consts['lm_colsT'],
        dec['ln1'], dec['self_wq'], dec['self_wk'], dec['self_wv'], dec['self_wo'],
        dec['ln2'], dec['cross_wq'], dec['cross_wk'], dec['cross_wv'], dec['cross_wo'],
        dec['ln3'], dec['wi'], dec['wo_ffn'],
    )
    vmem = pl.BlockSpec(memory_space=pltpu.MemorySpace.VMEM)
    return pl.pallas_call(
        _t5_kernel,
        out_shape=(jax.ShapeDtypeStruct((N_DEC, DEC_SEQ, D_MODEL), jnp.float32),
                   jax.ShapeDtypeStruct((1, 2), jnp.float32)),
        in_specs=[vmem] * len(args),
        out_specs=(vmem, vmem),
    )(*args)


# ----------------------- relative position bias (glue) ----------------------
def _relative_position_bucket(rel_pos, bidirectional):
    num_buckets = NUM_BUCKETS
    rel_buckets = jnp.zeros_like(rel_pos)
    if bidirectional:
        num_buckets //= 2
        rel_buckets = rel_buckets + (rel_pos > 0).astype(jnp.int32) * num_buckets
        rel_pos = jnp.abs(rel_pos)
    else:
        rel_pos = -jnp.minimum(rel_pos, 0)
    max_exact = num_buckets // 2
    is_small = rel_pos < max_exact
    rel_pos_f = jnp.maximum(rel_pos, 1).astype(jnp.float32)
    rel_if_large = max_exact + (
        jnp.log(rel_pos_f / max_exact)
        / jnp.log(MAX_DISTANCE / max_exact)
        * (num_buckets - max_exact)
    ).astype(jnp.int32)
    rel_if_large = jnp.minimum(rel_if_large, num_buckets - 1)
    return rel_buckets + jnp.where(is_small, rel_pos, rel_if_large)


def rel_pos_bias(table, q_len, k_len, bidirectional):
    context = jnp.arange(q_len, dtype=jnp.int32)[:, None]
    memory = jnp.arange(k_len, dtype=jnp.int32)[None, :]
    bucket = _relative_position_bucket(memory - context, bidirectional)
    bias = table[bucket]                         # (q, k, H)
    return jnp.transpose(bias, (2, 0, 1))        # (H, q, k)


# --------------------- constants hoisted out of the hot path -----------------
def precompute_constants(params, labels):
    """Everything that depends only on params / static shapes / the fixed ' ' label."""
    enc_bias = rel_pos_bias(params['enc_rel_bias'], ENC_SEQ, ENC_SEQ, bidirectional=True)
    dec_bias = rel_pos_bias(params['dec_rel_bias'], DEC_SEQ, DEC_SEQ, bidirectional=False)
    causal = jnp.where(
        jnp.arange(DEC_SEQ)[:, None] >= jnp.arange(DEC_SEQ)[None, :], 0.0, -1e9
    ).astype(jnp.float32)
    dec_bias = dec_bias + causal[None, :, :]

    # Only logits[:, 0, {POS, NEG}] are consumed -> gather + pre-transpose the two
    # tied-embedding rows once: (D, 2).
    lm_colsT = params['shared'][jnp.array([POS_TOKEN, NEG_TOKEN], jnp.int32)].T

    # T5 shift-right: decoder_input_ids = [pad(=0), labels[:-1]]; labels are the
    # fixed tokenization of ' ', so the decoder embeddings are a constant.
    dec_input_ids = jnp.concatenate(
        [jnp.zeros((1, 1), jnp.int32), labels[:, :-1]], axis=1)
    dec_emb = params['shared'][dec_input_ids[0]]                 # (DEC_SEQ, D)

    return dict(enc_bias=enc_bias, dec_bias=dec_bias,
                lm_colsT=lm_colsT, dec_emb=dec_emb)


# ------------------------------ parameter init ------------------------------
def init_params(key):
    ks = iter(jax.random.split(key, 64))

    def nrm(shape, scale):
        return jax.random.normal(next(ks), shape, jnp.float32) * scale

    s = D_MODEL ** -0.5
    enc = dict(
        wq=nrm((N_ENC, N_HEADS, D_MODEL, D_KV), s),          # head-major
        wk=nrm((N_ENC, N_HEADS, D_MODEL, D_KV), s),
        wv=nrm((N_ENC, N_HEADS, D_MODEL, D_KV), s),
        wo=nrm((N_ENC, N_HEADS, D_KV, D_MODEL), s),
        ln1=jnp.ones((N_ENC, 1, D_MODEL), jnp.float32),
        ln2=jnp.ones((N_ENC, 1, D_MODEL), jnp.float32),
        wi=nrm((N_ENC, D_MODEL, D_FF), s),
        wo_ffn=nrm((N_ENC, D_FF, D_MODEL), D_FF ** -0.5),
    )
    dec = dict(
        self_wq=nrm((N_DEC, N_HEADS, D_MODEL, D_KV), s),
        self_wk=nrm((N_DEC, N_HEADS, D_MODEL, D_KV), s),
        self_wv=nrm((N_DEC, N_HEADS, D_MODEL, D_KV), s),
        self_wo=nrm((N_DEC, N_HEADS, D_KV, D_MODEL), s),
        cross_wq=nrm((N_DEC, N_HEADS, D_MODEL, D_KV), s),
        cross_wk=nrm((N_DEC, N_HEADS, D_MODEL, D_KV), s),
        cross_wv=nrm((N_DEC, N_HEADS, D_MODEL, D_KV), s),
        cross_wo=nrm((N_DEC, N_HEADS, D_KV, D_MODEL), s),
        ln1=jnp.ones((N_DEC, 1, D_MODEL), jnp.float32),
        ln2=jnp.ones((N_DEC, 1, D_MODEL), jnp.float32),
        ln3=jnp.ones((N_DEC, 1, D_MODEL), jnp.float32),
        wi=nrm((N_DEC, D_MODEL, D_FF), s),
        wo_ffn=nrm((N_DEC, D_FF, D_MODEL), D_FF ** -0.5),
    )
    return dict(
        shared=nrm((VOCAB, D_MODEL), 1.0),                    # tied embedding / LM head
        enc_rel_bias=nrm((NUM_BUCKETS, N_HEADS), 0.5),
        dec_rel_bias=nrm((NUM_BUCKETS, N_HEADS), 0.5),
        enc=enc, dec=dec,
        enc_final_ln=jnp.ones((1, D_MODEL), jnp.float32),
        dec_final_ln=jnp.ones((1, D_MODEL), jnp.float32),
    )


# ------------------------------- forward pass --------------------------------
def t5sentinel_forward(params, consts, input_ids):
    """Mirrors T5Sentinel.forward: returns (t5_prob (2,), decoder_hidden_states tuple).

    input_ids: (1, ENC_SEQ) int32  (what the text tokenizer would produce)
    consts:    precomputed biases / causal mask / LM-head columns / decoder embeddings
    """
    # TODO(synk): the HF SentencePiece tokenizer (str -> ids) has no Pallas
    # equivalent; token ids are taken as inputs instead.
    enc_emb = params['shared'][input_ids[0]]                  # (ENC_SEQ, D) gather (glue)

    hs, logits = run_t5(params, consts, enc_emb)              # one fused pallas_call

    # decoder_hidden_states, HF convention: (embed_out, layer_1_out, ...,
    # final_layernorm(layer_N_out)) -- N_DEC + 1 entries, each (1, DEC_SEQ, D).
    hidden_states = (consts['dec_emb'][None],) + tuple(hs[i][None] for i in range(N_DEC))

    raw = logits[0]                                           # (2,) = [positive, negative]
    t5_prob = jax.nn.softmax(raw, axis=-1)                    # final 2-way softmax (glue)
    return t5_prob, hidden_states


# ----------------------------------- main ------------------------------------
if __name__ == "__main__":
    root = jax.random.PRNGKey(0)
    k_param, k_text = jax.random.split(root)

    params = init_params(k_param)

    # Synthetic "tokenized" inputs (deterministic).
    input_ids = jax.random.randint(k_text, (1, ENC_SEQ), 0, VOCAB, dtype=jnp.int32)
    labels = jnp.array([[3, 1]], dtype=jnp.int32)   # tokenizing ' ' (max_length=2)

    # Hoisted constant glue (computed once, not per inference call).
    consts = precompute_constants(params, labels)

    fwd = jax.jit(t5sentinel_forward)
    prob, dec_hidden = fwd(params, consts, input_ids)
    prob = jax.block_until_ready(prob)
    dec_hidden = jax.block_until_ready(dec_hidden)

    assert prob.shape == (2,)
    assert abs(float(jnp.sum(prob)) - 1.0) < 1e-4
    assert len(dec_hidden) == N_DEC + 1
    assert all(hs.shape == (1, DEC_SEQ, D_MODEL) for hs in dec_hidden)
    print("KERNEL_OK")
</pallas_src>

<mosaic_0001>
module attributes {stable_mosaic.version = 11 : i64} {
  func.func @_t5_kernel(%arg0: memref<16x32xf32, #tpu.memory_space<vmem>>, %arg1: memref<4x16x16xf32, #tpu.memory_space<vmem>>, %arg2: memref<1x32xf32, #tpu.memory_space<vmem>>, %arg3: memref<2x1x32xf32, #tpu.memory_space<vmem>>, %arg4: memref<2x4x32x8xf32, #tpu.memory_space<vmem>>, %arg5: memref<2x4x32x8xf32, #tpu.memory_space<vmem>>, %arg6: memref<2x4x32x8xf32, #tpu.memory_space<vmem>>, %arg7: memref<2x4x8x32xf32, #tpu.memory_space<vmem>>, %arg8: memref<2x1x32xf32, #tpu.memory_space<vmem>>, %arg9: memref<2x32x64xf32, #tpu.memory_space<vmem>>, %arg10: memref<2x64x32xf32, #tpu.memory_space<vmem>>, %arg11: memref<2x32xf32, #tpu.memory_space<vmem>>, %arg12: memref<4x2x2xf32, #tpu.memory_space<vmem>>, %arg13: memref<1x32xf32, #tpu.memory_space<vmem>>, %arg14: memref<32x2xf32, #tpu.memory_space<vmem>>, %arg15: memref<2x1x32xf32, #tpu.memory_space<vmem>>, %arg16: memref<2x4x32x8xf32, #tpu.memory_space<vmem>>, %arg17: memref<2x4x32x8xf32, #tpu.memory_space<vmem>>, %arg18: memref<2x4x32x8xf32, #tpu.memory_space<vmem>>, %arg19: memref<2x4x8x32xf32, #tpu.memory_space<vmem>>, %arg20: memref<2x1x32xf32, #tpu.memory_space<vmem>>, %arg21: memref<2x4x32x8xf32, #tpu.memory_space<vmem>>, %arg22: memref<2x4x32x8xf32, #tpu.memory_space<vmem>>, %arg23: memref<2x4x32x8xf32, #tpu.memory_space<vmem>>, %arg24: memref<2x4x8x32xf32, #tpu.memory_space<vmem>>, %arg25: memref<2x1x32xf32, #tpu.memory_space<vmem>>, %arg26: memref<2x32x64xf32, #tpu.memory_space<vmem>>, %arg27: memref<2x64x32xf32, #tpu.memory_space<vmem>>, %arg28: memref<2x2x32xf32, #tpu.memory_space<vmem>>, %arg29: memref<1x2xf32, #tpu.memory_space<vmem>>) attributes {dimension_semantics = [], scalar_prefetch = 0 : i64, scratch_operands = 0 : i64, tpu.core_type = #tpu.core_type<tc>} {
    %c0 = arith.constant 0 : index
    %c0_0 = arith.constant 0 : index
    %0 = vector.load %arg0[%c0, %c0_0] : memref<16x32xf32, #tpu.memory_space<vmem>>, vector<16x32xf32>
    %c0_1 = arith.constant 0 : index
    %c0_2 = arith.constant 0 : index
    %c0_3 = arith.constant 0 : index
    %1 = vector.load %arg1[%c0_1, %c0_2, %c0_3] : memref<4x16x16xf32, #tpu.memory_space<vmem>>, vector<4x16x16xf32>
    %c0_4 = arith.constant 0 : index
    %c0_5 = arith.constant 0 : index
    %c0_6 = arith.constant 0 : index
    %2 = vector.load %arg3[%c0_4, %c0_5, %c0_6] : memref<2x1x32xf32, #tpu.memory_space<vmem>>, vector<1x1x32xf32>
    %3 = vector.shape_cast %2 : vector<1x1x32xf32> to vector<1x32xf32>
    %4 = arith.mulf %0, %0 : vector<16x32xf32>
    %cst = arith.constant dense<0.000000e+00> : vector<16xf32>
    %5 = vector.multi_reduction <add>, %4, %cst [1] : vector<16x32xf32> to vector<16xf32>
    %6 = vector.shape_cast %5 : vector<16xf32> to vector<16x1xf32>
    %cst_7 = arith.constant 3.200000e+01 : f32
    %7 = vector.broadcast %cst_7 : f32 to vector<16x1xf32>
    %8 = arith.divf %6, %7 : vector<16x1xf32>
    %cst_8 = arith.constant 9.99999997E-7 : f32
    %9 = vector.broadcast %cst_8 : f32 to vector<16x1xf32>
    %10 = arith.addf %8, %9 : vector<16x1xf32>
    %11 = math.rsqrt %10 : vector<16x1xf32>
    %12 = vector.broadcast %11 : vector<16x1xf32> to vector<16x32xf32>
    %13 = arith.mulf %0, %12 : vector<16x32xf32>
    %14 = vector.broadcast %3 : vector<1x32xf32> to vector<16x32xf32>
    %15 = arith.mulf %13, %14 : vector<16x32xf32>
    %c0_9 = arith.constant 0 : index
    %c0_10 = arith.constant 0 : index
    %c0_11 = arith.constant 0 : index
    %c0_12 = arith.constant 0 : index
    %16 = vector.load %arg4[%c0_9, %c0_10, %c0_11, %c0_12] : memref<2x4x32x8xf32, #tpu.memory_space<vmem>>, vector<1x4x32x8xf32>
    %17 = vector.shape_cast %16 : vector<1x4x32x8xf32> to vector<4x32x8xf32>
    %c0_13 = arith.constant 0 : index
    %c0_14 = arith.constant 0 : index
    %c0_15 = arith.constant 0 : index
    %c0_16 = arith.constant 0 : index
    %18 = vector.load %arg5[%c0_13, %c0_14, %c0_15, %c0_16] : memref<2x4x32x8xf32, #tpu.memory_space<vmem>>, vector<1x4x32x8xf32>
    %19 = vector.shape_cast %18 : vector<1x4x32x8xf32> to vector<4x32x8xf32>
    %c0_17 = arith.constant 0 : index
    %c0_18 = arith.constant 0 : index
    %c0_19 = arith.constant 0 : index
    %c0_20 = arith.constant 0 : index
    %20 = vector.load %arg6[%c0_17, %c0_18, %c0_19, %c0_20] : memref<2x4x32x8xf32, #tpu.memory_space<vmem>>, vector<1x4x32x8xf32>
    %21 = vector.shape_cast %20 : vector<1x4x32x8xf32> to vector<4x32x8xf32>
    %c0_21 = arith.constant 0 : index
    %c0_22 = arith.constant 0 : index
    %c0_23 = arith.constant 0 : index
    %c0_24 = arith.constant 0 : index
    %22 = vector.load %arg7[%c0_21, %c0_22, %c0_23, %c0_24] : memref<2x4x8x32xf32, #tpu.memory_space<vmem>>, vector<1x4x8x32xf32>
    %23 = vector.shape_cast %22 : vector<1x4x8x32xf32> to vector<4x8x32xf32>
    %24 = vector.shape_cast %15 : vector<16x32xf32> to vector<1x16x32xf32>
    %25 = vector.shape_cast %24 : vector<1x16x32xf32> to vector<1x16x32xf32>
    %26 = vector.broadcast %25 : vector<1x16x32xf32> to vector<4x16x32xf32>
    "tpu.trace_start"() <{level = 10 : i32, message = "hsd,hdk->hsk"}> : () -> ()
    %cst_25 = arith.constant dense<0.000000e+00> : vector<4x16x8xf32>
    %27 = tpu.matmul %26, %17, %cst_25 {dimension_numbers = #tpu.dot_dimension_numbers<[2], [1], [1], [2], [0, 0, 0, 1, 1, 2], [0], [0]>} : vector<4x16x32xf32>, vector<4x32x8xf32>, vector<4x16x8xf32> -> vector<4x16x8xf32>
    %cst_26 = arith.constant dense<0.000000e+00> : vector<4x16x8xf32>
    %28 = tpu.matmul %26, %19, %cst_26 {dimension_numbers = #tpu.dot_dimension_numbers<[2], [1], [1], [2], [0, 0, 0, 1, 1, 2], [0], [0]>} : vector<4x16x32xf32>, vector<4x32x8xf32>, vector<4x16x8xf32> -> vector<4x16x8xf32>
    %cst_27 = arith.constant dense<0.000000e+00> : vector<4x16x8xf32>
    %29 = tpu.matmul %26, %21, %cst_27 {dimension_numbers = #tpu.dot_dimension_numbers<[2], [1], [1], [2], [0, 0, 0, 1, 1, 2], [0], [0]>} : vector<4x16x32xf32>, vector<4x32x8xf32>, vector<4x16x8xf32> -> vector<4x16x8xf32>
    "tpu.trace_stop"() : () -> ()
    "tpu.trace_start"() <{level = 10 : i32, message = "hqd,hkd->hqk"}> : () -> ()
    %cst_28 = arith.constant dense<0.000000e+00> : vector<4x16x16xf32>
    %30 = tpu.matmul %27, %28, %cst_28 {dimension_numbers = #tpu.dot_dimension_numbers<[2], [2], [1], [1], [0, 0, 0, 1, 1, 1], [0], [0]>} : vector<4x16x8xf32>, vector<4x16x8xf32>, vector<4x16x16xf32> -> vector<4x16x16xf32>
    "tpu.trace_stop"() : () -> ()
    %31 = arith.addf %30, %1 : vector<4x16x16xf32>
    %cst_29 = arith.constant dense<0xFF800000> : vector<4x16xf32>
    %32 = vector.multi_reduction <maximumf>, %31, %cst_29 [2] : vector<4x16x16xf32> to vector<4x16xf32>
    %33 = vector.shape_cast %32 : vector<4x16xf32> to vector<4x16x1xf32>
    %34 = vector.broadcast %33 : vector<4x16x1xf32> to vector<4x16x16xf32>
    %35 = arith.subf %31, %34 : vector<4x16x16xf32>
    %36 = math.exp %35 : vector<4x16x16xf32>
    %cst_30 = arith.constant dense<0.000000e+00> : vector<4x16xf32>
    %37 = vector.multi_reduction <add>, %36, %cst_30 [2] : vector<4x16x16xf32> to vector<4x16xf32>
    %38 = vector.shape_cast %37 : vector<4x16xf32> to vector<4x16x1xf32>
    %39 = tpu.reciprocal %38 {approx = true} : vector<4x16x1xf32> -> vector<4x16x1xf32>
    %40 = vector.broadcast %39 : vector<4x16x1xf32> to vector<4x16x16xf32>
    %41 = arith.mulf %36, %40 : vector<4x16x16xf32>
    "tpu.trace_start"() <{level = 10 : i32, message = "hqk,hkd->hqd"}> : () -> ()
    %cst_31 = arith.constant dense<0.000000e+00> : vector<4x16x8xf32>
    %42 = tpu.matmul %41, %29, %cst_31 {dimension_numbers = #tpu.dot_dimension_numbers<[2], [1], [1], [2], [0, 0, 0, 1, 1, 2], [0], [0]>} : vector<4x16x16xf32>, vector<4x16x8xf32>, vector<4x16x8xf32> -> vector<4x16x8xf32>
    "tpu.trace_stop"() : () -> ()
    "tpu.trace_start"() <{level = 10 : i32, message = "hqd,hdm->hqm"}> : () -> ()
    %cst_32 = arith.constant dense<0.000000e+00> : vector<4x16x32xf32>
    %43 = tpu.matmul %42, %23, %cst_32 {dimension_numbers = #tpu.dot_dimension_numbers<[2], [1], [1], [2], [0, 0, 0, 1, 1, 2], [0], [0]>} : vector<4x16x8xf32>, vector<4x8x32xf32>, vector<4x16x32xf32> -> vector<4x16x32xf32>
    "tpu.trace_stop"() : () -> ()
    %cst_33 = arith.constant dense<0.000000e+00> : vector<16x32xf32>
    %44 = vector.multi_reduction <add>, %43, %cst_33 [0] : vector<4x16x32xf32> to vector<16x32xf32>
    %45 = arith.addf %0, %44 : vector<16x32xf32>
    %c0_34 = arith.constant 0 : index
    %c0_35 = arith.constant 0 : index
    %c0_36 = arith.constant 0 : index
    %46 = vector.load %arg8[%c0_34, %c0_35, %c0_36] : memref<2x1x32xf32, #tpu.memory_space<vmem>>, vector<1x1x32xf32>
    %47 = vector.shape_cast %46 : vector<1x1x32xf32> to vector<1x32xf32>
    %48 = arith.mulf %45, %45 : vector<16x32xf32>
    %cst_37 = arith.constant dense<0.000000e+00> : vector<16xf32>
    %49 = vector.multi_reduction <add>, %48, %cst_37 [1] : vector<16x32xf32> to vector<16xf32>
    %50 = vector.shape_cast %49 : vector<16xf32> to vector<16x1xf32>
    %cst_38 = arith.constant 3.200000e+01 : f32
    %51 = vector.broadcast %cst_38 : f32 to vector<16x1xf32>
    %52 = arith.divf %50, %51 : vector<16x1xf32>
    %cst_39 = arith.constant 9.99999997E-7 : f32
    %53 = vector.broadcast %cst_39 : f32 to vector<16x1xf32>
    %54 = arith.addf %52, %53 : vector<16x1xf32>
    %55 = math.rsqrt %54 : vector<16x1xf32>
    %56 = vector.broadcast %55 : vector<16x1xf32> to vector<16x32xf32>
    %57 = arith.mulf %45, %56 : vector<16x32xf32>
    %58 = vector.broadcast %47 : vector<1x32xf32> to vector<16x32xf32>
    %59 = arith.mulf %57, %58 : vector<16x32xf32>
    %c0_40 = arith.constant 0 : index
    %c0_41 = arith.constant 0 : index
    %c0_42 = arith.constant 0 : index
    %60 = vector.load %arg9[%c0_40, %c0_41, %c0_42] : memref<2x32x64xf32, #tpu.memory_space<vmem>>, vector<1x32x64xf32>
    %61 = vector.shape_cast %60 : vector<1x32x64xf32> to vector<32x64xf32>
    %c0_43 = arith.constant 0 : index
    %c0_44 = arith.constant 0 : index
    %c0_45 = arith.constant 0 : index
    %62 = vector.load %arg10[%c0_43, %c0_44, %c0_45] : memref<2x64x32xf32, #tpu.memory_space<vmem>>, vector<1x64x32xf32>
    %63 = vector.shape_cast %62 : vector<1x64x32xf32> to vector<64x32xf32>
    %cst_46 = arith.constant dense<0.000000e+00> : vector<16x64xf32>
    %64 = tpu.matmul %59, %61, %cst_46 {dimension_numbers = #tpu.dot_dimension_numbers<[1], [0], [0], [1], [0, 0, 1, 1], [], []>} : vector<16x32xf32>, vector<32x64xf32>, vector<16x64xf32> -> vector<16x64xf32>
    %cst_47 = arith.constant 0.000000e+00 : f32
    %65 = vector.broadcast %cst_47 : f32 to vector<16x64xf32>
    %66 = arith.maximumf %64, %65 : vector<16x64xf32>
    %cst_48 = arith.constant dense<0.000000e+00> : vector<16x32xf32>
    %67 = tpu.matmul %66, %63, %cst_48 {dimension_numbers = #tpu.dot_dimension_numbers<[1], [0], [0], [1], [0, 0, 1, 1], [], []>} : vector<16x64xf32>, vector<64x32xf32>, vector<16x32xf32> -> vector<16x32xf32>
    %68 = arith.addf %45, %67 : vector<16x32xf32>
    %c1 = arith.constant 1 : index
    %c0_49 = arith.constant 0 : index
    %c0_50 = arith.constant 0 : index
    %69 = vector.load %arg3[%c1, %c0_49, %c0_50] : memref<2x1x32xf32, #tpu.memory_space<vmem>>, vector<1x1x32xf32>
    %70 = vector.shape_cast %69 : vector<1x1x32xf32> to vector<1x32xf32>
    %71 = arith.mulf %68, %68 : vector<16x32xf32>
    %cst_51 = arith.constant dense<0.000000e+00> : vector<16xf32>
    %72 = vector.multi_reduction <add>, %71, %cst_51 [1] : vector<16x32xf32> to vector<16xf32>
    %73 = vector.shape_cast %72 : vector<16xf32> to vector<16x1xf32>
    %cst_52 = arith.constant 3.200000e+01 : f32
    %74 = vector.broadcast %cst_52 : f32 to vector<16x1xf32>
    %75 = arith.divf %73, %74 : vector<16x1xf32>
    %cst_53 = arith.constant 9.99999997E-7 : f32
    %76 = vector.broadcast %cst_53 : f32 to vector<16x1xf32>
    %77 = arith.addf %75, %76 : vector<16x1xf32>
    %78 = math.rsqrt %77 : vector<16x1xf32>
    %79 = vector.broadcast %78 : vector<16x1xf32> to vector<16x32xf32>
    %80 = arith.mulf %68, %79 : vector<16x32xf32>
    %81 = vector.broadcast %70 : vector<1x32xf32> to vector<16x32xf32>
    %82 = arith.mulf %80, %81 : vector<16x32xf32>
    %c1_54 = arith.constant 1 : index
    %c0_55 = arith.constant 0 : index
    %c0_56 = arith.constant 0 : index
    %c0_57 = arith.constant 0 : index
    %83 = vector.load %arg4[%c1_54, %c0_55, %c0_56, %c0_57] : memref<2x4x32x8xf32, #tpu.memory_space<vmem>>, vector<1x4x32x8xf32>
    %84 = vector.shape_cast %83 : vector<1x4x32x8xf32> to vector<4x32x8xf32>
    %c1_58 = arith.constant 1 : index
    %c0_59 = arith.constant 0 : index
    %c0_60 = arith.constant 0 : index
    %c0_61 = arith.constant 0 : index
    %85 = vector.load %arg5[%c1_58, %c0_59, %c0_60, %c0_61] : memref<2x4x32x8xf32, #tpu.memory_space<vmem>>, vector<1x4x32x8xf32>
    %86 = vector.shape_cast %85 : vector<1x4x32x8xf32> to vector<4x32x8xf32>
    %c1_62 = arith.constant 1 : index
    %c0_63 = arith.constant 0 : index
    %c0_64 = arith.constant 0 : index
    %c0_65 = arith.constant 0 : index
    %87 = vector.load %arg6[%c1_62, %c0_63, %c0_64, %c0_65] : memref<2x4x32x8xf32, #tpu.memory_space<vmem>>, vector<1x4x32x8xf32>
    %88 = vector.shape_cast %87 : vector<1x4x32x8xf32> to vector<4x32x8xf32>
    %c1_66 = arith.constant 1 : index
    %c0_67 = arith.constant 0 : index
    %c0_68 = arith.constant 0 : index
    %c0_69 = arith.constant 0 : index
    %89 = vector.load %arg7[%c1_66, %c0_67, %c0_68, %c0_69] : memref<2x4x8x32xf32, #tpu.memory_space<vmem>>, vector<1x4x8x32xf32>
    %90 = vector.shape_cast %89 : vector<1x4x8x32xf32> to vector<4x8x32xf32>
    %91 = vector.shape_cast %82 : vector<16x32xf32> to vector<1x16x32xf32>
    %92 = vector.shape_cast %91 : vector<1x16x32xf32> to vector<1x16x32xf32>
    %93 = vector.broadcast %92 : vector<1x16x32xf32> to vector<4x16x32xf32>
    "tpu.trace_start"() <{level = 10 : i32, message = "hsd,hdk->hsk"}> : () -> ()
    %cst_70 = arith.constant dense<0.000000e+00> : vector<4x16x8xf32>
    %94 = tpu.matmul %93, %84, %cst_70 {dimension_numbers = #tpu.dot_dimension_numbers<[2], [1], [1], [2], [0, 0, 0, 1, 1, 2], [0], [0]>} : vector<4x16x32xf32>, vector<4x32x8xf32>, vector<4x16x8xf32> -> vector<4x16x8xf32>
    %cst_71 = arith.constant dense<0.000000e+00> : vector<4x16x8xf32>
    %95 = tpu.matmul %93, %86, %cst_71 {dimension_numbers = #tpu.dot_dimension_numbers<[2], [1], [1], [2], [0, 0, 0, 1, 1, 2], [0], [0]>} : vector<4x16x32xf32>, vector<4x32x8xf32>, vector<4x16x8xf32> -> vector<4x16x8xf32>
    %cst_72 = arith.constant dense<0.000000e+00> : vector<4x16x8xf32>
    %96 = tpu.matmul %93, %88, %cst_72 {dimension_numbers = #tpu.dot_dimension_numbers<[2], [1], [1], [2], [0, 0, 0, 1, 1, 2], [0], [0]>} : vector<4x16x32xf32>, vector<4x32x8xf32>, vector<4x16x8xf32> -> vector<4x16x8xf32>
    "tpu.trace_stop"() : () -> ()
    "tpu.trace_start"() <{level = 10 : i32, message = "hqd,hkd->hqk"}> : () -> ()
    %cst_73 = arith.constant dense<0.000000e+00> : vector<4x16x16xf32>
    %97 = tpu.matmul %94, %95, %cst_73 {dimension_numbers = #tpu.dot_dimension_numbers<[2], [2], [1], [1], [0, 0, 0, 1, 1, 1], [0], [0]>} : vector<4x16x8xf32>, vector<4x16x8xf32>, vector<4x16x16xf32> -> vector<4x16x16xf32>
    "tpu.trace_stop"() : () -> ()
    %98 = arith.addf %97, %1 : vector<4x16x16xf32>
    %cst_74 = arith.constant dense<0xFF800000> : vector<4x16xf32>
    %99 = vector.multi_reduction <maximumf>, %98, %cst_74 [2] : vector<4x16x16xf32> to vector<4x16xf32>
    %100 = vector.shape_cast %99 : vector<4x16xf32> to vector<4x16x1xf32>
    %101 = vector.broadcast %100 : vector<4x16x1xf32> to vector<4x16x16xf32>
    %102 = arith.subf %98, %101 : vector<4x16x16xf32>
    %103 = math.exp %102 : vector<4x16x16xf32>
    %cst_75 = arith.constant dense<0.000000e+00> : vector<4x16xf32>
    %104 = vector.multi_reduction <add>, %103, %cst_75 [2] : vector<4x16x16xf32> to vector<4x16xf32>
    %105 = vector.shape_cast %104 : vector<4x16xf32> to vector<4x16x1xf32>
    %106 = tpu.reciprocal %105 {approx = true} : vector<4x16x1xf32> -> vector<4x16x1xf32>
    %107 = vector.broadcast %106 : vector<4x16x1xf32> to vector<4x16x16xf32>
    %108 = arith.mulf %103, %107 : vector<4x16x16xf32>
    "tpu.trace_start"() <{level = 10 : i32, message = "hqk,hkd->hqd"}> : () -> ()
    %cst_76 = arith.constant dense<0.000000e+00> : vector<4x16x8xf32>
    %109 = tpu.matmul %108, %96, %cst_76 {dimension_numbers = #tpu.dot_dimension_numbers<[2], [1], [1], [2], [0, 0, 0, 1, 1, 2], [0], [0]>} : vector<4x16x16xf32>, vector<4x16x8xf32>, vector<4x16x8xf32> -> vector<4x16x8xf32>
    "tpu.trace_stop"() : () -> ()
    "tpu.trace_start"() <{level = 10 : i32, message = "hqd,hdm->hqm"}> : () -> ()
    %cst_77 = arith.constant dense<0.000000e+00> : vector<4x16x32xf32>
    %110 = tpu.matmul %109, %90, %cst_77 {dimension_numbers = #tpu.dot_dimension_numbers<[2], [1], [1], [2], [0, 0, 0, 1, 1, 2], [0], [0]>} : vector<4x16x8xf32>, vector<4x8x32xf32>, vector<4x16x32xf32> -> vector<4x16x32xf32>
    "tpu.trace_stop"() : () -> ()
    %cst_78 = arith.constant dense<0.000000e+00> : vector<16x32xf32>
    %111 = vector.multi_reduction <add>, %110, %cst_78 [0] : vector<4x16x32xf32> to vector<16x32xf32>
    %112 = arith.addf %68, %111 : vector<16x32xf32>
    %c1_79 = arith.constant 1 : index
    %c0_80 = arith.constant 0 : index
    %c0_81 = arith.constant 0 : index
    %113 = vector.load %arg8[%c1_79, %c0_80, %c0_81] : memref<2x1x32xf32, #tpu.memory_space<vmem>>, vector<1x1x32xf32>
    %114 = vector.shape_cast %113 : vector<1x1x32xf32> to vector<1x32xf32>
    %115 = arith.mulf %112, %112 : vector<16x32xf32>
    %cst_82 = arith.constant dense<0.000000e+00> : vector<16xf32>
    %116 = vector.multi_reduction <add>, %115, %cst_82 [1] : vector<16x32xf32> to vector<16xf32>
    %117 = vector.shape_cast %116 : vector<16xf32> to vector<16x1xf32>
    %cst_83 = arith.constant 3.200000e+01 : f32
    %118 = vector.broadcast %cst_83 : f32 to vector<16x1xf32>
    %119 = arith.divf %117, %118 : vector<16x1xf32>
    %cst_84 = arith.constant 9.99999997E-7 : f32
    %120 = vector.broadcast %cst_84 : f32 to vector<16x1xf32>
    %121 = arith.addf %119, %120 : vector<16x1xf32>
    %122 = math.rsqrt %121 : vector<16x1xf32>
    %123 = vector.broadcast %122 : vector<16x1xf32> to vector<16x32xf32>
    %124 = arith.mulf %112, %123 : vector<16x32xf32>
    %125 = vector.broadcast %114 : vector<1x32xf32> to vector<16x32xf32>
    %126 = arith.mulf %124, %125 : vector<16x32xf32>
    %c1_85 = arith.constant 1 : index
    %c0_86 = arith.constant 0 : index
    %c0_87 = arith.constant 0 : index
    %127 = vector.load %arg9[%c1_85, %c0_86, %c0_87] : memref<2x32x64xf32, #tpu.memory_space<vmem>>, vector<1x32x64xf32>
    %128 = vector.shape_cast %127 : vector<1x32x64xf32> to vector<32x64xf32>
    %c1_88 = arith.constant 1 : index
    %c0_89 = arith.constant 0 : index
    %c0_90 = arith.constant 0 : index
    %129 = vector.load %arg10[%c1_88, %c0_89, %c0_90] : memref<2x64x32xf32, #tpu.memory_space<vmem>>, vector<1x64x32xf32>
    %130 = vector.shape_cast %129 : vector<1x64x32xf32> to vector<64x32xf32>
    %cst_91 = arith.constant dense<0.000000e+00> : vector<16x64xf32>
    %131 = tpu.matmul %126, %128, %cst_91 {dimension_numbers = #tpu.dot_dimension_numbers<[1], [0], [0], [1], [0, 0, 1, 1], [], []>} : vector<16x32xf32>, vector<32x64xf32>, vector<16x64xf32> -> vector<16x64xf32>
    %cst_92 = arith.constant 0.000000e+00 : f32
    %132 = vector.broadcast %cst_92 : f32 to vector<16x64xf32>
    %133 = arith.maximumf %131, %132 : vector<16x64xf32>
    %cst_93 = arith.constant dense<0.000000e+00> : vector<16x32xf32>
    %134 = tpu.matmul %133, %130, %cst_93 {dimension_numbers = #tpu.dot_dimension_numbers<[1], [0], [0], [1], [0, 0, 1, 1], [], []>} : vector<16x64xf32>, vector<64x32xf32>, vector<16x32xf32> -> vector<16x32xf32>
    %135 = arith.addf %112, %134 : vector<16x32xf32>
    %c0_94 = arith.constant 0 : index
    %c0_95 = arith.constant 0 : index
    %136 = vector.load %arg2[%c0_94, %c0_95] : memref<1x32xf32, #tpu.memory_space<vmem>>, vector<1x32xf32>
    %137 = arith.mulf %135, %135 : vector<16x32xf32>
    %cst_96 = arith.constant dense<0.000000e+00> : vector<16xf32>
    %138 = vector.multi_reduction <add>, %137, %cst_96 [1] : vector<16x32xf32> to vector<16xf32>
    %139 = vector.shape_cast %138 : vector<16xf32> to vector<16x1xf32>
    %cst_97 = arith.constant 3.200000e+01 : f32
    %140 = vector.broadcast %cst_97 : f32 to vector<16x1xf32>
    %141 = arith.divf %139, %140 : vector<16x1xf32>
    %cst_98 = arith.constant 9.99999997E-7 : f32
    %142 = vector.broadcast %cst_98 : f32 to vector<16x1xf32>
    %143 = arith.addf %141, %142 : vector<16x1xf32>
    %144 = math.rsqrt %143 : vector<16x1xf32>
    %145 = vector.broadcast %144 : vector<16x1xf32> to vector<16x32xf32>
    %146 = arith.mulf %135, %145 : vector<16x32xf32>
    %147 = vector.broadcast %136 : vector<1x32xf32> to vector<16x32xf32>
    %148 = arith.mulf %146, %147 : vector<16x32xf32>
    %149 = vector.shape_cast %148 : vector<16x32xf32> to vector<1x16x32xf32>
    %150 = vector.shape_cast %149 : vector<1x16x32xf32> to vector<1x16x32xf32>
    %151 = vector.broadcast %150 : vector<1x16x32xf32> to vector<4x16x32xf32>
    %c0_99 = arith.constant 0 : index
    %c0_100 = arith.constant 0 : index
    %152 = vector.load %arg11[%c0_99, %c0_100] : memref<2x32xf32, #tpu.memory_space<vmem>>, vector<2x32xf32>
    %c0_101 = arith.constant 0 : index
    %c0_102 = arith.constant 0 : index
    %c0_103 = arith.constant 0 : index
    %153 = vector.load %arg12[%c0_101, %c0_102, %c0_103] : memref<4x2x2xf32, #tpu.memory_space<vmem>>, vector<4x2x2xf32>
    %c0_104 = arith.constant 0 : index
    %c0_105 = arith.constant 0 : index
    %c0_106 = arith.constant 0 : index
    %154 = vector.load %arg15[%c0_104, %c0_105, %c0_106] : memref<2x1x32xf32, #tpu.memory_space<vmem>>, vector<1x1x32xf32>
    %155 = vector.shape_cast %154 : vector<1x1x32xf32> to vector<1x32xf32>
    %156 = arith.mulf %152, %152 : vector<2x32xf32>
    %cst_107 = arith.constant dense<0.000000e+00> : vector<2xf32>
    %157 = vector.multi_reduction <add>, %156, %cst_107 [1] : vector<2x32xf32> to vector<2xf32>
    %158 = vector.shape_cast %157 : vector<2xf32> to vector<2x1xf32>
    %cst_108 = arith.constant 3.200000e+01 : f32
    %159 = vector.broadcast %cst_108 : f32 to vector<2x1xf32>
    %160 = arith.divf %158, %159 : vector<2x1xf32>
    %cst_109 = arith.constant 9.99999997E-7 : f32
    %161 = vector.broadcast %cst_109 : f32 to vector<2x1xf32>
    %162 = arith.addf %160, %161 : vector<2x1xf32>
    %163 = math.rsqrt %162 : vector<2x1xf32>
    %164 = vector.broadcast %163 : vector<2x1xf32> to vector<2x32xf32>
    %165 = arith.mulf %152, %164 : vector<2x32xf32>
    %166 = vector.broadcast %155 : vector<1x32xf32> to vector<2x32xf32>
    %167 = arith.mulf %165, %166 : vector<2x32xf32>
    %c0_110 = arith.constant 0 : index
    %c0_111 = arith.constant 0 : index
    %c0_112 = arith.constant 0 : index
    %c0_113 = arith.constant 0 : index
    %168 = vector.load %arg16[%c0_110, %c0_111, %c0_112, %c0_113] : memref<2x4x32x8xf32, #tpu.memory_space<vmem>>, vector<1x4x32x8xf32>
    %169 = vector.shape_cast %168 : vector<1x4x32x8xf32> to vector<4x32x8xf32>
    %c0_114 = arith.constant 0 : index
    %c0_115 = arith.constant 0 : index
    %c0_116 = arith.constant 0 : index
    %c0_117 = arith.constant 0 : index
    %170 = vector.load %arg17[%c0_114, %c0_115, %c0_116, %c0_117] : memref<2x4x32x8xf32, #tpu.memory_space<vmem>>, vector<1x4x32x8xf32>
    %171 = vector.shape_cast %170 : vector<1x4x32x8xf32> to vector<4x32x8xf32>
    %c0_118 = arith.constant 0 : index
    %c0_119 = arith.constant 0 : index
    %c0_120 = arith.constant 0 : index
    %c0_121 = arith.constant 0 : index
    %172 = vector.load %arg18[%c0_118, %c0_119, %c0_120, %c0_121] : memref<2x4x32x8xf32, #tpu.memory_space<vmem>>, vector<1x4x32x8xf32>
    %173 = vector.shape_cast %172 : vector<1x4x32x8xf32> to vector<4x32x8xf32>
    %c0_122 = arith.constant 0 : index
    %c0_123 = arith.constant 0 : index
    %c0_124 = arith.constant 0 : index
    %c0_125 = arith.constant 0 : index
    %174 = vector.load %arg19[%c0_122, %c0_123, %c0_124, %c0_125] : memref<2x4x8x32xf32, #tpu.memory_space<vmem>>, vector<1x4x8x32xf32>
    %175 = vector.shape_cast %174 : vector<1x4x8x32xf32> to vector<4x8x32xf32>
    %176 = vector.shape_cast %167 : vector<2x32xf32> to vector<1x2x32xf32>
    %177 = vector.shape_cast %176 : vector<1x2x32xf32> to vector<1x2x32xf32>
    %178 = vector.broadcast %177 : vector<1x2x32xf32> to vector<4x2x32xf32>
    "tpu.trace_start"() <{level = 10 : i32, message = "hsd,hdk->hsk"}> : () -> ()
    %cst_126 = arith.constant dense<0.000000e+00> : vector<4x2x8xf32>
    %179 = tpu.matmul %178, %169, %cst_126 {dimension_numbers = #tpu.dot_dimension_numbers<[2], [1], [1], [2], [0, 0, 0, 1, 1, 2], [0], [0]>} : vector<4x2x32xf32>, vector<4x32x8xf32>, vector<4x2x8xf32> -> vector<4x2x8xf32>
    %cst_127 = arith.constant dense<0.000000e+00> : vector<4x2x8xf32>
    %180 = tpu.matmul %178, %171, %cst_127 {dimension_numbers = #tpu.dot_dimension_numbers<[2], [1], [1], [2], [0, 0, 0, 1, 1, 2], [0], [0]>} : vector<4x2x32xf32>, vector<4x32x8xf32>, vector<4x2x8xf32> -> vector<4x2x8xf32>
    %cst_128 = arith.constant dense<0.000000e+00> : vector<4x2x8xf32>
    %181 = tpu.matmul %178, %173, %cst_128 {dimension_numbers = #tpu.dot_dimension_numbers<[2], [1], [1], [2], [0, 0, 0, 1, 1, 2], [0], [0]>} : vector<4x2x32xf32>, vector<4x32x8xf32>, vector<4x2x8xf32> -> vector<4x2x8xf32>
    "tpu.trace_stop"() : () -> ()
    "tpu.trace_start"() <{level = 10 : i32, message = "hqd,hkd->hqk"}> : () -> ()
    %cst_129 = arith.constant dense<0.000000e+00> : vector<4x2x2xf32>
    %182 = tpu.matmul %179, %180, %cst_129 {dimension_numbers = #tpu.dot_dimension_numbers<[2], [2], [1], [1], [0, 0, 0, 1, 1, 1], [0], [0]>} : vector<4x2x8xf32>, vector<4x2x8xf32>, vector<4x2x2xf32> -> vector<4x2x2xf32>
    "tpu.trace_stop"() : () -> ()
    %183 = arith.addf %182, %153 : vector<4x2x2xf32>
    %cst_130 = arith.constant dense<0xFF800000> : vector<4x2xf32>
    %184 = vector.multi_reduction <maximumf>, %183, %cst_130 [2] : vector<4x2x2xf32> to vector<4x2xf32>
    %185 = vector.shape_cast %184 : vector<4x2xf32> to vector<4x2x1xf32>
    %186 = vector.broadcast %185 : vector<4x2x1xf32> to vector<4x2x2xf32>
    %187 = arith.subf %183, %186 : vector<4x2x2xf32>
    %188 = math.exp %187 : vector<4x2x2xf32>
    %cst_131 = arith.constant dense<0.000000e+00> : vector<4x2xf32>
    %189 = vector.multi_reduction <add>, %188, %cst_131 [2] : vector<4x2x2xf32> to vector<4x2xf32>
    %190 = vector.shape_cast %189 : vector<4x2xf32> to vector<4x2x1xf32>
    %191 = tpu.reciprocal %190 {approx = true} : vector<4x2x1xf32> -> vector<4x2x1xf32>
    %192 = vector.broadcast %191 : vector<4x2x1xf32> to vector<4x2x2xf32>
    %193 = arith.mulf %188, %192 : vector<4x2x2xf32>
    "tpu.trace_start"() <{level = 10 : i32, message = "hqk,hkd->hqd"}> : () -> ()
    %cst_132 = arith.constant dense<0.000000e+00> : vector<4x2x8xf32>
    %194 = tpu.matmul %193, %181, %cst_132 {dimension_numbers = #tpu.dot_dimension_numbers<[2], [1], [1], [2], [0, 0, 0, 1, 1, 2], [0], [0]>} : vector<4x2x2xf32>, vector<4x2x8xf32>, vector<4x2x8xf32> -> vector<4x2x8xf32>
    "tpu.trace_stop"() : () -> ()
    "tpu.trace_start"() <{level = 10 : i32, message = "hqd,hdm->hqm"}> : () -> ()
    %cst_133 = arith.constant dense<0.000000e+00> : vector<4x2x32xf32>
    %195 = tpu.matmul %194, %175, %cst_133 {dimension_numbers = #tpu.dot_dimension_numbers<[2], [1], [1], [2], [0, 0, 0, 1, 1, 2], [0], [0]>} : vector<4x2x8xf32>, vector<4x8x32xf32>, vector<4x2x32xf32> -> vector<4x2x32xf32>
    "tpu.trace_stop"() : () -> ()
    %cst_134 = arith.constant dense<0.000000e+00> : vector<2x32xf32>
    %196 = vector.multi_reduction <add>, %195, %cst_134 [0] : vector<4x2x32xf32> to vector<2x32xf32>
    %197 = arith.addf %152, %196 : vector<2x32xf32>
    %c0_135 = arith.constant 0 : index
    %c0_136 = arith.constant 0 : index
    %c0_137 = arith.constant 0 : index
    %198 = vector.load %arg20[%c0_135, %c0_136, %c0_137] : memref<2x1x32xf32, #tpu.memory_space<vmem>>, vector<1x1x32xf32>
    %199 = vector.shape_cast %198 : vector<1x1x32xf32> to vector<1x32xf32>
    %200 = arith.mulf %197, %197 : vector<2x32xf32>
    %cst_138 = arith.constant dense<0.000000e+00> : vector<2xf32>
    %201 = vector.multi_reduction <add>, %200, %cst_138 [1] : vector<2x32xf32> to vector<2xf32>
    %202 = vector.shape_cast %201 : vector<2xf32> to vector<2x1xf32>
    %cst_139 = arith.constant 3.200000e+01 : f32
    %203 = vector.broadcast %cst_139 : f32 to vector<2x1xf32>
    %204 = arith.divf %202, %203 : vector<2x1xf32>
    %cst_140 = arith.constant 9.99999997E-7 : f32
    %205 = vector.broadcast %cst_140 : f32 to vector<2x1xf32>
    %206 = arith.addf %204, %205 : vector<2x1xf32>
    %207 = math.rsqrt %206 : vector<2x1xf32>
    %208 = vector.broadcast %207 : vector<2x1xf32> to vector<2x32xf32>
    %209 = arith.mulf %197, %208 : vector<2x32xf32>
    %210 = vector.broadcast %199 : vector<1x32xf32> to vector<2x32xf32>
    %211 = arith.mulf %209, %210 : vector<2x32xf32>
    %c0_141 = arith.constant 0 : index
    %c0_142 = arith.constant 0 : index
    %c0_143 = arith.constant 0 : index
    %c0_144 = arith.constant 0 : index
    %212 = vector.load %arg21[%c0_141, %c0_142, %c0_143, %c0_144] : memref<2x4x32x8xf32, #tpu.memory_space<vmem>>, vector<1x4x32x8xf32>
    %213 = vector.shape_cast %212 : vector<1x4x32x8xf32> to vector<4x32x8xf32>
    %c0_145 = arith.constant 0 : index
    %c0_146 = arith.constant 0 : index
    %c0_147 = arith.constant 0 : index
    %c0_148 = arith.constant 0 : index
    %214 = vector.load %arg22[%c0_145, %c0_146, %c0_147, %c0_148] : memref<2x4x32x8xf32, #tpu.memory_space<vmem>>, vector<1x4x32x8xf32>
    %215 = vector.shape_cast %214 : vector<1x4x32x8xf32> to vector<4x32x8xf32>
    %c0_149 = arith.constant 0 : index
    %c0_150 = arith.constant 0 : index
    %c0_151 = arith.constant 0 : index
    %c0_152 = arith.constant 0 : index
    %216 = vector.load %arg23[%c0_149, %c0_150, %c0_151, %c0_152] : memref<2x4x32x8xf32, #tpu.memory_space<vmem>>, vector<1x4x32x8xf32>
    %217 = vector.shape_cast %216 : vector<1x4x32x8xf32> to vector<4x32x8xf32>
    %c0_153 = arith.constant 0 : index
    %c0_154 = arith.constant 0 : index
    %c0_155 = arith.constant 0 : index
    %c0_156 = arith.constant 0 : index
    %218 = vector.load %arg24[%c0_153, %c0_154, %c0_155, %c0_156] : memref<2x4x8x32xf32, #tpu.memory_space<vmem>>, vector<1x4x8x32xf32>
    %219 = vector.shape_cast %218 : vector<1x4x8x32xf32> to vector<4x8x32xf32>
    %220 = vector.shape_cast %211 : vector<2x32xf32> to vector<1x2x32xf32>
    %221 = vector.shape_cast %220 : vector<1x2x32xf32> to vector<1x2x32xf32>
    %222 = vector.broadcast %221 : vector<1x2x32xf32> to vector<4x2x32xf32>
    "tpu.trace_start"() <{level = 10 : i32, message = "hsd,hdk->hsk"}> : () -> ()
    %cst_157 = arith.constant dense<0.000000e+00> : vector<4x2x8xf32>
    %223 = tpu.matmul %222, %213, %cst_157 {dimension_numbers = #tpu.dot_dimension_numbers<[2], [1], [1], [2], [0, 0, 0, 1, 1, 2], [0], [0]>} : vector<4x2x32xf32>, vector<4x32x8xf32>, vector<4x2x8xf32> -> vector<4x2x8xf32>
    %cst_158 = arith.constant dense<0.000000e+00> : vector<4x16x8xf32>
    %224 = tpu.matmul %151, %215, %cst_158 {dimension_numbers = #tpu.dot_dimension_numbers<[2], [1], [1], [2], [0, 0, 0, 1, 1, 2], [0], [0]>} : vector<4x16x32xf32>, vector<4x32x8xf32>, vector<4x16x8xf32> -> vector<4x16x8xf32>
    %cst_159 = arith.constant dense<0.000000e+00> : vector<4x16x8xf32>
    %225 = tpu.matmul %151, %217, %cst_159 {dimension_numbers = #tpu.dot_dimension_numbers<[2], [1], [1], [2], [0, 0, 0, 1, 1, 2], [0], [0]>} : vector<4x16x32xf32>, vector<4x32x8xf32>, vector<4x16x8xf32> -> vector<4x16x8xf32>
    "tpu.trace_stop"() : () -> ()
    "tpu.trace_start"() <{level = 10 : i32, message = "hqd,hkd->hqk"}> : () -> ()
    %cst_160 = arith.constant dense<0.000000e+00> : vector<4x2x16xf32>
    %226 = tpu.matmul %223, %224, %cst_160 {dimension_numbers = #tpu.dot_dimension_numbers<[2], [2], [1], [1], [0, 0, 0, 1, 1, 1], [0], [0]>} : vector<4x2x8xf32>, vector<4x16x8xf32>, vector<4x2x16xf32> -> vector<4x2x16xf32>
    "tpu.trace_stop"() : () -> ()
    %cst_161 = arith.constant dense<0xFF800000> : vector<4x2xf32>
    %227 = vector.multi_reduction <maximumf>, %226, %cst_161 [2] : vector<4x2x16xf32> to vector<4x2xf32>
    %228 = vector.shape_cast %227 : vector<4x2xf32> to vector<4x2x1xf32>
    %229 = vector.broadcast %228 : vector<4x2x1xf32> to vector<4x2x16xf32>
    %230 = arith.subf %226, %229 : vector<4x2x16xf32>
    %231 = math.exp %230 : vector<4x2x16xf32>
    %cst_162 = arith.constant dense<0.000000e+00> : vector<4x2xf32>
    %232 = vector.multi_reduction <add>, %231, %cst_162 [2] : vector<4x2x16xf32> to vector<4x2xf32>
    %233 = vector.shape_cast %232 : vector<4x2xf32> to vector<4x2x1xf32>
    %234 = tpu.reciprocal %233 {approx = true} : vector<4x2x1xf32> -> vector<4x2x1xf32>
    %235 = vector.broadcast %234 : vector<4x2x1xf32> to vector<4x2x16xf32>
    %236 = arith.mulf %231, %235 : vector<4x2x16xf32>
    "tpu.trace_start"() <{level = 10 : i32, message = "hqk,hkd->hqd"}> : () -> ()
    %cst_163 = arith.constant dense<0.000000e+00> : vector<4x2x8xf32>
    %237 = tpu.matmul %236, %225, %cst_163 {dimension_numbers = #tpu.dot_dimension_numbers<[2], [1], [1], [2], [0, 0, 0, 1, 1, 2], [0], [0]>} : vector<4x2x16xf32>, vector<4x16x8xf32>, vector<4x2x8xf32> -> vector<4x2x8xf32>
    "tpu.trace_stop"() : () -> ()
    "tpu.trace_start"() <{level = 10 : i32, message = "hqd,hdm->hqm"}> : () -> ()
    %cst_164 = arith.constant dense<0.000000e+00> : vector<4x2x32xf32>
    %238 = tpu.matmul %237, %219, %cst_164 {dimension_numbers = #tpu.dot_dimension_numbers<[2], [1], [1], [2], [0, 0, 0, 1, 1, 2], [0], [0]>} : vector<4x2x8xf32>, vector<4x8x32xf32>, vector<4x2x32xf32> -> vector<4x2x32xf32>
    "tpu.trace_stop"() : () -> ()
    %cst_165 = arith.constant dense<0.000000e+00> : vector<2x32xf32>
    %239 = vector.multi_reduction <add>, %238, %cst_165 [0] : vector<4x2x32xf32> to vector<2x32xf32>
    %240 = arith.addf %197, %239 : vector<2x32xf32>
    %c0_166 = arith.constant 0 : index
    %c0_167 = arith.constant 0 : index
    %c0_168 = arith.constant 0 : index
    %241 = vector.load %arg25[%c0_166, %c0_167, %c0_168] : memref<2x1x32xf32, #tpu.memory_space<vmem>>, vector<1x1x32xf32>
    %242 = vector.shape_cast %241 : vector<1x1x32xf32> to vector<1x32xf32>
    %243 = arith.mulf %240, %240 : vector<2x32xf32>
    %cst_169 = arith.constant dense<0.000000e+00> : vector<2xf32>
    %244 = vector.multi_reduction <add>, %243, %cst_169 [1] : vector<2x32xf32> to vector<2xf32>
    %245 = vector.shape_cast %244 : vector<2xf32> to vector<2x1xf32>
    %cst_170 = arith.constant 3.200000e+01 : f32
    %246 = vector.broadcast %cst_170 : f32 to vector<2x1xf32>
    %247 = arith.divf %245, %246 : vector<2x1xf32>
    %cst_171 = arith.constant 9.99999997E-7 : f32
    %248 = vector.broadcast %cst_171 : f32 to vector<2x1xf32>
    %249 = arith.addf %247, %248 : vector<2x1xf32>
    %250 = math.rsqrt %249 : vector<2x1xf32>
    %251 = vector.broadcast %250 : vector<2x1xf32> to vector<2x32xf32>
    %252 = arith.mulf %240, %251 : vector<2x32xf32>
    %253 = vector.broadcast %242 : vector<1x32xf32> to vector<2x32xf32>
    %254 = arith.mulf %252, %253 : vector<2x32xf32>
    %c0_172 = arith.constant 0 : index
    %c0_173 = arith.constant 0 : index
    %c0_174 = arith.constant 0 : index
    %255 = vector.load %arg26[%c0_172, %c0_173, %c0_174] : memref<2x32x64xf32, #tpu.memory_space<vmem>>, vector<1x32x64xf32>
    %256 = vector.shape_cast %255 : vector<1x32x64xf32> to vector<32x64xf32>
    %c0_175 = arith.constant 0 : index
    %c0_176 = arith.constant 0 : index
    %c0_177 = arith.constant 0 : index
    %257 = vector.load %arg27[%c0_175, %c0_176, %c0_177] : memref<2x64x32xf32, #tpu.memory_space<vmem>>, vector<1x64x32xf32>
    %258 = vector.shape_cast %257 : vector<1x64x32xf32> to vector<64x32xf32>
    %cst_178 = arith.constant dense<0.000000e+00> : vector<2x64xf32>
    %259 = tpu.matmul %254, %256, %cst_178 {dimension_numbers = #tpu.dot_dimension_numbers<[1], [0], [0], [1], [0, 0, 1, 1], [], []>} : vector<2x32xf32>, vector<32x64xf32>, vector<2x64xf32> -> vector<2x64xf32>
    %cst_179 = arith.constant 0.000000e+00 : f32
    %260 = vector.broadcast %cst_179 : f32 to vector<2x64xf32>
    %261 = arith.maximumf %259, %260 : vector<2x64xf32>
    %cst_180 = arith.constant dense<0.000000e+00> : vector<2x32xf32>
    %262 = tpu.matmul %261, %258, %cst_180 {dimension_numbers = #tpu.dot_dimension_numbers<[1], [0], [0], [1], [0, 0, 1, 1], [], []>} : vector<2x64xf32>, vector<64x32xf32>, vector<2x32xf32> -> vector<2x32xf32>
    %263 = arith.addf %240, %262 : vector<2x32xf32>
    %c0_181 = arith.constant 0 : index
    %c0_182 = arith.constant 0 : index
    %c0_183 = arith.constant 0 : index
    %264 = vector.load %arg28[%c0_181, %c0_182, %c0_183] : memref<2x2x32xf32, #tpu.memory_space<vmem>>, vector<1x2x32xf32>
    %265 = vector.shape_cast %264 : vector<1x2x32xf32> to vector<2x32xf32>
    %266 = vector.shape_cast %263 : vector<2x32xf32> to vector<1x2x32xf32>
    tpu.vector_store %arg28[%c0_181, %c0_182, %c0_183], %266 {strides = array<i32>} : memref<2x2x32xf32, #tpu.memory_space<vmem>>, vector<1x2x32xf32>,
    %c1_184 = arith.constant 1 : index
    %c0_185 = arith.constant 0 : index
    %c0_186 = arith.constant 0 : index
    %267 = vector.load %arg15[%c1_184, %c0_185, %c0_186] : memref<2x1x32xf32, #tpu.memory_space<vmem>>, vector<1x1x32xf32>
    %268 = vector.shape_cast %267 : vector<1x1x32xf32> to vector<1x32xf32>
    %269 = arith.mulf %263, %263 : vector<2x32xf32>
    %cst_187 = arith.constant dense<0.000000e+00> : vector<2xf32>
    %270 = vector.multi_reduction <add>, %269, %cst_187 [1] : vector<2x32xf32> to vector<2xf32>
    %271 = vector.shape_cast %270 : vector<2xf32> to vector<2x1xf32>
    %cst_188 = arith.constant 3.200000e+01 : f32
    %272 = vector.broadcast %cst_188 : f32 to vector<2x1xf32>
    %273 = arith.divf %271, %272 : vector<2x1xf32>
    %cst_189 = arith.constant 9.99999997E-7 : f32
    %274 = vector.broadcast %cst_189 : f32 to vector<2x1xf32>
    %275 = arith.addf %273, %274 : vector<2x1xf32>
    %276 = math.rsqrt %275 : vector<2x1xf32>
    %277 = vector.broadcast %276 : vector<2x1xf32> to vector<2x32xf32>
    %278 = arith.mulf %263, %277 : vector<2x32xf32>
    %279 = vector.broadcast %268 : vector<1x32xf32> to vector<2x32xf32>
    %280 = arith.mulf %278, %279 : vector<2x32xf32>
    %c1_190 = arith.constant 1 : index
    %c0_191 = arith.constant 0 : index
    %c0_192 = arith.constant 0 : index
    %c0_193 = arith.constant 0 : index
    %281 = vector.load %arg16[%c1_190, %c0_191, %c0_192, %c0_193] : memref<2x4x32x8xf32, #tpu.memory_space<vmem>>, vector<1x4x32x8xf32>
    %282 = vector.shape_cast %281 : vector<1x4x32x8xf32> to vector<4x32x8xf32>
    %c1_194 = arith.constant 1 : index
    %c0_195 = arith.constant 0 : index
    %c0_196 = arith.constant 0 : index
    %c0_197 = arith.constant 0 : index
    %283 = vector.load %arg17[%c1_194, %c0_195, %c0_196, %c0_197] : memref<2x4x32x8xf32, #tpu.memory_space<vmem>>, vector<1x4x32x8xf32>
    %284 = vector.shape_cast %283 : vector<1x4x32x8xf32> to vector<4x32x8xf32>
    %c1_198 = arith.constant 1 : index
    %c0_199 = arith.constant 0 : index
    %c0_200 = arith.constant 0 : index
    %c0_201 = arith.constant 0 : index
    %285 = vector.load %arg18[%c1_198, %c0_199, %c0_200, %c0_201] : memref<2x4x32x8xf32, #tpu.memory_space<vmem>>, vector<1x4x32x8xf32>
    %286 = vector.shape_cast %285 : vector<1x4x32x8xf32> to vector<4x32x8xf32>
    %c1_202 = arith.constant 1 : index
    %c0_203 = arith.constant 0 : index
    %c0_204 = arith.constant 0 : index
    %c0_205 = arith.constant 0 : index
    %287 = vector.load %arg19[%c1_202, %c0_203, %c0_204, %c0_205] : memref<2x4x8x32xf32, #tpu.memory_space<vmem>>, vector<1x4x8x32xf32>
    %288 = vector.shape_cast %287 : vector<1x4x8x32xf32> to vector<4x8x32xf32>
    %289 = vector.shape_cast %280 : vector<2x32xf32> to vector<1x2x32xf32>
    %290 = vector.shape_cast %289 : vector<1x2x32xf32> to vector<1x2x32xf32>
    %291 = vector.broadcast %290 : vector<1x2x32xf32> to vector<4x2x32xf32>
    "tpu.trace_start"() <{level = 10 : i32, message = "hsd,hdk->hsk"}> : () -> ()
    %cst_206 = arith.constant dense<0.000000e+00> : vector<4x2x8xf32>
    %292 = tpu.matmul %291, %282, %cst_206 {dimension_numbers = #tpu.dot_dimension_numbers<[2], [1], [1], [2], [0, 0, 0, 1, 1, 2], [0], [0]>} : vector<4x2x32xf32>, vector<4x32x8xf32>, vector<4x2x8xf32> -> vector<4x2x8xf32>
    %cst_207 = arith.constant dense<0.000000e+00> : vector<4x2x8xf32>
    %293 = tpu.matmul %291, %284, %cst_207 {dimension_numbers = #tpu.dot_dimension_numbers<[2], [1], [1], [2], [0, 0, 0, 1, 1, 2], [0], [0]>} : vector<4x2x32xf32>, vector<4x32x8xf32>, vector<4x2x8xf32> -> vector<4x2x8xf32>
    %cst_208 = arith.constant dense<0.000000e+00> : vector<4x2x8xf32>
    %294 = tpu.matmul %291, %286, %cst_208 {dimension_numbers = #tpu.dot_dimension_numbers<[2], [1], [1], [2], [0, 0, 0, 1, 1, 2], [0], [0]>} : vector<4x2x32xf32>, vector<4x32x8xf32>, vector<4x2x8xf32> -> vector<4x2x8xf32>
    "tpu.trace_stop"() : () -> ()
    "tpu.trace_start"() <{level = 10 : i32, message = "hqd,hkd->hqk"}> : () -> ()
    %cst_209 = arith.constant dense<0.000000e+00> : vector<4x2x2xf32>
    %295 = tpu.matmul %292, %293, %cst_209 {dimension_numbers = #tpu.dot_dimension_numbers<[2], [2], [1], [1], [0, 0, 0, 1, 1, 1], [0], [0]>} : vector<4x2x8xf32>, vector<4x2x8xf32>, vector<4x2x2xf32> -> vector<4x2x2xf32>
    "tpu.trace_stop"() : () -> ()
    %296 = arith.addf %295, %153 : vector<4x2x2xf32>
    %cst_210 = arith.constant dense<0xFF800000> : vector<4x2xf32>
    %297 = vector.multi_reduction <maximumf>, %296, %cst_210 [2] : vector<4x2x2xf32> to vector<4x2xf32>
    %298 = vector.shape_cast %297 : vector<4x2xf32> to vector<4x2x1xf32>
    %299 = vector.broadcast %298 : vector<4x2x1xf32> to vector<4x2x2xf32>
    %300 = arith.subf %296, %299 : vector<4x2x2xf32>
    %301 = math.exp %300 : vector<4x2x2xf32>
    %cst_211 = arith.constant dense<0.000000e+00> : vector<4x2xf32>
    %302 = vector.multi_reduction <add>, %301, %cst_211 [2] : vector<4x2x2xf32> to vector<4x2xf32>
    %303 = vector.shape_cast %302 : vector<4x2xf32> to vector<4x2x1xf32>
    %304 = tpu.reciprocal %303 {approx = true} : vector<4x2x1xf32> -> vector<4x2x1xf32>
    %305 = vector.broadcast %304 : vector<4x2x1xf32> to vector<4x2x2xf32>
    %306 = arith.mulf %301, %305 : vector<4x2x2xf32>
    "tpu.trace_start"() <{level = 10 : i32, message = "hqk,hkd->hqd"}> : () -> ()
    %cst_212 = arith.constant dense<0.000000e+00> : vector<4x2x8xf32>
    %307 = tpu.matmul %306, %294, %cst_212 {dimension_numbers = #tpu.dot_dimension_numbers<[2], [1], [1], [2], [0, 0, 0, 1, 1, 2], [0], [0]>} : vector<4x2x2xf32>, vector<4x2x8xf32>, vector<4x2x8xf32> -> vector<4x2x8xf32>
    "tpu.trace_stop"() : () -> ()
    "tpu.trace_start"() <{level = 10 : i32, message = "hqd,hdm->hqm"}> : () -> ()
    %cst_213 = arith.constant dense<0.000000e+00> : vector<4x2x32xf32>
    %308 = tpu.matmul %307, %288, %cst_213 {dimension_numbers = #tpu.dot_dimension_numbers<[2], [1], [1], [2], [0, 0, 0, 1, 1, 2], [0], [0]>} : vector<4x2x8xf32>, vector<4x8x32xf32>, vector<4x2x32xf32> -> vector<4x2x32xf32>
    "tpu.trace_stop"() : () -> ()
    %cst_214 = arith.constant dense<0.000000e+00> : vector<2x32xf32>
    %309 = vector.multi_reduction <add>, %308, %cst_214 [0] : vector<4x2x32xf32> to vector<2x32xf32>
    %310 = arith.addf %263, %309 : vector<2x32xf32>
    %c1_215 = arith.constant 1 : index
    %c0_216 = arith.constant 0 : index
    %c0_217 = arith.constant 0 : index
    %311 = vector.load %arg20[%c1_215, %c0_216, %c0_217] : memref<2x1x32xf32, #tpu.memory_space<vmem>>, vector<1x1x32xf32>
    %312 = vector.shape_cast %311 : vector<1x1x32xf32> to vector<1x32xf32>
    %313 = arith.mulf %310, %310 : vector<2x32xf32>
    %cst_218 = arith.constant dense<0.000000e+00> : vector<2xf32>
    %314 = vector.multi_reduction <add>, %313, %cst_218 [1] : vector<2x32xf32> to vector<2xf32>
    %315 = vector.shape_cast %314 : vector<2xf32> to vector<2x1xf32>
    %cst_219 = arith.constant 3.200000e+01 : f32
    %316 = vector.broadcast %cst_219 : f32 to vector<2x1xf32>
    %317 = arith.divf %315, %316 : vector<2x1xf32>
    %cst_220 = arith.constant 9.99999997E-7 : f32
    %318 = vector.broadcast %cst_220 : f32 to vector<2x1xf32>
    %319 = arith.addf %317, %318 : vector<2x1xf32>
    %320 = math.rsqrt %319 : vector<2x1xf32>
    %321 = vector.broadcast %320 : vector<2x1xf32> to vector<2x32xf32>
    %322 = arith.mulf %310, %321 : vector<2x32xf32>
    %323 = vector.broadcast %312 : vector<1x32xf32> to vector<2x32xf32>
    %324 = arith.mulf %322, %323 : vector<2x32xf32>
    %c1_221 = arith.constant 1 : index
    %c0_222 = arith.constant 0 : index
    %c0_223 = arith.constant 0 : index
    %c0_224 = arith.constant 0 : index
    %325 = vector.load %arg21[%c1_221, %c0_222, %c0_223, %c0_224] : memref<2x4x32x8xf32, #tpu.memory_space<vmem>>, vector<1x4x32x8xf32>
    %326 = vector.shape_cast %325 : vector<1x4x32x8xf32> to vector<4x32x8xf32>
    %c1_225 = arith.constant 1 : index
    %c0_226 = arith.constant 0 : index
    %c0_227 = arith.constant 0 : index
    %c0_228 = arith.constant 0 : index
    %327 = vector.load %arg22[%c1_225, %c0_226, %c0_227, %c0_228] : memref<2x4x32x8xf32, #tpu.memory_space<vmem>>, vector<1x4x32x8xf32>
    %328 = vector.shape_cast %327 : vector<1x4x32x8xf32> to vector<4x32x8xf32>
    %c1_229 = arith.constant 1 : index
    %c0_230 = arith.constant 0 : index
    %c0_231 = arith.constant 0 : index
    %c0_232 = arith.constant 0 : index
    %329 = vector.load %arg23[%c1_229, %c0_230, %c0_231, %c0_232] : memref<2x4x32x8xf32, #tpu.memory_space<vmem>>, vector<1x4x32x8xf32>
    %330 = vector.shape_cast %329 : vector<1x4x32x8xf32> to vector<4x32x8xf32>
    %c1_233 = arith.constant 1 : index
    %c0_234 = arith.constant 0 : index
    %c0_235 = arith.constant 0 : index
    %c0_236 = arith.constant 0 : index
    %331 = vector.load %arg24[%c1_233, %c0_234, %c0_235, %c0_236] : memref<2x4x8x32xf32, #tpu.memory_space<vmem>>, vector<1x4x8x32xf32>
    %332 = vector.shape_cast %331 : vector<1x4x8x32xf32> to vector<4x8x32xf32>
    %333 = vector.shape_cast %324 : vector<2x32xf32> to vector<1x2x32xf32>
    %334 = vector.shape_cast %333 : vector<1x2x32xf32> to vector<1x2x32xf32>
    %335 = vector.broadcast %334 : vector<1x2x32xf32> to vector<4x2x32xf32>
    "tpu.trace_start"() <{level = 10 : i32, message = "hsd,hdk->hsk"}> : () -> ()
    %cst_237 = arith.constant dense<0.000000e+00> : vector<4x2x8xf32>
    %336 = tpu.matmul %335, %326, %cst_237 {dimension_numbers = #tpu.dot_dimension_numbers<[2], [1], [1], [2], [0, 0, 0, 1, 1, 2], [0], [0]>} : vector<4x2x32xf32>, vector<4x32x8xf32>, vector<4x2x8xf32> -> vector<4x2x8xf32>
    %cst_238 = arith.constant dense<0.000000e+00> : vector<4x16x8xf32>
    %337 = tpu.matmul %151, %328, %cst_238 {dimension_numbers = #tpu.dot_dimension_numbers<[2], [1], [1], [2], [0, 0, 0, 1, 1, 2], [0], [0]>} : vector<4x16x32xf32>, vector<4x32x8xf32>, vector<4x16x8xf32> -> vector<4x16x8xf32>
    %cst_239 = arith.constant dense<0.000000e+00> : vector<4x16x8xf32>
    %338 = tpu.matmul %151, %330, %cst_239 {dimension_numbers = #tpu.dot_dimension_numbers<[2], [1], [1], [2], [0, 0, 0, 1, 1, 2], [0], [0]>} : vector<4x16x32xf32>, vector<4x32x8xf32>, vector<4x16x8xf32> -> vector<4x16x8xf32>
    "tpu.trace_stop"() : () -> ()
    "tpu.trace_start"() <{level = 10 : i32, message = "hqd,hkd->hqk"}> : () -> ()
    %cst_240 = arith.constant dense<0.000000e+00> : vector<4x2x16xf32>
    %339 = tpu.matmul %336, %337, %cst_240 {dimension_numbers = #tpu.dot_dimension_numbers<[2], [2], [1], [1], [0, 0, 0, 1, 1, 1], [0], [0]>} : vector<4x2x8xf32>, vector<4x16x8xf32>, vector<4x2x16xf32> -> vector<4x2x16xf32>
    "tpu.trace_stop"() : () -> ()
    %cst_241 = arith.constant dense<0xFF800000> : vector<4x2xf32>
    %340 = vector.multi_reduction <maximumf>, %339, %cst_241 [2] : vector<4x2x16xf32> to vector<4x2xf32>
    %341 = vector.shape_cast %340 : vector<4x2xf32> to vector<4x2x1xf32>
    %342 = vector.broadcast %341 : vector<4x2x1xf32> to vector<4x2x16xf32>
    %343 = arith.subf %339, %342 : vector<4x2x16xf32>
    %344 = math.exp %343 : vector<4x2x16xf32>
    %cst_242 = arith.constant dense<0.000000e+00> : vector<4x2xf32>
    %345 = vector.multi_reduction <add>, %344, %cst_242 [2] : vector<4x2x16xf32> to vector<4x2xf32>
    %346 = vector.shape_cast %345 : vector<4x2xf32> to vector<4x2x1xf32>
    %347 = tpu.reciprocal %346 {approx = true} : vector<4x2x1xf32> -> vector<4x2x1xf32>
    %348 = vector.broadcast %347 : vector<4x2x1xf32> to vector<4x2x16xf32>
    %349 = arith.mulf %344, %348 : vector<4x2x16xf32>
    "tpu.trace_start"() <{level = 10 : i32, message = "hqk,hkd->hqd"}> : () -> ()
    %cst_243 = arith.constant dense<0.000000e+00> : vector<4x2x8xf32>
    %350 = tpu.matmul %349, %338, %cst_243 {dimension_numbers = #tpu.dot_dimension_numbers<[2], [1], [1], [2], [0, 0, 0, 1, 1, 2], [0], [0]>} : vector<4x2x16xf32>, vector<4x16x8xf32>, vector<4x2x8xf32> -> vector<4x2x8xf32>
    "tpu.trace_stop"() : () -> ()
    "tpu.trace_start"() <{level = 10 : i32, message = "hqd,hdm->hqm"}> : () -> ()
    %cst_244 = arith.constant dense<0.000000e+00> : vector<4x2x32xf32>
    %351 = tpu.matmul %350, %332, %cst_244 {dimension_numbers = #tpu.dot_dimension_numbers<[2], [1], [1], [2], [0, 0, 0, 1, 1, 2], [0], [0]>} : vector<4x2x8xf32>, vector<4x8x32xf32>, vector<4x2x32xf32> -> vector<4x2x32xf32>
    "tpu.trace_stop"() : () -> ()
    %cst_245 = arith.constant dense<0.000000e+00> : vector<2x32xf32>
    %352 = vector.multi_reduction <add>, %351, %cst_245 [0] : vector<4x2x32xf32> to vector<2x32xf32>
    %353 = arith.addf %310, %352 : vector<2x32xf32>
    %c1_246 = arith.constant 1 : index
    %c0_247 = arith.constant 0 : index
    %c0_248 = arith.constant 0 : index
    %354 = vector.load %arg25[%c1_246, %c0_247, %c0_248] : memref<2x1x32xf32, #tpu.memory_space<vmem>>, vector<1x1x32xf32>
    %355 = vector.shape_cast %354 : vector<1x1x32xf32> to vector<1x32xf32>
    %356 = arith.mulf %353, %353 : vector<2x32xf32>
    %cst_249 = arith.constant dense<0.000000e+00> : vector<2xf32>
    %357 = vector.multi_reduction <add>, %356, %cst_249 [1] : vector<2x32xf32> to vector<2xf32>
    %358 = vector.shape_cast %357 : vector<2xf32> to vector<2x1xf32>
    %cst_250 = arith.constant 3.200000e+01 : f32
    %359 = vector.broadcast %cst_250 : f32 to vector<2x1xf32>
    %360 = arith.divf %358, %359 : vector<2x1xf32>
    %cst_251 = arith.constant 9.99999997E-7 : f32
    %361 = vector.broadcast %cst_251 : f32 to vector<2x1xf32>
    %362 = arith.addf %360, %361 : vector<2x1xf32>
    %363 = math.rsqrt %362 : vector<2x1xf32>
    %364 = vector.broadcast %363 : vector<2x1xf32> to vector<2x32xf32>
    %365 = arith.mulf %353, %364 : vector<2x32xf32>
    %366 = vector.broadcast %355 : vector<1x32xf32> to vector<2x32xf32>
    %367 = arith.mulf %365, %366 : vector<2x32xf32>
    %c1_252 = arith.constant 1 : index
    %c0_253 = arith.constant 0 : index
    %c0_254 = arith.constant 0 : index
    %368 = vector.load %arg26[%c1_252, %c0_253, %c0_254] : memref<2x32x64xf32, #tpu.memory_space<vmem>>, vector<1x32x64xf32>
    %369 = vector.shape_cast %368 : vector<1x32x64xf32> to vector<32x64xf32>
    %c1_255 = arith.constant 1 : index
    %c0_256 = arith.constant 0 : index
    %c0_257 = arith.constant 0 : index
    %370 = vector.load %arg27[%c1_255, %c0_256, %c0_257] : memref<2x64x32xf32, #tpu.memory_space<vmem>>, vector<1x64x32xf32>
    %371 = vector.shape_cast %370 : vector<1x64x32xf32> to vector<64x32xf32>
    %cst_258 = arith.constant dense<0.000000e+00> : vector<2x64xf32>
    %372 = tpu.matmul %367, %369, %cst_258 {dimension_numbers = #tpu.dot_dimension_numbers<[1], [0], [0], [1], [0, 0, 1, 1], [], []>} : vector<2x32xf32>, vector<32x64xf32>, vector<2x64xf32> -> vector<2x64xf32>
    %cst_259 = arith.constant 0.000000e+00 : f32
    %373 = vector.broadcast %cst_259 : f32 to vector<2x64xf32>
    %374 = arith.maximumf %372, %373 : vector<2x64xf32>
    %cst_260 = arith.constant dense<0.000000e+00> : vector<2x32xf32>
    %375 = tpu.matmul %374, %371, %cst_260 {dimension_numbers = #tpu.dot_dimension_numbers<[1], [0], [0], [1], [0, 0, 1, 1], [], []>} : vector<2x64xf32>, vector<64x32xf32>, vector<2x32xf32> -> vector<2x32xf32>
    %376 = arith.addf %353, %375 : vector<2x32xf32>
    %c0_261 = arith.constant 0 : index
    %c0_262 = arith.constant 0 : index
    %377 = vector.load %arg13[%c0_261, %c0_262] : memref<1x32xf32, #tpu.memory_space<vmem>>, vector<1x32xf32>
    %378 = arith.mulf %376, %376 : vector<2x32xf32>
    %cst_263 = arith.constant dense<0.000000e+00> : vector<2xf32>
    %379 = vector.multi_reduction <add>, %378, %cst_263 [1] : vector<2x32xf32> to vector<2xf32>
    %380 = vector.shape_cast %379 : vector<2xf32> to vector<2x1xf32>
    %cst_264 = arith.constant 3.200000e+01 : f32
    %381 = vector.broadcast %cst_264 : f32 to vector<2x1xf32>
    %382 = arith.divf %380, %381 : vector<2x1xf32>
    %cst_265 = arith.constant 9.99999997E-7 : f32
    %383 = vector.broadcast %cst_265 : f32 to vector<2x1xf32>
    %384 = arith.addf %382, %383 : vector<2x1xf32>
    %385 = math.rsqrt %384 : vector<2x1xf32>
    %386 = vector.broadcast %385 : vector<2x1xf32> to vector<2x32xf32>
    %387 = arith.mulf %376, %386 : vector<2x32xf32>
    %388 = vector.broadcast %377 : vector<1x32xf32> to vector<2x32xf32>
    %389 = arith.mulf %387, %388 : vector<2x32xf32>
    %c1_266 = arith.constant 1 : index
    %c0_267 = arith.constant 0 : index
    %c0_268 = arith.constant 0 : index
    %390 = vector.load %arg28[%c1_266, %c0_267, %c0_268] : memref<2x2x32xf32, #tpu.memory_space<vmem>>, vector<1x2x32xf32>
    %391 = vector.shape_cast %390 : vector<1x2x32xf32> to vector<2x32xf32>
    %392 = vector.shape_cast %389 : vector<2x32xf32> to vector<1x2x32xf32>
    tpu.vector_store %arg28[%c1_266, %c0_267, %c0_268], %392 {strides = array<i32>} : memref<2x2x32xf32, #tpu.memory_space<vmem>>, vector<1x2x32xf32>,
    %cst_269 = arith.constant 0.176776692 : f32
    %393 = vector.broadcast %cst_269 : f32 to vector<2x32xf32>
    %394 = arith.mulf %389, %393 : vector<2x32xf32>
    %395 = vector.extract_strided_slice %394 {offsets = [0, 0], sizes = [1, 32], strides = [1, 1]} : vector<2x32xf32> to vector<1x32xf32>
    %c0_270 = arith.constant 0 : index
    %c0_271 = arith.constant 0 : index
    %396 = vector.load %arg14[%c0_270, %c0_271] : memref<32x2xf32, #tpu.memory_space<vmem>>, vector<32x2xf32>
    %cst_272 = arith.constant dense<0.000000e+00> : vector<1x2xf32>
    %397 = tpu.matmul %395, %396, %cst_272 {dimension_numbers = #tpu.dot_dimension_numbers<[1], [0], [0], [1], [0, 0, 1, 1], [], []>} : vector<1x32xf32>, vector<32x2xf32>, vector<1x2xf32> -> vector<1x2xf32>
    %c0_273 = arith.constant 0 : index
    %c0_274 = arith.constant 0 : index
    %398 = vector.load %arg29[%c0_273, %c0_274] : memref<1x2xf32, #tpu.memory_space<vmem>>, vector<1x2xf32>
    tpu.vector_store %arg29[%c0_273, %c0_274], %397 {strides = array<i32>} : memref<1x2xf32, #tpu.memory_space<vmem>>, vector<1x2xf32>,
    return
  }
}

</mosaic_0001>

<llo_original>
// kernel: t5sentinel_forward.1
$region0: #{t5sentinel_forward.1}
  #allocation0 [shape = 'u32[]', space=smem, size = 0x4, offset = 0x4, fixed_abs, tag = 'smem constant byte address 0x4 - core index']
  #allocation1 [shape = 'u32[72,128]{1,0:T(1,128)}', space=vmem, size = 0x9000, scoped, tag = 'internal scratch']
  %s0 = inlined_call_operand.smem [shape: u32[30], index: -1, kind: input, shape index: {}]
  %s1 = sld [smem:[%s0]]
  %s2 = scalar_lea.smem %s0, 1
  %s3 = sld [smem:[%s2]]
  %s4 = scalar_lea.smem %s0, 2
  %s5 = sld [smem:[%s4]]
  %s6 = scalar_lea.smem %s0, 3
  %s7 = sld [smem:[%s6]]
  %s8 = scalar_lea.smem %s0, 4
  %s9 = sld [smem:[%s8]]
  %s10 = scalar_lea.smem %s0, 5
  %s11 = sld [smem:[%s10]]
  %s12 = scalar_lea.smem %s0, 6
  %s13 = sld [smem:[%s12]]
  %s14 = scalar_lea.smem %s0, 7
  %s15 = sld [smem:[%s14]]
  %s16 = scalar_lea.smem %s0, 8
  %s17 = sld [smem:[%s16]]
  %s18 = scalar_lea.smem %s0, 9
  %s19 = sld [smem:[%s18]]
  %s20 = scalar_lea.smem %s0, 10
  %s21 = sld [smem:[%s20]]
  %s22 = scalar_lea.smem %s0, 11
  %s23 = sld [smem:[%s22]]
  %s24 = scalar_lea.smem %s0, 12
  %s25 = sld [smem:[%s24]]
  %s26 = scalar_lea.smem %s0, 13
  %s27 = sld [smem:[%s26]]
  %s28 = scalar_lea.smem %s0, 14
  %s29 = sld [smem:[%s28]]
  %s30 = scalar_lea.smem %s0, 15
  %s31 = sld [smem:[%s30]]
  %s32 = scalar_lea.smem %s0, 16
  %s33 = sld [smem:[%s32]]
  %s34 = scalar_lea.smem %s0, 17
  %s35 = sld [smem:[%s34]]
  %s36 = scalar_lea.smem %s0, 18
  %s37 = sld [smem:[%s36]]
  %s38 = scalar_lea.smem %s0, 19
  %s39 = sld [smem:[%s38]]
  %s40 = scalar_lea.smem %s0, 20
  %s41 = sld [smem:[%s40]]
  %s42 = scalar_lea.smem %s0, 21
  %s43 = sld [smem:[%s42]]
  %s44 = scalar_lea.smem %s0, 22
  %s45 = sld [smem:[%s44]]
  %s46 = scalar_lea.smem %s0, 23
  %s47 = sld [smem:[%s46]]
  %s48 = scalar_lea.smem %s0, 24
  %s49 = sld [smem:[%s48]]
  %s50 = scalar_lea.smem %s0, 25
  %s51 = sld [smem:[%s50]]
  %s52 = scalar_lea.smem %s0, 26
  %s53 = sld [smem:[%s52]]
  %s54 = scalar_lea.smem %s0, 27
  %s55 = sld [smem:[%s54]]
  %s56 = scalar_lea.smem %s0, 28
  %s57 = sld [smem:[%s56]]
  %s58 = scalar_lea.smem %s0, 29
  %s59 = sld [smem:[%s58]]
  %60 = xla_tuple %s57, %s59
  %s61 = sld [smem:[#allocation0]]
  $region130: #{t5sentinel_forward.1} parent=0
    _
  %s63 = ssub.s32 1, %s61
  %s64 = scalar_select 0, %s63, %s61
  // Predicated region
  $region2: #{t5sentinel_forward.1} parent=0 // pred_check
    _
  $region3: #{t5sentinel_forward.1} parent=0 // pred_check_branch
    %66 = sbr.rel (0) target = $region5
  $region4: #{t5sentinel_forward.1} parent=0 // pred_region
    _
  $region5: #{t5sentinel_forward.1} parent=0 // pred_fallthru
    _
  // Predicated region
  $region6: #{t5sentinel_forward.1} parent=0 // pred_check
    _
  $region7: #{t5sentinel_forward.1} parent=0 // pred_check_branch
    %68 = sbr.rel (0) target = $region9
  $region8: #{t5sentinel_forward.1} parent=0 // pred_region
    _
  $region9: #{t5sentinel_forward.1} parent=0 // pred_fallthru
    _
  // Predicated region
  $region10: #{t5sentinel_forward.1} parent=0 // pred_check
    _
  $region11: #{t5sentinel_forward.1} parent=0 // pred_check_branch
    %70 = sbr.rel (0) target = $region13
  $region12: #{t5sentinel_forward.1} parent=0 // pred_region
    _
  $region13: #{t5sentinel_forward.1} parent=0 // pred_fallthru
    _
  // Predicated region
  $region14: #{t5sentinel_forward.1} parent=0 // pred_check
    _
  $region15: #{t5sentinel_forward.1} parent=0 // pred_check_branch
    %72 = sbr.rel (0) target = $region17
  $region16: #{t5sentinel_forward.1} parent=0 // pred_region
    _
  $region17: #{t5sentinel_forward.1} parent=0 // pred_fallthru
    _
  // Predicated region
  $region18: #{t5sentinel_forward.1} parent=0 // pred_check
    _
  $region19: #{t5sentinel_forward.1} parent=0 // pred_check_branch
    %74 = sbr.rel (0) target = $region21
  $region20: #{t5sentinel_forward.1} parent=0 // pred_region
    _
  $region21: #{t5sentinel_forward.1} parent=0 // pred_fallthru
    _
  // Predicated region
  $region22: #{t5sentinel_forward.1} parent=0 // pred_check
    _
  $region23: #{t5sentinel_forward.1} parent=0 // pred_check_branch
    %76 = sbr.rel (0) target = $region25
  $region24: #{t5sentinel_forward.1} parent=0 // pred_region
    _
  $region25: #{t5sentinel_forward.1} parent=0 // pred_fallthru
    _
  // Predicated region
  $region26: #{t5sentinel_forward.1} parent=0 // pred_check
    _
  $region27: #{t5sentinel_forward.1} parent=0 // pred_check_branch
    %78 = sbr.rel (0) target = $region29
  $region28: #{t5sentinel_forward.1} parent=0 // pred_region
    _
  $region29: #{t5sentinel_forward.1} parent=0 // pred_fallthru
    _
  // Predicated region
  $region30: #{t5sentinel_forward.1} parent=0 // pred_check
    _
  $region31: #{t5sentinel_forward.1} parent=0 // pred_check_branch
    %80 = sbr.rel (0) target = $region33
  $region32: #{t5sentinel_forward.1} parent=0 // pred_region
    _
  $region33: #{t5sentinel_forward.1} parent=0 // pred_fallthru
    _
  // Predicated region
  $region34: #{t5sentinel_forward.1} parent=0 // pred_check
    _
  $region35: #{t5sentinel_forward.1} parent=0 // pred_check_branch
    %82 = sbr.rel (0) target = $region37
  $region36: #{t5sentinel_forward.1} parent=0 // pred_region
    _
  $region37: #{t5sentinel_forward.1} parent=0 // pred_fallthru
    _
  // Predicated region
  $region38: #{t5sentinel_forward.1} parent=0 // pred_check
    _
  $region39: #{t5sentinel_forward.1} parent=0 // pred_check_branch
    %84 = sbr.rel (0) target = $region41
  $region40: #{t5sentinel_forward.1} parent=0 // pred_region
    _
  $region41: #{t5sentinel_forward.1} parent=0 // pred_fallthru
    _
  // Predicated region
  $region42: #{t5sentinel_forward.1} parent=0 // pred_check
    _
  $region43: #{t5sentinel_forward.1} parent=0 // pred_check_branch
    %86 = sbr.rel (0) target = $region45
  $region44: #{t5sentinel_forward.1} parent=0 // pred_region
    _
  $region45: #{t5sentinel_forward.1} parent=0 // pred_fallthru
    _
  // Predicated region
  $region46: #{t5sentinel_forward.1} parent=0 // pred_check
    _
  $region47: #{t5sentinel_forward.1} parent=0 // pred_check_branch
    %88 = sbr.rel (0) target = $region49
  $region48: #{t5sentinel_forward.1} parent=0 // pred_region
    _
  $region49: #{t5sentinel_forward.1} parent=0 // pred_fallthru
    _
  // Predicated region
  $region50: #{t5sentinel_forward.1} parent=0 // pred_check
    _
  $region51: #{t5sentinel_forward.1} parent=0 // pred_check_branch
    %90 = sbr.rel (0) target = $region53
  $region52: #{t5sentinel_forward.1} parent=0 // pred_region
    _
  $region53: #{t5sentinel_forward.1} parent=0 // pred_fallthru
    _
  // Predicated region
  $region54: #{t5sentinel_forward.1} parent=0 // pred_check
    _
  $region55: #{t5sentinel_forward.1} parent=0 // pred_check_branch
    %92 = sbr.rel (0) target = $region57
  $region56: #{t5sentinel_forward.1} parent=0 // pred_region
    _
  $region57: #{t5sentinel_forward.1} parent=0 // pred_fallthru
    _
  // Predicated region
  $region58: #{t5sentinel_forward.1} parent=0 // pred_check
    _
  $region59: #{t5sentinel_forward.1} parent=0 // pred_check_branch
    %94 = sbr.rel (0) target = $region61
  $region60: #{t5sentinel_forward.1} parent=0 // pred_region
    _
  $region61: #{t5sentinel_forward.1} parent=0 // pred_fallthru
    _
  // Predicated region
  $region62: #{t5sentinel_forward.1} parent=0 // pred_check
    _
  $region63: #{t5sentinel_forward.1} parent=0 // pred_check_branch
    %96 = sbr.rel (0) target = $region65
  $region64: #{t5sentinel_forward.1} parent=0 // pred_region
    _
  $region65: #{t5sentinel_forward.1} parent=0 // pred_fallthru
    _
  // Predicated region
  $region66: #{t5sentinel_forward.1} parent=0 // pred_check
    _
  $region67: #{t5sentinel_forward.1} parent=0 // pred_check_branch
    %98 = sbr.rel (0) target = $region69
  $region68: #{t5sentinel_forward.1} parent=0 // pred_region
    _
  $region69: #{t5sentinel_forward.1} parent=0 // pred_fallthru
    _
  // Predicated region
  $region70: #{t5sentinel_forward.1} parent=0 // pred_check
    _
  $region71: #{t5sentinel_forward.1} parent=0 // pred_check_branch
    %100 = sbr.rel (0) target = $region73
  $region72: #{t5sentinel_forward.1} parent=0 // pred_region
    _
  $region73: #{t5sentinel_forward.1} parent=0 // pred_fallthru
    _
  // Predicated region
  $region74: #{t5sentinel_forward.1} parent=0 // pred_check
    _
  $region75: #{t5sentinel_forward.1} parent=0 // pred_check_branch
    %102 = sbr.rel (0) target = $region77
  $region76: #{t5sentinel_forward.1} parent=0 // pred_region
    _
  $region77: #{t5sentinel_forward.1} parent=0 // pred_fallthru
    _
  // Predicated region
  $region78: #{t5sentinel_forward.1} parent=0 // pred_check
    _
  $region79: #{t5sentinel_forward.1} parent=0 // pred_check_branch
    %104 = sbr.rel (0) target = $region81
  $region80: #{t5sentinel_forward.1} parent=0 // pred_region
    _
  $region81: #{t5sentinel_forward.1} parent=0 // pred_fallthru
    _
  // Predicated region
  $region82: #{t5sentinel_forward.1} parent=0 // pred_check
    _
  $region83: #{t5sentinel_forward.1} parent=0 // pred_check_branch
    %106 = sbr.rel (0) target = $region85
  $region84: #{t5sentinel_forward.1} parent=0 // pred_region
    _
  $region85: #{t5sentinel_forward.1} parent=0 // pred_fallthru
    _
  // Predicated region
  $region86: #{t5sentinel_forward.1} parent=0 // pred_check
    _
  $region87: #{t5sentinel_forward.1} parent=0 // pred_check_branch
    %108 = sbr.rel (0) target = $region89
  $region88: #{t5sentinel_forward.1} parent=0 // pred_region
    _
  $region89: #{t5sentinel_forward.1} parent=0 // pred_fallthru
    _
  // Predicated region
  $region90: #{t5sentinel_forward.1} parent=0 // pred_check
    _
  $region91: #{t5sentinel_forward.1} parent=0 // pred_check_branch
    %110 = sbr.rel (0) target = $region93
  $region92: #{t5sentinel_forward.1} parent=0 // pred_region
    _
  $region93: #{t5sentinel_forward.1} parent=0 // pred_fallthru
    _
  // Predicated region
  $region94: #{t5sentinel_forward.1} parent=0 // pred_check
    _
  $region95: #{t5sentinel_forward.1} parent=0 // pred_check_branch
    %112 = sbr.rel (0) target = $region97
  $region96: #{t5sentinel_forward.1} parent=0 // pred_region
    _
  $region97: #{t5sentinel_forward.1} parent=0 // pred_fallthru
    _
  // Predicated region
  $region98: #{t5sentinel_forward.1} parent=0 // pred_check
    _
  $region99: #{t5sentinel_forward.1} parent=0 // pred_check_branch
    %114 = sbr.rel (0) target = $region101
  $region100: #{t5sentinel_forward.1} parent=0 // pred_region
    _
  $region101: #{t5sentinel_forward.1} parent=0 // pred_fallthru
    _
  // Predicated region
  $region102: #{t5sentinel_forward.1} parent=0 // pred_check
    _
  $region103: #{t5sentinel_forward.1} parent=0 // pred_check_branch
    %116 = sbr.rel (0) target = $region105
  $region104: #{t5sentinel_forward.1} parent=0 // pred_region
    _
  $region105: #{t5sentinel_forward.1} parent=0 // pred_fallthru
    _
  // Predicated region
  $region106: #{t5sentinel_forward.1} parent=0 // pred_check
    _
  $region107: #{t5sentinel_forward.1} parent=0 // pred_check_branch
    %118 = sbr.rel (0) target = $region109
  $region108: #{t5sentinel_forward.1} parent=0 // pred_region
    _
  $region109: #{t5sentinel_forward.1} parent=0 // pred_fallthru
    _
  // Predicated region
  $region110: #{t5sentinel_forward.1} parent=0 // pred_check
    _
  $region111: #{t5sentinel_forward.1} parent=0 // pred_check_branch
    %120 = sbr.rel (0) target = $region113
  $region112: #{t5sentinel_forward.1} parent=0 // pred_region
    _
  $region113: #{t5sentinel_forward.1} parent=0 // pred_fallthru
    _
  %v121 = vld [vmem:[%s1] sm:$0xff]
  %v122 = vld [vmem:[%s1 + $0x8] sm:$0xff]
  %v123 = vld [vmem:[%s3] sm:$0xff]
  %v124 = vld [vmem:[%s3 + $0x8] sm:$0xff]
  %v125 = vld [vmem:[%s3 + $0x10] sm:$0xff]
  %v126 = vld [vmem:[%s3 + $0x18] sm:$0xff]
  %v127 = vld [vmem:[%s3 + $0x20] sm:$0xff]
  %v128 = vld [vmem:[%s3 + $0x28] sm:$0xff]
  %v129 = vld [vmem:[%s3 + $0x30] sm:$0xff]
  %v130 = vld [vmem:[%s3 + $0x38] sm:$0xff]
  %v131 = vld [vmem:[%s7] sm:$0x1]
  %v132 = vmul.f32 %v121, %v121
  %v133 = vmul.f32 %v122, %v122
  %vm134 = vcmask 261120
  %v135 = vsel %vm134, %v132, 0.0
  %136 = vadd.xlane.f32.xlu0 %v135
  %v137 = vpop.xlane.xlu0 %136
  %v138 = vsel %vm134, %v133, 0.0
  %139 = vadd.xlane.f32.xlu0 %v138
  %v140 = vpop.xlane.xlu0 %139
  %v141 = vrcp.pop 32.0
  %v142 = vmul.f32 32.0, %v141
  %v143 = vsub.f32 1.0, %v142
  %v144 = vmul.f32 %v141, %v143
  %v145 = vadd.f32 %v141, %v144
  %vm146 = vweird.f32 %v141
  %v147 = vsel %vm146, %v141, %v145
  %v148 = vmul.f32 %v137, %v147
  %v149 = vmul.f32 %v140, %v147
  %v150 = vadd.f32 %v148, 1e-06
  %v151 = vadd.f32 %v149, 1e-06
  %v152 = vrsqrt.pop %v150
  %v153 = vmul.f32 %v152, %v150
  %v154 = vmul.f32 %v153, %v152
  %v155 = vmul.f32 0.5, %v154
  %v156 = vsub.f32 1.5, %v155
  %v157 = vmul.f32 %v152, %v156
  %vm158 = vweird.f32 %v150
  %vm159 = vweird.f32 %v152
  %vm160 = vmor %vm158, %vm159
  %v161 = vsel %vm160, %v152, %v157
  %v162 = vrsqrt.pop %v151
  %v163 = vmul.f32 %v162, %v151
  %v164 = vmul.f32 %v163, %v162
  %v165 = vmul.f32 0.5, %v164
  %v166 = vsub.f32 1.5, %v165
  %v167 = vmul.f32 %v162, %v166
  %vm168 = vweird.f32 %v151
  %vm169 = vweird.f32 %v162
  %vm170 = vmor %vm168, %vm169
  %v171 = vsel %vm170, %v162, %v167
  %v172 = vmul.f32 %v121, %v161
  %v173 = vmul.f32 %v122, %v171
  %v175 = vperm.slane %v131, 0
  %v177 = vmul.f32 %v172, %v175
  %v178 = vmul.f32 %v173, %v175
  %v179 = vld [vmem:[%s9] sm:$0xff]
  %v180 = vld [vmem:[%s9 + $0x8] sm:$0xff]
  %v181 = vld [vmem:[%s9 + $0x10] sm:$0xff]
  %v182 = vld [vmem:[%s9 + $0x18] sm:$0xff]
  %v183 = vld [vmem:[%s9 + $0x20] sm:$0xff]
  %v184 = vld [vmem:[%s9 + $0x28] sm:$0xff]
  %v185 = vld [vmem:[%s9 + $0x30] sm:$0xff]
  %v186 = vld [vmem:[%s9 + $0x38] sm:$0xff]
  %v187 = vld [vmem:[%s9 + $0x40] sm:$0xff]
  %v188 = vld [vmem:[%s9 + $0x48] sm:$0xff]
  %v189 = vld [vmem:[%s9 + $0x50] sm:$0xff]
  %v190 = vld [vmem:[%s9 + $0x58] sm:$0xff]
  %v191 = vld [vmem:[%s9 + $0x60] sm:$0xff]
  %v192 = vld [vmem:[%s9 + $0x68] sm:$0xff]
  %v193 = vld [vmem:[%s9 + $0x70] sm:$0xff]
  %v194 = vld [vmem:[%s9 + $0x78] sm:$0xff]
  %v195 = vld [vmem:[%s11] sm:$0xff]
  %v196 = vld [vmem:[%s11 + $0x8] sm:$0xff]
  %v197 = vld [vmem:[%s11 + $0x10] sm:$0xff]
  %v198 = vld [vmem:[%s11 + $0x18] sm:$0xff]
  %v199 = vld [vmem:[%s11 + $0x20] sm:$0xff]
  %v200 = vld [vmem:[%s11 + $0x28] sm:$0xff]
  %v201 = vld [vmem:[%s11 + $0x30] sm:$0xff]
  %v202 = vld [vmem:[%s11 + $0x38] sm:$0xff]
  %v203 = vld [vmem:[%s11 + $0x40] sm:$0xff]
  %v204 = vld [vmem:[%s11 + $0x48] sm:$0xff]
  %v205 = vld [vmem:[%s11 + $0x50] sm:$0xff]
  %v206 = vld [vmem:[%s11 + $0x58] sm:$0xff]
  %v207 = vld [vmem:[%s11 + $0x60] sm:$0xff]
  %v208 = vld [vmem:[%s11 + $0x68] sm:$0xff]
  %v209 = vld [vmem:[%s11 + $0x70] sm:$0xff]
  %v210 = vld [vmem:[%s11 + $0x78] sm:$0xff]
  %v211 = vld [vmem:[%s13] sm:$0xff]
  %v212 = vld [vmem:[%s13 + $0x8] sm:$0xff]
  %v213 = vld [vmem:[%s13 + $0x10] sm:$0xff]
  %v214 = vld [vmem:[%s13 + $0x18] sm:$0xff]
  %v215 = vld [vmem:[%s13 + $0x20] sm:$0xff]
  %v216 = vld [vmem:[%s13 + $0x28] sm:$0xff]
  %v217 = vld [vmem:[%s13 + $0x30] sm:$0xff]
  %v218 = vld [vmem:[%s13 + $0x38] sm:$0xff]
  %v219 = vld [vmem:[%s13 + $0x40] sm:$0xff]
  %v220 = vld [vmem:[%s13 + $0x48] sm:$0xff]
  %v221 = vld [vmem:[%s13 + $0x50] sm:$0xff]
  %v222 = vld [vmem:[%s13 + $0x58] sm:$0xff]
  %v223 = vld [vmem:[%s13 + $0x60] sm:$0xff]
  %v224 = vld [vmem:[%s13 + $0x68] sm:$0xff]
  %v225 = vld [vmem:[%s13 + $0x70] sm:$0xff]
  %v226 = vld [vmem:[%s13 + $0x78] sm:$0xff]
  %v227 = vld [vmem:[%s15] sm:$0xff]
  %v228 = vld [vmem:[%s15 + $0x8] sm:$0xff]
  %v229 = vld [vmem:[%s15 + $0x10] sm:$0xff]
  %v230 = vld [vmem:[%s15 + $0x18] sm:$0xff]
  %v232 = vsel %vm134, %v177, 0
  %v235 = vsel %vm134, %v178, 0
  %237 = vmatpush.msra.mxu0 0.0
  %238 = vmatpush.msra.mxu0 0.0
  %239 = vmatpush.msra.mxu0 0.0
  %240 = vmatpush.msra.mxu0 0.0
  %241 = vmatpush.msra.mxu0 0.0
  %242 = vmatpush.msra.mxu0 0.0
  %243 = vmatpush.msra.mxu0 0.0
  %244 = vmatpush.msra.mxu0 0.0
  %245 = vmatpush.msra.mxu0 0.0
  %246 = vmatpush.msra.mxu0 0.0
  %247 = vmatpush.msra.mxu0 0.0
  %248 = vmatpush.msra.mxu0 0.0
  %249 = vmatpush.msra.mxu0 %v182
  %250 = vmatpush.msra.mxu0 %v181
  %251 = vmatpush.msra.mxu0 %v180
  %252 = vmatpush.msra.mxu0 %v179
  %253 = vmatmul.f32.gmra.mxu0 %v232
  %v254 = vpop.f32.mrf.mxu0
  %v255 = vadd.f32 0.0, %v254
  %256 = vmatmul.f32.gmra.mxu0 %v235
  %v257 = vpop.f32.mrf.mxu0
  %v258 = vadd.f32 0.0, %v257
  %259 = vdwg.mxu0
  %260 = vmatpush.msra.mxu0 0.0
  %261 = vmatpush.msra.mxu0 0.0
  %262 = vmatpush.msra.mxu0 0.0
  %263 = vmatpush.msra.mxu0 0.0
  %264 = vmatpush.msra.mxu0 0.0
  %265 = vmatpush.msra.mxu0 0.0
  %266 = vmatpush.msra.mxu0 0.0
  %267 = vmatpush.msra.mxu0 0.0
  %268 = vmatpush.msra.mxu0 0.0
  %269 = vmatpush.msra.mxu0 0.0
  %270 = vmatpush.msra.mxu0 0.0
  %271 = vmatpush.msra.mxu0 0.0
  %272 = vmatpush.msra.mxu0 %v186
  %273 = vmatpush.msra.mxu0 %v185
  %274 = vmatpush.msra.mxu0 %v184
  %275 = vmatpush.msra.mxu0 %v183
  %276 = vmatmul.f32.gmra.mxu0 %v232
  %v277 = vpop.f32.mrf.mxu0
  %v278 = vadd.f32 0.0, %v277
  %279 = vmatmul.f32.gmra.mxu0 %v235
  %v280 = vpop.f32.mrf.mxu0
  %v281 = vadd.f32 0.0, %v280
  %282 = vdwg.mxu0
  %283 = vmatpush.msra.mxu0 0.0
  %284 = vmatpush.msra.mxu0 0.0
  %285 = vmatpush.msra.mxu0 0.0
  %286 = vmatpush.msra.mxu0 0.0
  %287 = vmatpush.msra.mxu0 0.0
  %288 = vmatpush.msra.mxu0 0.0
  %289 = vmatpush.msra.mxu0 0.0
  %290 = vmatpush.msra.mxu0 0.0
  %291 = vmatpush.msra.mxu0 0.0
  %292 = vmatpush.msra.mxu0 0.0
  %293 = vmatpush.msra.mxu0 0.0
  %294 = vmatpush.msra.mxu0 0.0
  %295 = vmatpush.msra.mxu0 %v190
  %296 = vmatpush.msra.mxu0 %v189
  %297 = vmatpush.msra.mxu0 %v188
  %298 = vmatpush.msra.mxu0 %v187
  %299 = vmatmul.f32.gmra.mxu0 %v232
  %v300 = vpop.f32.mrf.mxu0
  %v301 = vadd.f32 0.0, %v300
  %302 = vmatmul.f32.gmra.mxu0 %v235
  %v303 = vpop.f32.mrf.mxu0
  %v304 = vadd.f32 0.0, %v303
  %305 = vdwg.mxu0
  %306 = vmatpush.msra.mxu0 0.0
  %307 = vmatpush.msra.mxu0 0.0
  %308 = vmatpush.msra.mxu0 0.0
  %309 = vmatpush.msra.mxu0 0.0
  %310 = vmatpush.msra.mxu0 0.0
  %311 = vmatpush.msra.mxu0 0.0
  %312 = vmatpush.msra.mxu0 0.0
  %313 = vmatpush.msra.mxu0 0.0
  %314 = vmatpush.msra.mxu0 0.0
  %315 = vmatpush.msra.mxu0 0.0
  %316 = vmatpush.msra.mxu0 0.0
  %317 = vmatpush.msra.mxu0 0.0
  %318 = vmatpush.msra.mxu0 %v194
  %319 = vmatpush.msra.mxu0 %v193
  %320 = vmatpush.msra.mxu0 %v192
  %321 = vmatpush.msra.mxu0 %v191
  %322 = vmatmul.f32.gmra.mxu0 %v232
  %v323 = vpop.f32.mrf.mxu0
  %v324 = vadd.f32 0.0, %v323
  %325 = vmatmul.f32.gmra.mxu0 %v235
  %v326 = vpop.f32.mrf.mxu0
  %v327 = vadd.f32 0.0, %v326
  %328 = vdwg.mxu0
  %329 = vmatpush.msra.mxu0 0.0
  %330 = vmatpush.msra.mxu0 0.0
  %331 = vmatpush.msra.mxu0 0.0
  %332 = vmatpush.msra.mxu0 0.0
  %333 = vmatpush.msra.mxu0 0.0
  %334 = vmatpush.msra.mxu0 0.0
  %335 = vmatpush.msra.mxu0 0.0
  %336 = vmatpush.msra.mxu0 0.0
  %337 = vmatpush.msra.mxu0 0.0
  %338 = vmatpush.msra.mxu0 0.0
  %339 = vmatpush.msra.mxu0 0.0
  %340 = vmatpush.msra.mxu0 0.0
  %341 = vmatpush.msra.mxu0 %v198
  %342 = vmatpush.msra.mxu0 %v197
  %343 = vmatpush.msra.mxu0 %v196
  %344 = vmatpush.msra.mxu0 %v195
  %345 = vmatmul.f32.gmra.mxu0 %v232
  %v346 = vpop.f32.mrf.mxu0
  %v347 = vadd.f32 0.0, %v346
  %348 = vmatmul.f32.gmra.mxu0 %v235
  %v349 = vpop.f32.mrf.mxu0
  %v350 = vadd.f32 0.0, %v349
  %351 = vdwg.mxu0
  %352 = vmatpush.msra.mxu0 0.0
  %353 = vmatpush.msra.mxu0 0.0
  %354 = vmatpush.msra.mxu0 0.0
  %355 = vmatpush.msra.mxu0 0.0
  %356 = vmatpush.msra.mxu0 0.0
  %357 = vmatpush.msra.mxu0 0.0
  %358 = vmatpush.msra.mxu0 0.0
  %359 = vmatpush.msra.mxu0 0.0
  %360 = vmatpush.msra.mxu0 0.0
  %361 = vmatpush.msra.mxu0 0.0
  %362 = vmatpush.msra.mxu0 0.0
  %363 = vmatpush.msra.mxu0 0.0
  %364 = vmatpush.msra.mxu0 %v202
  %365 = vmatpush.msra.mxu0 %v201
  %366 = vmatpush.msra.mxu0 %v200
  %367 = vmatpush.msra.mxu0 %v199
  %368 = vmatmul.f32.gmra.mxu0 %v232
  %v369 = vpop.f32.mrf.mxu0
  %v370 = vadd.f32 0.0, %v369
  %371 = vmatmul.f32.gmra.mxu0 %v235
  %v372 = vpop.f32.mrf.mxu0
  %v373 = vadd.f32 0.0, %v372
  %374 = vdwg.mxu0
  %375 = vmatpush.msra.mxu0 0.0
  %376 = vmatpush.msra.mxu0 0.0
  %377 = vmatpush.msra.mxu0 0.0
  %378 = vmatpush.msra.mxu0 0.0
  %379 = vmatpush.msra.mxu0 0.0
  %380 = vmatpush.msra.mxu0 0.0
  %381 = vmatpush.msra.mxu0 0.0
  %382 = vmatpush.msra.mxu0 0.0
  %383 = vmatpush.msra.mxu0 0.0
  %384 = vmatpush.msra.mxu0 0.0
  %385 = vmatpush.msra.mxu0 0.0
  %386 = vmatpush.msra.mxu0 0.0
  %387 = vmatpush.msra.mxu0 %v206
  %388 = vmatpush.msra.mxu0 %v205
  %389 = vmatpush.msra.mxu0 %v204
  %390 = vmatpush.msra.mxu0 %v203
  %391 = vmatmul.f32.gmra.mxu0 %v232
  %v392 = vpop.f32.mrf.mxu0
  %v393 = vadd.f32 0.0, %v392
  %394 = vmatmul.f32.gmra.mxu0 %v235
  %v395 = vpop.f32.mrf.mxu0
  %v396 = vadd.f32 0.0, %v395
  %397 = vdwg.mxu0
  %398 = vmatpush.msra.mxu0 0.0
  %399 = vmatpush.msra.mxu0 0.0
  %400 = vmatpush.msra.mxu0 0.0
  %401 = vmatpush.msra.mxu0 0.0
  %402 = vmatpush.msra.mxu0 0.0
  %403 = vmatpush.msra.mxu0 0.0
  %404 = vmatpush.msra.mxu0 0.0
  %405 = vmatpush.msra.mxu0 0.0
  %406 = vmatpush.msra.mxu0 0.0
  %407 = vmatpush.msra.mxu0 0.0
  %408 = vmatpush.msra.mxu0 0.0
  %409 = vmatpush.msra.mxu0 0.0
  %410 = vmatpush.msra.mxu0 %v210
  %411 = vmatpush.msra.mxu0 %v209
  %412 = vmatpush.msra.mxu0 %v208
  %413 = vmatpush.msra.mxu0 %v207
  %414 = vmatmul.f32.gmra.mxu0 %v232
  %v415 = vpop.f32.mrf.mxu0
  %v416 = vadd.f32 0.0, %v415
  %417 = vmatmul.f32.gmra.mxu0 %v235
  %v418 = vpop.f32.mrf.mxu0
  %v419 = vadd.f32 0.0, %v418
  %420 = vdwg.mxu0
  %421 = vmatpush.msra.mxu0 0.0
  %422 = vmatpush.msra.mxu0 0.0
  %423 = vmatpush.msra.mxu0 0.0
  %424 = vmatpush.msra.mxu0 0.0
  %425 = vmatpush.msra.mxu0 0.0
  %426 = vmatpush.msra.mxu0 0.0
  %427 = vmatpush.msra.mxu0 0.0
  %428 = vmatpush.msra.mxu0 0.0
  %429 = vmatpush.msra.mxu0 0.0
  %430 = vmatpush.msra.mxu0 0.0
  %431 = vmatpush.msra.mxu0 0.0
  %432 = vmatpush.msra.mxu0 0.0
  %433 = vmatpush.msra.mxu0 %v214
  %434 = vmatpush.msra.mxu0 %v213
  %435 = vmatpush.msra.mxu0 %v212
  %436 = vmatpush.msra.mxu0 %v211
  %437 = vmatmul.f32.gmra.mxu0 %v232
  %v438 = vpop.f32.mrf.mxu0
  %v439 = vadd.f32 0.0, %v438
  %440 = vmatmul.f32.gmra.mxu0 %v235
  %v441 = vpop.f32.mrf.mxu0
  %v442 = vadd.f32 0.0, %v441
  %443 = vdwg.mxu0
  %444 = vmatpush.msra.mxu0 0.0
  %445 = vmatpush.msra.mxu0 0.0
  %446 = vmatpush.msra.mxu0 0.0
  %447 = vmatpush.msra.mxu0 0.0
  %448 = vmatpush.msra.mxu0 0.0
  %449 = vmatpush.msra.mxu0 0.0
  %450 = vmatpush.msra.mxu0 0.0
  %451 = vmatpush.msra.mxu0 0.0
  %452 = vmatpush.msra.mxu0 0.0
  %453 = vmatpush.msra.mxu0 0.0
  %454 = vmatpush.msra.mxu0 0.0
  %455 = vmatpush.msra.mxu0 0.0
  %456 = vmatpush.msra.mxu0 %v218
  %457 = vmatpush.msra.mxu0 %v217
  %458 = vmatpush.msra.mxu0 %v216
  %459 = vmatpush.msra.mxu0 %v215
  %460 = vmatmul.f32.gmra.mxu0 %v232
  %v461 = vpop.f32.mrf.mxu0
  %v462 = vadd.f32 0.0, %v461
  %463 = vmatmul.f32.gmra.mxu0 %v235
  %v464 = vpop.f32.mrf.mxu0
  %v465 = vadd.f32 0.0, %v464
  %466 = vdwg.mxu0
  %467 = vmatpush.msra.mxu0 0.0
  %468 = vmatpush.msra.mxu0 0.0
  %469 = vmatpush.msra.mxu0 0.0
  %470 = vmatpush.msra.mxu0 0.0
  %471 = vmatpush.msra.mxu0 0.0
  %472 = vmatpush.msra.mxu0 0.0
  %473 = vmatpush.msra.mxu0 0.0
  %474 = vmatpush.msra.mxu0 0.0
  %475 = vmatpush.msra.mxu0 0.0
  %476 = vmatpush.msra.mxu0 0.0
  %477 = vmatpush.msra.mxu0 0.0
  %478 = vmatpush.msra.mxu0 0.0
  %479 = vmatpush.msra.mxu0 %v222
  %480 = vmatpush.msra.mxu0 %v221
  %481 = vmatpush.msra.mxu0 %v220
  %482 = vmatpush.msra.mxu0 %v219
  %483 = vmatmul.f32.gmra.mxu0 %v232
  %v484 = vpop.f32.mrf.mxu0
  %v485 = vadd.f32 0.0, %v484
  %486 = vmatmul.f32.gmra.mxu0 %v235
  %v487 = vpop.f32.mrf.mxu0
  %v488 = vadd.f32 0.0, %v487
  %489 = vdwg.mxu0
  %490 = vmatpush.msra.mxu0 0.0
  %491 = vmatpush.msra.mxu0 0.0
  %492 = vmatpush.msra.mxu0 0.0
  %493 = vmatpush.msra.mxu0 0.0
  %494 = vmatpush.msra.mxu0 0.0
  %495 = vmatpush.msra.mxu0 0.0
  %496 = vmatpush.msra.mxu0 0.0
  %497 = vmatpush.msra.mxu0 0.0
  %498 = vmatpush.msra.mxu0 0.0
  %499 = vmatpush.msra.mxu0 0.0
  %500 = vmatpush.msra.mxu0 0.0
  %501 = vmatpush.msra.mxu0 0.0
  %502 = vmatpush.msra.mxu0 %v226
  %503 = vmatpush.msra.mxu0 %v225
  %504 = vmatpush.msra.mxu0 %v224
  %505 = vmatpush.msra.mxu0 %v223
  %506 = vmatmul.f32.gmra.mxu0 %v232
  %v507 = vpop.f32.mrf.mxu0
  %v508 = vadd.f32 0.0, %v507
  %509 = vmatmul.f32.gmra.mxu0 %v235
  %v510 = vpop.f32.mrf.mxu0
  %v511 = vadd.f32 0.0, %v510
  %512 = vdwg.mxu0
  %vm513 = vcmask 64512
  %v515 = vsel %vm513, %v255, 0
  %v518 = vsel %vm513, %v258, 0
  %v521 = vsel %vm513, %v347, 0
  %v524 = vsel %vm513, %v350, 0
  %526 = vmatpush.xpose.msra.mxu0 0.0
  %527 = vmatpush.xpose.msra.mxu0 0.0
  %528 = vmatpush.xpose.msra.mxu0 0.0
  %529 = vmatpush.xpose.msra.mxu0 0.0
  %530 = vmatpush.xpose.msra.mxu0 0.0
  %531 = vmatpush.xpose.msra.mxu0 0.0
  %532 = vmatpush.xpose.msra.mxu0 0.0
  %533 = vmatpush.xpose.msra.mxu0 0.0
  %534 = vmatpush.xpose.msra.mxu0 0.0
  %535 = vmatpush.xpose.msra.mxu0 0.0
  %536 = vmatpush.xpose.msra.mxu0 0.0
  %537 = vmatpush.xpose.msra.mxu0 0.0
  %538 = vmatpush.xpose.msra.mxu0 0.0
  %539 = vmatpush.xpose.msra.mxu0 0.0
  %540 = vmatpush.xpose.msra.mxu0 %v524
  %541 = vmatpush.xpose.msra.mxu0 %v521
  %542 = vmatmul.f32.gmra.mxu0 %v515
  %v543 = vpop.f32.mrf.mxu0
  %v544 = vadd.f32 %v123, %v543
  %545 = vmatmul.f32.gmra.mxu0 %v518
  %v546 = vpop.f32.mrf.mxu0
  %v547 = vadd.f32 %v124, %v546
  %548 = vdwg.mxu0
  %v550 = vsel %vm513, %v278, 0
  %v553 = vsel %vm513, %v281, 0
  %v556 = vsel %vm513, %v370, 0
  %v559 = vsel %vm513, %v373, 0
  %561 = vmatpush.xpose.msra.mxu0 0.0
  %562 = vmatpush.xpose.msra.mxu0 0.0
  %563 = vmatpush.xpose.msra.mxu0 0.0
  %564 = vmatpush.xpose.msra.mxu0 0.0
  %565 = vmatpush.xpose.msra.mxu0 0.0
  %566 = vmatpush.xpose.msra.mxu0 0.0
  %567 = vmatpush.xpose.msra.mxu0 0.0
  %568 = vmatpush.xpose.msra.mxu0 0.0
  %569 = vmatpush.xpose.msra.mxu0 0.0
  %570 = vmatpush.xpose.msra.mxu0 0.0
  %571 = vmatpush.xpose.msra.mxu0 0.0
  %572 = vmatpush.xpose.msra.mxu0 0.0
  %573 = vmatpush.xpose.msra.mxu0 0.0
  %574 = vmatpush.xpose.msra.mxu0 0.0
  %575 = vmatpush.xpose.msra.mxu0 %v559
  %576 = vmatpush.xpose.msra.mxu0 %v556
  %577 = vmatmul.f32.gmra.mxu0 %v550
  %v578 = vpop.f32.mrf.mxu0
  %v579 = vadd.f32 %v125, %v578
  %580 = vmatmul.f32.gmra.mxu0 %v553
  %v581 = vpop.f32.mrf.mxu0
  %v582 = vadd.f32 %v126, %v581
  %583 = vdwg.mxu0
  %v585 = vsel %vm513, %v301, 0
  %v588 = vsel %vm513, %v304, 0
  %v591 = vsel %vm513, %v393, 0
  %v594 = vsel %vm513, %v396, 0
  %596 = vmatpush.xpose.msra.mxu0 0.0
  %597 = vmatpush.xpose.msra.mxu0 0.0
  %598 = vmatpush.xpose.msra.mxu0 0.0
  %599 = vmatpush.xpose.msra.mxu0 0.0
  %600 = vmatpush.xpose.msra.mxu0 0.0
  %601 = vmatpush.xpose.msra.mxu0 0.0
  %602 = vmatpush.xpose.msra.mxu0 0.0
  %603 = vmatpush.xpose.msra.mxu0 0.0
  %604 = vmatpush.xpose.msra.mxu0 0.0
  %605 = vmatpush.xpose.msra.mxu0 0.0
  %606 = vmatpush.xpose.msra.mxu0 0.0
  %607 = vmatpush.xpose.msra.mxu0 0.0
  %608 = vmatpush.xpose.msra.mxu0 0.0
  %609 = vmatpush.xpose.msra.mxu0 0.0
  %610 = vmatpush.xpose.msra.mxu0 %v594
  %611 = vmatpush.xpose.msra.mxu0 %v591
  %612 = vmatmul.f32.gmra.mxu0 %v585
  %v613 = vpop.f32.mrf.mxu0
  %v614 = vadd.f32 %v127, %v613
  %615 = vmatmul.f32.gmra.mxu0 %v588
  %v616 = vpop.f32.mrf.mxu0
  %v617 = vadd.f32 %v128, %v616
  %618 = vdwg.mxu0
  %v620 = vsel %vm513, %v324, 0
  %v623 = vsel %vm513, %v327, 0
  %v626 = vsel %vm513, %v416, 0
  %v629 = vsel %vm513, %v419, 0
  %631 = vmatpush.xpose.msra.mxu0 0.0
  %632 = vmatpush.xpose.msra.mxu0 0.0
  %633 = vmatpush.xpose.msra.mxu0 0.0
  %634 = vmatpush.xpose.msra.mxu0 0.0
  %635 = vmatpush.xpose.msra.mxu0 0.0
  %636 = vmatpush.xpose.msra.mxu0 0.0
  %637 = vmatpush.xpose.msra.mxu0 0.0
  %638 = vmatpush.xpose.msra.mxu0 0.0
  %639 = vmatpush.xpose.msra.mxu0 0.0
  %640 = vmatpush.xpose.msra.mxu0 0.0
  %641 = vmatpush.xpose.msra.mxu0 0.0
  %642 = vmatpush.xpose.msra.mxu0 0.0
  %643 = vmatpush.xpose.msra.mxu0 0.0
  %644 = vmatpush.xpose.msra.mxu0 0.0
  %645 = vmatpush.xpose.msra.mxu0 %v629
  %646 = vmatpush.xpose.msra.mxu0 %v626
  %647 = vmatmul.f32.gmra.mxu0 %v620
  %v648 = vpop.f32.mrf.mxu0
  %v649 = vadd.f32 %v129, %v648
  %650 = vmatmul.f32.gmra.mxu0 %v623
  %v651 = vpop.f32.mrf.mxu0
  %v652 = vadd.f32 %v130, %v651
  %653 = vdwg.mxu0
  %vm654 = vcmask 130048
  %v655 = vsel %vm654, %v544, -inf
  %656 = vmax.xlane.f32.xlu0 %v655
  %v657 = vpop.xlane.xlu0 %656
  %v658 = vsel %vm654, %v547, -inf
  %659 = vmax.xlane.f32.xlu0 %v658
  %v660 = vpop.xlane.xlu0 %659
  %v661 = vsel %vm654, %v579, -inf
  %662 = vmax.xlane.f32.xlu0 %v661
  %v663 = vpop.xlane.xlu0 %662
  %v664 = vsel %vm654, %v582, -inf
  %665 = vmax.xlane.f32.xlu0 %v664
  %v666 = vpop.xlane.xlu0 %665
  %v667 = vsel %vm654, %v614, -inf
  %668 = vmax.xlane.f32.xlu0 %v667
  %v669 = vpop.xlane.xlu0 %668
  %v670 = vsel %vm654, %v617, -inf
  %671 = vmax.xlane.f32.xlu0 %v670
  %v672 = vpop.xlane.xlu0 %671
  %v673 = vsel %vm654, %v649, -inf
  %674 = vmax.xlane.f32.xlu0 %v673
  %v675 = vpop.xlane.xlu0 %674
  %v676 = vsel %vm654, %v652, -inf
  %677 = vmax.xlane.f32.xlu0 %v676
  %v678 = vpop.xlane.xlu0 %677
  %v679 = vsub.f32 %v544, %v657
  %v680 = vsub.f32 %v547, %v660
  %v681 = vsub.f32 %v579, %v663
  %v682 = vsub.f32 %v582, %v666
  %v683 = vsub.f32 %v614, %v669
  %v684 = vsub.f32 %v617, %v672
  %v685 = vsub.f32 %v649, %v675
  %v686 = vsub.f32 %v652, %v678
  %v687 = vmul.f32 %v679, 1.442695
  %v688 = vpow.pop %v687
  %v689 = vmul.f32 %v680, 1.442695
  %v690 = vpow.pop %v689
  %v691 = vmul.f32 %v681, 1.442695
  %v692 = vpow.pop %v691
  %v693 = vmul.f32 %v682, 1.442695
  %v694 = vpow.pop %v693
  %v695 = vmul.f32 %v683, 1.442695
  %v696 = vpow.pop %v695
  %v697 = vmul.f32 %v684, 1.442695
  %v698 = vpow.pop %v697
  %v699 = vmul.f32 %v685, 1.442695
  %v700 = vpow.pop %v699
  %v701 = vmul.f32 %v686, 1.442695
  %v702 = vpow.pop %v701
  %v703 = vsel %vm654, %v688, 0.0
  %704 = vadd.xlane.f32.xlu0 %v703
  %v705 = vpop.xlane.xlu0 %704
  %v706 = vsel %vm654, %v690, 0.0
  %707 = vadd.xlane.f32.xlu0 %v706
  %v708 = vpop.xlane.xlu0 %707
  %v709 = vsel %vm654, %v692, 0.0
  %710 = vadd.xlane.f32.xlu0 %v709
  %v711 = vpop.xlane.xlu0 %710
  %v712 = vsel %vm654, %v694, 0.0
  %713 = vadd.xlane.f32.xlu0 %v712
  %v714 = vpop.xlane.xlu0 %713
  %v715 = vsel %vm654, %v696, 0.0
  %716 = vadd.xlane.f32.xlu0 %v715
  %v717 = vpop.xlane.xlu0 %716
  %v718 = vsel %vm654, %v698, 0.0
  %719 = vadd.xlane.f32.xlu0 %v718
  %v720 = vpop.xlane.xlu0 %719
  %v721 = vsel %vm654, %v700, 0.0
  %722 = vadd.xlane.f32.xlu0 %v721
  %v723 = vpop.xlane.xlu0 %722
  %v724 = vsel %vm654, %v702, 0.0
  %725 = vadd.xlane.f32.xlu0 %v724
  %v726 = vpop.xlane.xlu0 %725
  %v727 = vrcp.pop %v705
  %v728 = vrcp.pop %v708
  %v729 = vrcp.pop %v711
  %v730 = vrcp.pop %v714
  %v731 = vrcp.pop %v717
  %v732 = vrcp.pop %v720
  %v733 = vrcp.pop %v723
  %v734 = vrcp.pop %v726
  %v735 = vmul.f32 %v688, %v727
  %v736 = vmul.f32 %v690, %v728
  %v737 = vmul.f32 %v692, %v729
  %v738 = vmul.f32 %v694, %v730
  %v739 = vmul.f32 %v696, %v731
  %v740 = vmul.f32 %v698, %v732
  %v741 = vmul.f32 %v700, %v733
  %v742 = vmul.f32 %v702, %v734
  %v744 = vsel %vm654, %v735, 0
  %v747 = vsel %vm654, %v736, 0
  %749 = vmatpush.msra.mxu0 0.0
  %750 = vmatpush.msra.mxu0 0.0
  %751 = vmatpush.msra.mxu0 0.0
  %752 = vmatpush.msra.mxu0 0.0
  %753 = vmatpush.msra.mxu0 0.0
  %754 = vmatpush.msra.mxu0 0.0
  %755 = vmatpush.msra.mxu0 0.0
  %756 = vmatpush.msra.mxu0 0.0
  %757 = vmatpush.msra.mxu0 0.0
  %758 = vmatpush.msra.mxu0 0.0
  %759 = vmatpush.msra.mxu0 0.0
  %760 = vmatpush.msra.mxu0 0.0
  %761 = vmatpush.msra.mxu0 0.0
  %762 = vmatpush.msra.mxu0 0.0
  %763 = vmatpush.msra.mxu0 %v442
  %764 = vmatpush.msra.mxu0 %v439
  %765 = vmatmul.f32.gmra.mxu0 %v744
  %v766 = vpop.f32.mrf.mxu0
  %v767 = vadd.f32 0.0, %v766
  %768 = vmatmul.f32.gmra.mxu0 %v747
  %v769 = vpop.f32.mrf.mxu0
  %v770 = vadd.f32 0.0, %v769
  %771 = vdwg.mxu0
  %v773 = vsel %vm654, %v737, 0
  %v776 = vsel %vm654, %v738, 0
  %778 = vmatpush.msra.mxu0 0.0
  %779 = vmatpush.msra.mxu0 0.0
  %780 = vmatpush.msra.mxu0 0.0
  %781 = vmatpush.msra.mxu0 0.0
  %782 = vmatpush.msra.mxu0 0.0
  %783 = vmatpush.msra.mxu0 0.0
  %784 = vmatpush.msra.mxu0 0.0
  %785 = vmatpush.msra.mxu0 0.0
  %786 = vmatpush.msra.mxu0 0.0
  %787 = vmatpush.msra.mxu0 0.0
  %788 = vmatpush.msra.mxu0 0.0
  %789 = vmatpush.msra.mxu0 0.0
  %790 = vmatpush.msra.mxu0 0.0
  %791 = vmatpush.msra.mxu0 0.0
  %792 = vmatpush.msra.mxu0 %v465
  %793 = vmatpush.msra.mxu0 %v462
  %794 = vmatmul.f32.gmra.mxu0 %v773
  %v795 = vpop.f32.mrf.mxu0
  %v796 = vadd.f32 0.0, %v795
  %797 = vmatmul.f32.gmra.mxu0 %v776
  %v798 = vpop.f32.mrf.mxu0
  %v799 = vadd.f32 0.0, %v798
  %800 = vdwg.mxu0
  %v802 = vsel %vm654, %v739, 0
  %v805 = vsel %vm654, %v740, 0
  %807 = vmatpush.msra.mxu0 0.0
  %808 = vmatpush.msra.mxu0 0.0
  %809 = vmatpush.msra.mxu0 0.0
  %810 = vmatpush.msra.mxu0 0.0
  %811 = vmatpush.msra.mxu0 0.0
  %812 = vmatpush.msra.mxu0 0.0
  %813 = vmatpush.msra.mxu0 0.0
  %814 = vmatpush.msra.mxu0 0.0
  %815 = vmatpush.msra.mxu0 0.0
  %816 = vmatpush.msra.mxu0 0.0
  %817 = vmatpush.msra.mxu0 0.0
  %818 = vmatpush.msra.mxu0 0.0
  %819 = vmatpush.msra.mxu0 0.0
  %820 = vmatpush.msra.mxu0 0.0
  %821 = vmatpush.msra.mxu0 %v488
  %822 = vmatpush.msra.mxu0 %v485
  %823 = vmatmul.f32.gmra.mxu0 %v802
  %v824 = vpop.f32.mrf.mxu0
  %v825 = vadd.f32 0.0, %v824
  %826 = vmatmul.f32.gmra.mxu0 %v805
  %v827 = vpop.f32.mrf.mxu0
  %v828 = vadd.f32 0.0, %v827
  %829 = vdwg.mxu0
  %v831 = vsel %vm654, %v741, 0
  %v834 = vsel %vm654, %v742, 0
  %836 = vmatpush.msra.mxu0 0.0
  %837 = vmatpush.msra.mxu0 0.0
  %838 = vmatpush.msra.mxu0 0.0
  %839 = vmatpush.msra.mxu0 0.0
  %840 = vmatpush.msra.mxu0 0.0
  %841 = vmatpush.msra.mxu0 0.0
  %842 = vmatpush.msra.mxu0 0.0
  %843 = vmatpush.msra.mxu0 0.0
  %844 = vmatpush.msra.mxu0 0.0
  %845 = vmatpush.msra.mxu0 0.0
  %846 = vmatpush.msra.mxu0 0.0
  %847 = vmatpush.msra.mxu0 0.0
  %848 = vmatpush.msra.mxu0 0.0
  %849 = vmatpush.msra.mxu0 0.0
  %850 = vmatpush.msra.mxu0 %v511
  %851 = vmatpush.msra.mxu0 %v508
  %852 = vmatmul.f32.gmra.mxu0 %v831
  %v853 = vpop.f32.mrf.mxu0
  %v854 = vadd.f32 0.0, %v853
  %855 = vmatmul.f32.gmra.mxu0 %v834
  %v856 = vpop.f32.mrf.mxu0
  %v857 = vadd.f32 0.0, %v856
  %858 = vdwg.mxu0
  %v860 = vsel %vm513, %v767, 0
  %v863 = vsel %vm513, %v770, 0
  %865 = vmatpush.msra.mxu0 0.0
  %866 = vmatpush.msra.mxu0 0.0
  %867 = vmatpush.msra.mxu0 0.0
  %868 = vmatpush.msra.mxu0 0.0
  %869 = vmatpush.msra.mxu0 0.0
  %870 = vmatpush.msra.mxu0 0.0
  %871 = vmatpush.msra.mxu0 0.0
  %872 = vmatpush.msra.mxu0 0.0
  %873 = vmatpush.msra.mxu0 0.0
  %874 = vmatpush.msra.mxu0 0.0
  %875 = vmatpush.msra.mxu0 0.0
  %876 = vmatpush.msra.mxu0 0.0
  %877 = vmatpush.msra.mxu0 0.0
  %878 = vmatpush.msra.mxu0 0.0
  %879 = vmatpush.msra.mxu0 0.0
  %880 = vmatpush.msra.mxu0 %v227
  %881 = vmatmul.f32.gmra.mxu0 %v860
  %v882 = vpop.f32.mrf.mxu0
  %v883 = vadd.f32 0.0, %v882
  %884 = vmatmul.f32.gmra.mxu0 %v863
  %v885 = vpop.f32.mrf.mxu0
  %v886 = vadd.f32 0.0, %v885
  %887 = vdwg.mxu0
  %v889 = vsel %vm513, %v796, 0
  %v892 = vsel %vm513, %v799, 0
  %894 = vmatpush.msra.mxu0 0.0
  %895 = vmatpush.msra.mxu0 0.0
  %896 = vmatpush.msra.mxu0 0.0
  %897 = vmatpush.msra.mxu0 0.0
  %898 = vmatpush.msra.mxu0 0.0
  %899 = vmatpush.msra.mxu0 0.0
  %900 = vmatpush.msra.mxu0 0.0
  %901 = vmatpush.msra.mxu0 0.0
  %902 = vmatpush.msra.mxu0 0.0
  %903 = vmatpush.msra.mxu0 0.0
  %904 = vmatpush.msra.mxu0 0.0
  %905 = vmatpush.msra.mxu0 0.0
  %906 = vmatpush.msra.mxu0 0.0
  %907 = vmatpush.msra.mxu0 0.0
  %908 = vmatpush.msra.mxu0 0.0
  %909 = vmatpush.msra.mxu0 %v228
  %910 = vmatmul.f32.gmra.mxu0 %v889
  %v911 = vpop.f32.mrf.mxu0
  %v912 = vadd.f32 0.0, %v911
  %913 = vmatmul.f32.gmra.mxu0 %v892
  %v914 = vpop.f32.mrf.mxu0
  %v915 = vadd.f32 0.0, %v914
  %916 = vdwg.mxu0
  %v918 = vsel %vm513, %v825, 0
  %v921 = vsel %vm513, %v828, 0
  %923 = vmatpush.msra.mxu0 0.0
  %924 = vmatpush.msra.mxu0 0.0
  %925 = vmatpush.msra.mxu0 0.0
  %926 = vmatpush.msra.mxu0 0.0
  %927 = vmatpush.msra.mxu0 0.0
  %928 = vmatpush.msra.mxu0 0.0
  %929 = vmatpush.msra.mxu0 0.0
  %930 = vmatpush.msra.mxu0 0.0
  %931 = vmatpush.msra.mxu0 0.0
  %932 = vmatpush.msra.mxu0 0.0
  %933 = vmatpush.msra.mxu0 0.0
  %934 = vmatpush.msra.mxu0 0.0
  %935 = vmatpush.msra.mxu0 0.0
  %936 = vmatpush.msra.mxu0 0.0
  %937 = vmatpush.msra.mxu0 0.0
  %938 = vmatpush.msra.mxu0 %v229
  %939 = vmatmul.f32.gmra.mxu0 %v918
  %v940 = vpop.f32.mrf.mxu0
  %v941 = vadd.f32 0.0, %v940
  %942 = vmatmul.f32.gmra.mxu0 %v921
  %v943 = vpop.f32.mrf.mxu0
  %v944 = vadd.f32 0.0, %v943
  %945 = vdwg.mxu0
  %v947 = vsel %vm513, %v854, 0
  %v950 = vsel %vm513, %v857, 0
  %952 = vmatpush.msra.mxu0 0.0
  %953 = vmatpush.msra.mxu0 0.0
  %954 = vmatpush.msra.mxu0 0.0
  %955 = vmatpush.msra.mxu0 0.0
  %956 = vmatpush.msra.mxu0 0.0
  %957 = vmatpush.msra.mxu0 0.0
  %958 = vmatpush.msra.mxu0 0.0
  %959 = vmatpush.msra.mxu0 0.0
  %960 = vmatpush.msra.mxu0 0.0
  %961 = vmatpush.msra.mxu0 0.0
  %962 = vmatpush.msra.mxu0 0.0
  %963 = vmatpush.msra.mxu0 0.0
  %964 = vmatpush.msra.mxu0 0.0
  %965 = vmatpush.msra.mxu0 0.0
  %966 = vmatpush.msra.mxu0 0.0
  %967 = vmatpush.msra.mxu0 %v230
  %968 = vmatmul.f32.gmra.mxu0 %v947
  %v969 = vpop.f32.mrf.mxu0
  %v970 = vadd.f32 0.0, %v969
  %971 = vmatmul.f32.gmra.mxu0 %v950
  %v972 = vpop.f32.mrf.mxu0
  %v973 = vadd.f32 0.0, %v972
  %974 = vdwg.mxu0
  %v975 = vsel %vm134, %v883, 0.0
  %v976 = vsel %vm134, %v912, 0.0
  %v977 = vadd.f32 %v975, %v976
  %v978 = vsel %vm134, %v941, 0.0
  %v979 = vadd.f32 %v977, %v978
  %v980 = vsel %vm134, %v970, 0.0
  %v981 = vadd.f32 %v979, %v980
  %v982 = vsel %vm134, %v886, 0.0
  %v983 = vsel %vm134, %v915, 0.0
  %v984 = vadd.f32 %v982, %v983
  %v985 = vsel %vm134, %v944, 0.0
  %v986 = vadd.f32 %v984, %v985
  %v987 = vsel %vm134, %v973, 0.0
  %v988 = vadd.f32 %v986, %v987
  %v989 = vadd.f32 %v121, %v981
  %v990 = vadd.f32 %v122, %v988
  %v991 = vld [vmem:[%s17] sm:$0x1]
  %v992 = vmul.f32 %v989, %v989
  %v993 = vmul.f32 %v990, %v990
  %v994 = vsel %vm134, %v992, 0.0
  %995 = vadd.xlane.f32.xlu0 %v994
  %v996 = vpop.xlane.xlu0 %995
  %v997 = vsel %vm134, %v993, 0.0
  %998 = vadd.xlane.f32.xlu0 %v997
  %v999 = vpop.xlane.xlu0 %998
  %v1000 = vmul.f32 %v996, %v147
  %v1001 = vmul.f32 %v999, %v147
  %v1002 = vadd.f32 %v1000, 1e-06
  %v1003 = vadd.f32 %v1001, 1e-06
  %v1004 = vrsqrt.pop %v1002
  %v1005 = vmul.f32 %v1004, %v1002
  %v1006 = vmul.f32 %v1005, %v1004
  %v1007 = vmul.f32 0.5, %v1006
  %v1008 = vsub.f32 1.5, %v1007
  %v1009 = vmul.f32 %v1004, %v1008
  %vm1010 = vweird.f32 %v1002
  %vm1011 = vweird.f32 %v1004
  %vm1012 = vmor %vm1010, %vm1011
  %v1013 = vsel %vm1012, %v1004, %v1009
  %v1014 = vrsqrt.pop %v1003
  %v1015 = vmul.f32 %v1014, %v1003
  %v1016 = vmul.f32 %v1015, %v1014
  %v1017 = vmul.f32 0.5, %v1016
  %v1018 = vsub.f32 1.5, %v1017
  %v1019 = vmul.f32 %v1014, %v1018
  %vm1020 = vweird.f32 %v1003
  %vm1021 = vweird.f32 %v1014
  %vm1022 = vmor %vm1020, %vm1021
  %v1023 = vsel %vm1022, %v1014, %v1019
  %v1024 = vmul.f32 %v989, %v1013
  %v1025 = vmul.f32 %v990, %v1023
  %v1027 = vperm.slane %v991, 0
  %v1029 = vmul.f32 %v1024, %v1027
  %v1030 = vmul.f32 %v1025, %v1027
  %v1031 = vld [vmem:[%s19] sm:$0xff]
  %v1032 = vld [vmem:[%s19 + $0x8] sm:$0xff]
  %v1033 = vld [vmem:[%s19 + $0x10] sm:$0xff]
  %v1034 = vld [vmem:[%s19 + $0x18] sm:$0xff]
  %v1035 = vld [vmem:[%s21] sm:$0xff]
  %v1036 = vld [vmem:[%s21 + $0x8] sm:$0xff]
  %v1037 = vld [vmem:[%s21 + $0x10] sm:$0xff]
  %v1038 = vld [vmem:[%s21 + $0x18] sm:$0xff]
  %v1039 = vld [vmem:[%s21 + $0x20] sm:$0xff]
  %v1040 = vld [vmem:[%s21 + $0x28] sm:$0xff]
  %v1041 = vld [vmem:[%s21 + $0x30] sm:$0xff]
  %v1042 = vld [vmem:[%s21 + $0x38] sm:$0xff]
  %v1044 = vsel %vm134, %v1029, 0
  %v1047 = vsel %vm134, %v1030, 0
  %1049 = vmatpush.msra.mxu0 0.0
  %1050 = vmatpush.msra.mxu0 0.0
  %1051 = vmatpush.msra.mxu0 0.0
  %1052 = vmatpush.msra.mxu0 0.0
  %1053 = vmatpush.msra.mxu0 0.0
  %1054 = vmatpush.msra.mxu0 0.0
  %1055 = vmatpush.msra.mxu0 0.0
  %1056 = vmatpush.msra.mxu0 0.0
  %1057 = vmatpush.msra.mxu0 0.0
  %1058 = vmatpush.msra.mxu0 0.0
  %1059 = vmatpush.msra.mxu0 0.0
  %1060 = vmatpush.msra.mxu0 0.0
  %1061 = vmatpush.msra.mxu0 %v1034
  %1062 = vmatpush.msra.mxu0 %v1033
  %1063 = vmatpush.msra.mxu0 %v1032
  %1064 = vmatpush.msra.mxu0 %v1031
  %1065 = vmatmul.f32.gmra.mxu0 %v1044
  %v1066 = vpop.f32.mrf.mxu0
  %v1067 = vadd.f32 0.0, %v1066
  %1068 = vmatmul.f32.gmra.mxu0 %v1047
  %v1069 = vpop.f32.mrf.mxu0
  %v1070 = vadd.f32 0.0, %v1069
  %1071 = vdwg.mxu0
  %v1072 = vmax.f32 %v1067, 0.0
  %v1073 = vmax.f32 %v1070, 0.0
  %vm1074 = vcmask 523264
  %v1076 = vsel %vm1074, %v1072, 0
  %v1079 = vsel %vm1074, %v1073, 0
  %1081 = vmatpush.msra.mxu0 0.0
  %1082 = vmatpush.msra.mxu0 0.0
  %1083 = vmatpush.msra.mxu0 0.0
  %1084 = vmatpush.msra.mxu0 0.0
  %1085 = vmatpush.msra.mxu0 0.0
  %1086 = vmatpush.msra.mxu0 0.0
  %1087 = vmatpush.msra.mxu0 0.0
  %1088 = vmatpush.msra.mxu0 0.0
  %1089 = vmatpush.msra.mxu0 %v1042
  %1090 = vmatpush.msra.mxu0 %v1041
  %1091 = vmatpush.msra.mxu0 %v1040
  %1092 = vmatpush.msra.mxu0 %v1039
  %1093 = vmatpush.msra.mxu0 %v1038
  %1094 = vmatpush.msra.mxu0 %v1037
  %1095 = vmatpush.msra.mxu0 %v1036
  %1096 = vmatpush.msra.mxu0 %v1035
  %1097 = vmatmul.f32.gmra.mxu0 %v1076
  %v1098 = vpop.f32.mrf.mxu0
  %v1099 = vadd.f32 0.0, %v1098
  %1100 = vmatmul.f32.gmra.mxu0 %v1079
  %v1101 = vpop.f32.mrf.mxu0
  %v1102 = vadd.f32 0.0, %v1101
  %1103 = vdwg.mxu0
  %v1104 = vadd.f32 %v989, %v1099
  %v1105 = vadd.f32 %v990, %v1102
  %s1106 = scalar_lea.vmem %s7, 1
  %v1107 = vld [vmem:[%s1106] sm:$0x1]
  %v1108 = vmul.f32 %v1104, %v1104
  %v1109 = vmul.f32 %v1105, %v1105
  %v1110 = vsel %vm134, %v1108, 0.0
  %1111 = vadd.xlane.f32.xlu0 %v1110
  %v1112 = vpop.xlane.xlu0 %1111
  %v1113 = vsel %vm134, %v1109, 0.0
  %1114 = vadd.xlane.f32.xlu0 %v1113
  %v1115 = vpop.xlane.xlu0 %1114
  %v1116 = vmul.f32 %v1112, %v147
  %v1117 = vmul.f32 %v1115, %v147
  %v1118 = vadd.f32 %v1116, 1e-06
  %v1119 = vadd.f32 %v1117, 1e-06
  %v1120 = vrsqrt.pop %v1118
  %v1121 = vmul.f32 %v1120, %v1118
  %v1122 = vmul.f32 %v1121, %v1120
  %v1123 = vmul.f32 0.5, %v1122
  %v1124 = vsub.f32 1.5, %v1123
  %v1125 = vmul.f32 %v1120, %v1124
  %vm1126 = vweird.f32 %v1118
  %vm1127 = vweird.f32 %v1120
  %vm1128 = vmor %vm1126, %vm1127
  %v1129 = vsel %vm1128, %v1120, %v1125
  %v1130 = vrsqrt.pop %v1119
  %v1131 = vmul.f32 %v1130, %v1119
  %v1132 = vmul.f32 %v1131, %v1130
  %v1133 = vmul.f32 0.5, %v1132
  %v1134 = vsub.f32 1.5, %v1133
  %v1135 = vmul.f32 %v1130, %v1134
  %vm1136 = vweird.f32 %v1119
  %vm1137 = vweird.f32 %v1130
  %vm1138 = vmor %vm1136, %vm1137
  %v1139 = vsel %vm1138, %v1130, %v1135
  %v1140 = vmul.f32 %v1104, %v1129
  %v1141 = vmul.f32 %v1105, %v1139
  %v1143 = vperm.slane %v1107, 0
  %v1145 = vmul.f32 %v1140, %v1143
  %v1146 = vmul.f32 %v1141, %v1143
  %s1147 = scalar_lea.vmem %s9, 128
  %v1148 = vld [vmem:[%s1147] sm:$0xff]
  %v1149 = vld [vmem:[%s1147 + $0x8] sm:$0xff]
  %v1150 = vld [vmem:[%s1147 + $0x10] sm:$0xff]
  %v1151 = vld [vmem:[%s1147 + $0x18] sm:$0xff]
  %v1152 = vld [vmem:[%s1147 + $0x20] sm:$0xff]
  %v1153 = vld [vmem:[%s1147 + $0x28] sm:$0xff]
  %v1154 = vld [vmem:[%s1147 + $0x30] sm:$0xff]
  %v1155 = vld [vmem:[%s1147 + $0x38] sm:$0xff]
  %v1156 = vld [vmem:[%s1147 + $0x40] sm:$0xff]
  %v1157 = vld [vmem:[%s1147 + $0x48] sm:$0xff]
  %v1158 = vld [vmem:[%s1147 + $0x50] sm:$0xff]
  %v1159 = vld [vmem:[%s1147 + $0x58] sm:$0xff]
  %v1160 = vld [vmem:[%s1147 + $0x60] sm:$0xff]
  %v1161 = vld [vmem:[%s1147 + $0x68] sm:$0xff]
  %v1162 = vld [vmem:[%s1147 + $0x70] sm:$0xff]
  %v1163 = vld [vmem:[%s1147 + $0x78] sm:$0xff]
  %s1164 = scalar_lea.vmem %s11, 128
  %v1165 = vld [vmem:[%s1164] sm:$0xff]
  %v1166 = vld [vmem:[%s1164 + $0x8] sm:$0xff]
  %v1167 = vld [vmem:[%s1164 + $0x10] sm:$0xff]
  %v1168 = vld [vmem:[%s1164 + $0x18] sm:$0xff]
  %v1169 = vld [vmem:[%s1164 + $0x20] sm:$0xff]
  %v1170 = vld [vmem:[%s1164 + $0x28] sm:$0xff]
  %v1171 = vld [vmem:[%s1164 + $0x30] sm:$0xff]
  %v1172 = vld [vmem:[%s1164 + $0x38] sm:$0xff]
  %v1173 = vld [vmem:[%s1164 + $0x40] sm:$0xff]
  %v1174 = vld [vmem:[%s1164 + $0x48] sm:$0xff]
  %v1175 = vld [vmem:[%s1164 + $0x50] sm:$0xff]
  %v1176 = vld [vmem:[%s1164 + $0x58] sm:$0xff]
  %v1177 = vld [vmem:[%s1164 + $0x60] sm:$0xff]
  %v1178 = vld [vmem:[%s1164 + $0x68] sm:$0xff]
  %v1179 = vld [vmem:[%s1164 + $0x70] sm:$0xff]
  %v1180 = vld [vmem:[%s1164 + $0x78] sm:$0xff]
  %s1181 = scalar_lea.vmem %s13, 128
  %v1182 = vld [vmem:[%s1181] sm:$0xff]
  %v1183 = vld [vmem:[%s1181 + $0x8] sm:$0xff]
  %v1184 = vld [vmem:[%s1181 + $0x10] sm:$0xff]
  %v1185 = vld [vmem:[%s1181 + $0x18] sm:$0xff]
  %v1186 = vld [vmem:[%s1181 + $0x20] sm:$0xff]
  %v1187 = vld [vmem:[%s1181 + $0x28] sm:$0xff]
  %v1188 = vld [vmem:[%s1181 + $0x30] sm:$0xff]
  %v1189 = vld [vmem:[%s1181 + $0x38] sm:$0xff]
  %v1190 = vld [vmem:[%s1181 + $0x40] sm:$0xff]
  %v1191 = vld [vmem:[%s1181 + $0x48] sm:$0xff]
  %v1192 = vld [vmem:[%s1181 + $0x50] sm:$0xff]
  %v1193 = vld [vmem:[%s1181 + $0x58] sm:$0xff]
  %v1194 = vld [vmem:[%s1181 + $0x60] sm:$0xff]
  %v1195 = vld [vmem:[%s1181 + $0x68] sm:$0xff]
  %v1196 = vld [vmem:[%s1181 + $0x70] sm:$0xff]
  %v1197 = vld [vmem:[%s1181 + $0x78] sm:$0xff]
  %s1198 = scalar_lea.vmem %s15, 32
  %v1199 = vld [vmem:[%s1198] sm:$0xff]
  %v1200 = vld [vmem:[%s1198 + $0x8] sm:$0xff]
  %v1201 = vld [vmem:[%s1198 + $0x10] sm:$0xff]
  %v1202 = vld [vmem:[%s1198 + $0x18] sm:$0xff]
  %v1204 = vsel %vm134, %v1145, 0
  %v1207 = vsel %vm134, %v1146, 0
  %1209 = vmatpush.msra.mxu0 0.0
  %1210 = vmatpush.msra.mxu0 0.0
  %1211 = vmatpush.msra.mxu0 0.0
  %1212 = vmatpush.msra.mxu0 0.0
  %1213 = vmatpush.msra.mxu0 0.0
  %1214 = vmatpush.msra.mxu0 0.0
  %1215 = vmatpush.msra.mxu0 0.0
  %1216 = vmatpush.msra.mxu0 0.0
  %1217 = vmatpush.msra.mxu0 0.0
  %1218 = vmatpush.msra.mxu0 0.0
  %1219 = vmatpush.msra.mxu0 0.0
  %1220 = vmatpush.msra.mxu0 0.0
  %1221 = vmatpush.msra.mxu0 %v1151
  %1222 = vmatpush.msra.mxu0 %v1150
  %1223 = vmatpush.msra.mxu0 %v1149
  %1224 = vmatpush.msra.mxu0 %v1148
  %1225 = vmatmul.f32.gmra.mxu0 %v1204
  %v1226 = vpop.f32.mrf.mxu0
  %v1227 = vadd.f32 0.0, %v1226
  %1228 = vmatmul.f32.gmra.mxu0 %v1207
  %v1229 = vpop.f32.mrf.mxu0
  %v1230 = vadd.f32 0.0, %v1229
  %1231 = vdwg.mxu0
  %1232 = vmatpush.msra.mxu0 0.0
  %1233 = vmatpush.msra.mxu0 0.0
  %1234 = vmatpush.msra.mxu0 0.0
  %1235 = vmatpush.msra.mxu0 0.0
  %1236 = vmatpush.msra.mxu0 0.0
  %1237 = vmatpush.msra.mxu0 0.0
  %1238 = vmatpush.msra.mxu0 0.0
  %1239 = vmatpush.msra.mxu0 0.0
  %1240 = vmatpush.msra.mxu0 0.0
  %1241 = vmatpush.msra.mxu0 0.0
  %1242 = vmatpush.msra.mxu0 0.0
  %1243 = vmatpush.msra.mxu0 0.0
  %1244 = vmatpush.msra.mxu0 %v1155
  %1245 = vmatpush.msra.mxu0 %v1154
  %1246 = vmatpush.msra.mxu0 %v1153
  %1247 = vmatpush.msra.mxu0 %v1152
  %1248 = vmatmul.f32.gmra.mxu0 %v1204
  %v1249 = vpop.f32.mrf.mxu0
  %v1250 = vadd.f32 0.0, %v1249
  %1251 = vmatmul.f32.gmra.mxu0 %v1207
  %v1252 = vpop.f32.mrf.mxu0
  %v1253 = vadd.f32 0.0, %v1252
  %1254 = vdwg.mxu0
  %1255 = vmatpush.msra.mxu0 0.0
  %1256 = vmatpush.msra.mxu0 0.0
  %1257 = vmatpush.msra.mxu0 0.0
  %1258 = vmatpush.msra.mxu0 0.0
  %1259 = vmatpush.msra.mxu0 0.0
  %1260 = vmatpush.msra.mxu0 0.0
  %1261 = vmatpush.msra.mxu0 0.0
  %1262 = vmatpush.msra.mxu0 0.0
  %1263 = vmatpush.msra.mxu0 0.0
  %1264 = vmatpush.msra.mxu0 0.0
  %1265 = vmatpush.msra.mxu0 0.0
  %1266 = vmatpush.msra.mxu0 0.0
  %1267 = vmatpush.msra.mxu0 %v1159
  %1268 = vmatpush.msra.mxu0 %v1158
  %1269 = vmatpush.msra.mxu0 %v1157
  %1270 = vmatpush.msra.mxu0 %v1156
  %1271 = vmatmul.f32.gmra.mxu0 %v1204
  %v1272 = vpop.f32.mrf.mxu0
  %v1273 = vadd.f32 0.0, %v1272
  %1274 = vmatmul.f32.gmra.mxu0 %v1207
  %v1275 = vpop.f32.mrf.mxu0
  %v1276 = vadd.f32 0.0, %v1275
  %1277 = vdwg.mxu0
  %1278 = vmatpush.msra.mxu0 0.0
  %1279 = vmatpush.msra.mxu0 0.0
  %1280 = vmatpush.msra.mxu0 0.0
  %1281 = vmatpush.msra.mxu0 0.0
  %1282 = vmatpush.msra.mxu0 0.0
  %1283 = vmatpush.msra.mxu0 0.0
  %1284 = vmatpush.msra.mxu0 0.0
  %1285 = vmatpush.msra.mxu0 0.0
  %1286 = vmatpush.msra.mxu0 0.0
  %1287 = vmatpush.msra.mxu0 0.0
  %1288 = vmatpush.msra.mxu0 0.0
  %1289 = vmatpush.msra.mxu0 0.0
  %1290 = vmatpush.msra.mxu0 %v1163
  %1291 = vmatpush.msra.mxu0 %v1162
  %1292 = vmatpush.msra.mxu0 %v1161
  %1293 = vmatpush.msra.mxu0 %v1160
  %1294 = vmatmul.f32.gmra.mxu0 %v1204
  %v1295 = vpop.f32.mrf.mxu0
  %v1296 = vadd.f32 0.0, %v1295
  %1297 = vmatmul.f32.gmra.mxu0 %v1207
  %v1298 = vpop.f32.mrf.mxu0
  %v1299 = vadd.f32 0.0, %v1298
  %1300 = vdwg.mxu0
  %1301 = vmatpush.msra.mxu0 0.0
  %1302 = vmatpush.msra.mxu0 0.0
  %1303 = vmatpush.msra.mxu0 0.0
  %1304 = vmatpush.msra.mxu0 0.0
  %1305 = vmatpush.msra.mxu0 0.0
  %1306 = vmatpush.msra.mxu0 0.0
  %1307 = vmatpush.msra.mxu0 0.0
  %1308 = vmatpush.msra.mxu0 0.0
  %1309 = vmatpush.msra.mxu0 0.0
  %1310 = vmatpush.msra.mxu0 0.0
  %1311 = vmatpush.msra.mxu0 0.0
  %1312 = vmatpush.msra.mxu0 0.0
  %1313 = vmatpush.msra.mxu0 %v1168
  %1314 = vmatpush.msra.mxu0 %v1167
  %1315 = vmatpush.msra.mxu0 %v1166
  %1316 = vmatpush.msra.mxu0 %v1165
  %1317 = vmatmul.f32.gmra.mxu0 %v1204
  %v1318 = vpop.f32.mrf.mxu0
  %v1319 = vadd.f32 0.0, %v1318
  %1320 = vmatmul.f32.gmra.mxu0 %v1207
  %v1321 = vpop.f32.mrf.mxu0
  %v1322 = vadd.f32 0.0, %v1321
  %1323 = vdwg.mxu0
  %1324 = vmatpush.msra.mxu0 0.0
  %1325 = vmatpush.msra.mxu0 0.0
  %1326 = vmatpush.msra.mxu0 0.0
  %1327 = vmatpush.msra.mxu0 0.0
  %1328 = vmatpush.msra.mxu0 0.0
  %1329 = vmatpush.msra.mxu0 0.0
  %1330 = vmatpush.msra.mxu0 0.0
  %1331 = vmatpush.msra.mxu0 0.0
  %1332 = vmatpush.msra.mxu0 0.0
  %1333 = vmatpush.msra.mxu0 0.0
  %1334 = vmatpush.msra.mxu0 0.0
  %1335 = vmatpush.msra.mxu0 0.0
  %1336 = vmatpush.msra.mxu0 %v1172
  %1337 = vmatpush.msra.mxu0 %v1171
  %1338 = vmatpush.msra.mxu0 %v1170
  %1339 = vmatpush.msra.mxu0 %v1169
  %1340 = vmatmul.f32.gmra.mxu0 %v1204
  %v1341 = vpop.f32.mrf.mxu0
  %v1342 = vadd.f32 0.0, %v1341
  %1343 = vmatmul.f32.gmra.mxu0 %v1207
  %v1344 = vpop.f32.mrf.mxu0
  %v1345 = vadd.f32 0.0, %v1344
  %1346 = vdwg.mxu0
  %1347 = vmatpush.msra.mxu0 0.0
  %1348 = vmatpush.msra.mxu0 0.0
  %1349 = vmatpush.msra.mxu0 0.0
  %1350 = vmatpush.msra.mxu0 0.0
  %1351 = vmatpush.msra.mxu0 0.0
  %1352 = vmatpush.msra.mxu0 0.0
  %1353 = vmatpush.msra.mxu0 0.0
  %1354 = vmatpush.msra.mxu0 0.0
  %1355 = vmatpush.msra.mxu0 0.0
  %1356 = vmatpush.msra.mxu0 0.0
  %1357 = vmatpush.msra.mxu0 0.0
  %1358 = vmatpush.msra.mxu0 0.0
  %1359 = vmatpush.msra.mxu0 %v1176
  %1360 = vmatpush.msra.mxu0 %v1175
  %1361 = vmatpush.msra.mxu0 %v1174
  %1362 = vmatpush.msra.mxu0 %v1173
  %1363 = vmatmul.f32.gmra.mxu0 %v1204
  %v1364 = vpop.f32.mrf.mxu0
  %v1365 = vadd.f32 0.0, %v1364
  %1366 = vmatmul.f32.gmra.mxu0 %v1207
  %v1367 = vpop.f32.mrf.mxu0
  %v1368 = vadd.f32 0.0, %v1367
  %1369 = vdwg.mxu0
  %1370 = vmatpush.msra.mxu0 0.0
  %1371 = vmatpush.msra.mxu0 0.0
  %1372 = vmatpush.msra.mxu0 0.0
  %1373 = vmatpush.msra.mxu0 0.0
  %1374 = vmatpush.msra.mxu0 0.0
  %1375 = vmatpush.msra.mxu0 0.0
  %1376 = vmatpush.msra.mxu0 0.0
  %1377 = vmatpush.msra.mxu0 0.0
  %1378 = vmatpush.msra.mxu0 0.0
  %1379 = vmatpush.msra.mxu0 0.0
  %1380 = vmatpush.msra.mxu0 0.0
  %1381 = vmatpush.msra.mxu0 0.0
  %1382 = vmatpush.msra.mxu0 %v1180
  %1383 = vmatpush.msra.mxu0 %v1179
  %1384 = vmatpush.msra.mxu0 %v1178
  %1385 = vmatpush.msra.mxu0 %v1177
  %1386 = vmatmul.f32.gmra.mxu0 %v1204
  %v1387 = vpop.f32.mrf.mxu0
  %v1388 = vadd.f32 0.0, %v1387
  %1389 = vmatmul.f32.gmra.mxu0 %v1207
  %v1390 = vpop.f32.mrf.mxu0
  %v1391 = vadd.f32 0.0, %v1390
  %1392 = vdwg.mxu0
  %1393 = vmatpush.msra.mxu0 0.0
  %1394 = vmatpush.msra.mxu0 0.0
  %1395 = vmatpush.msra.mxu0 0.0
  %1396 = vmatpush.msra.mxu0 0.0
  %1397 = vmatpush.msra.mxu0 0.0
  %1398 = vmatpush.msra.mxu0 0.0
  %1399 = vmatpush.msra.mxu0 0.0
  %1400 = vmatpush.msra.mxu0 0.0
  %1401 = vmatpush.msra.mxu0 0.0
  %1402 = vmatpush.msra.mxu0 0.0
  %1403 = vmatpush.msra.mxu0 0.0
  %1404 = vmatpush.msra.mxu0 0.0
  %1405 = vmatpush.msra.mxu0 %v1185
  %1406 = vmatpush.msra.mxu0 %v1184
  %1407 = vmatpush.msra.mxu0 %v1183
  %1408 = vmatpush.msra.mxu0 %v1182
  %1409 = vmatmul.f32.gmra.mxu0 %v1204
  %v1410 = vpop.f32.mrf.mxu0
  %v1411 = vadd.f32 0.0, %v1410
  %1412 = vmatmul.f32.gmra.mxu0 %v1207
  %v1413 = vpop.f32.mrf.mxu0
  %v1414 = vadd.f32 0.0, %v1413
  %1415 = vdwg.mxu0
  %1416 = vmatpush.msra.mxu0 0.0
  %1417 = vmatpush.msra.mxu0 0.0
  %1418 = vmatpush.msra.mxu0 0.0
  %1419 = vmatpush.msra.mxu0 0.0
  %1420 = vmatpush.msra.mxu0 0.0
  %1421 = vmatpush.msra.mxu0 0.0
  %1422 = vmatpush.msra.mxu0 0.0
  %1423 = vmatpush.msra.mxu0 0.0
  %1424 = vmatpush.msra.mxu0 0.0
  %1425 = vmatpush.msra.mxu0 0.0
  %1426 = vmatpush.msra.mxu0 0.0
  %1427 = vmatpush.msra.mxu0 0.0
  %1428 = vmatpush.msra.mxu0 %v1189
  %1429 = vmatpush.msra.mxu0 %v1188
  %1430 = vmatpush.msra.mxu0 %v1187
  %1431 = vmatpush.msra.mxu0 %v1186
  %1432 = vmatmul.f32.gmra.mxu0 %v1204
  %v1433 = vpop.f32.mrf.mxu0
  %v1434 = vadd.f32 0.0, %v1433
  %1435 = vmatmul.f32.gmra.mxu0 %v1207
  %v1436 = vpop.f32.mrf.mxu0
  %v1437 = vadd.f32 0.0, %v1436
  %1438 = vdwg.mxu0
  %1439 = vmatpush.msra.mxu0 0.0
  %1440 = vmatpush.msra.mxu0 0.0
  %1441 = vmatpush.msra.mxu0 0.0
  %1442 = vmatpush.msra.mxu0 0.0
  %1443 = vmatpush.msra.mxu0 0.0
  %1444 = vmatpush.msra.mxu0 0.0
  %1445 = vmatpush.msra.mxu0 0.0
  %1446 = vmatpush.msra.mxu0 0.0
  %1447 = vmatpush.msra.mxu0 0.0
  %1448 = vmatpush.msra.mxu0 0.0
  %1449 = vmatpush.msra.mxu0 0.0
  %1450 = vmatpush.msra.mxu0 0.0
  %1451 = vmatpush.msra.mxu0 %v1193
  %1452 = vmatpush.msra.mxu0 %v1192
  %1453 = vmatpush.msra.mxu0 %v1191
  %1454 = vmatpush.msra.mxu0 %v1190
  %1455 = vmatmul.f32.gmra.mxu0 %v1204
  %v1456 = vpop.f32.mrf.mxu0
  %v1457 = vadd.f32 0.0, %v1456
  %1458 = vmatmul.f32.gmra.mxu0 %v1207
  %v1459 = vpop.f32.mrf.mxu0
  %v1460 = vadd.f32 0.0, %v1459
  %1461 = vdwg.mxu0
  %1462 = vmatpush.msra.mxu0 0.0
  %1463 = vmatpush.msra.mxu0 0.0
  %1464 = vmatpush.msra.mxu0 0.0
  %1465 = vmatpush.msra.mxu0 0.0
  %1466 = vmatpush.msra.mxu0 0.0
  %1467 = vmatpush.msra.mxu0 0.0
  %1468 = vmatpush.msra.mxu0 0.0
  %1469 = vmatpush.msra.mxu0 0.0
  %1470 = vmatpush.msra.mxu0 0.0
  %1471 = vmatpush.msra.mxu0 0.0
  %1472 = vmatpush.msra.mxu0 0.0
  %1473 = vmatpush.msra.mxu0 0.0
  %1474 = vmatpush.msra.mxu0 %v1197
  %1475 = vmatpush.msra.mxu0 %v1196
  %1476 = vmatpush.msra.mxu0 %v1195
  %1477 = vmatpush.msra.mxu0 %v1194
  %1478 = vmatmul.f32.gmra.mxu0 %v1204
  %v1479 = vpop.f32.mrf.mxu0
  %v1480 = vadd.f32 0.0, %v1479
  %1481 = vmatmul.f32.gmra.mxu0 %v1207
  %v1482 = vpop.f32.mrf.mxu0
  %v1483 = vadd.f32 0.0, %v1482
  %1484 = vdwg.mxu0
  %v1486 = vsel %vm513, %v1227, 0
  %v1489 = vsel %vm513, %v1230, 0
  %v1492 = vsel %vm513, %v1319, 0
  %v1495 = vsel %vm513, %v1322, 0
  %1497 = vmatpush.xpose.msra.mxu0 0.0
  %1498 = vmatpush.xpose.msra.mxu0 0.0
  %1499 = vmatpush.xpose.msra.mxu0 0.0
  %1500 = vmatpush.xpose.msra.mxu0 0.0
  %1501 = vmatpush.xpose.msra.mxu0 0.0
  %1502 = vmatpush.xpose.msra.mxu0 0.0
  %1503 = vmatpush.xpose.msra.mxu0 0.0
  %1504 = vmatpush.xpose.msra.mxu0 0.0
  %1505 = vmatpush.xpose.msra.mxu0 0.0
  %1506 = vmatpush.xpose.msra.mxu0 0.0
  %1507 = vmatpush.xpose.msra.mxu0 0.0
  %1508 = vmatpush.xpose.msra.mxu0 0.0
  %1509 = vmatpush.xpose.msra.mxu0 0.0
  %1510 = vmatpush.xpose.msra.mxu0 0.0
  %1511 = vmatpush.xpose.msra.mxu0 %v1495
  %1512 = vmatpush.xpose.msra.mxu0 %v1492
  %1513 = vmatmul.f32.gmra.mxu0 %v1486
  %v1514 = vpop.f32.mrf.mxu0
  %v1515 = vadd.f32 %v123, %v1514
  %1516 = vmatmul.f32.gmra.mxu0 %v1489
  %v1517 = vpop.f32.mrf.mxu0
  %v1518 = vadd.f32 %v124, %v1517
  %1519 = vdwg.mxu0
  %v1521 = vsel %vm513, %v1250, 0
  %v1524 = vsel %vm513, %v1253, 0
  %v1527 = vsel %vm513, %v1342, 0
  %v1530 = vsel %vm513, %v1345, 0
  %1532 = vmatpush.xpose.msra.mxu0 0.0
  %1533 = vmatpush.xpose.msra.mxu0 0.0
  %1534 = vmatpush.xpose.msra.mxu0 0.0
  %1535 = vmatpush.xpose.msra.mxu0 0.0
  %1536 = vmatpush.xpose.msra.mxu0 0.0
  %1537 = vmatpush.xpose.msra.mxu0 0.0
  %1538 = vmatpush.xpose.msra.mxu0 0.0
  %1539 = vmatpush.xpose.msra.mxu0 0.0
  %1540 = vmatpush.xpose.msra.mxu0 0.0
  %1541 = vmatpush.xpose.msra.mxu0 0.0
  %1542 = vmatpush.xpose.msra.mxu0 0.0
  %1543 = vmatpush.xpose.msra.mxu0 0.0
  %1544 = vmatpush.xpose.msra.mxu0 0.0
  %1545 = vmatpush.xpose.msra.mxu0 0.0
  %1546 = vmatpush.xpose.msra.mxu0 %v1530
  %1547 = vmatpush.xpose.msra.mxu0 %v1527
  %1548 = vmatmul.f32.gmra.mxu0 %v1521
  %v1549 = vpop.f32.mrf.mxu0
  %v1550 = vadd.f32 %v125, %v1549
  %1551 = vmatmul.f32.gmra.mxu0 %v1524
  %v1552 = vpop.f32.mrf.mxu0
  %v1553 = vadd.f32 %v126, %v1552
  %1554 = vdwg.mxu0
  %v1556 = vsel %vm513, %v1273, 0
  %v1559 = vsel %vm513, %v1276, 0
  %v1562 = vsel %vm513, %v1365, 0
  %v1565 = vsel %vm513, %v1368, 0
  %1567 = vmatpush.xpose.msra.mxu0 0.0
  %1568 = vmatpush.xpose.msra.mxu0 0.0
  %1569 = vmatpush.xpose.msra.mxu0 0.0
  %1570 = vmatpush.xpose.msra.mxu0 0.0
  %1571 = vmatpush.xpose.msra.mxu0 0.0
  %1572 = vmatpush.xpose.msra.mxu0 0.0
  %1573 = vmatpush.xpose.msra.mxu0 0.0
  %1574 = vmatpush.xpose.msra.mxu0 0.0
  %1575 = vmatpush.xpose.msra.mxu0 0.0
  %1576 = vmatpush.xpose.msra.mxu0 0.0
  %1577 = vmatpush.xpose.msra.mxu0 0.0
  %1578 = vmatpush.xpose.msra.mxu0 0.0
  %1579 = vmatpush.xpose.msra.mxu0 0.0
  %1580 = vmatpush.xpose.msra.mxu0 0.0
  %1581 = vmatpush.xpose.msra.mxu0 %v1565
  %1582 = vmatpush.xpose.msra.mxu0 %v1562
  %1583 = vmatmul.f32.gmra.mxu0 %v1556
  %v1584 = vpop.f32.mrf.mxu0
  %v1585 = vadd.f32 %v127, %v1584
  %1586 = vmatmul.f32.gmra.mxu0 %v1559
  %v1587 = vpop.f32.mrf.mxu0
  %v1588 = vadd.f32 %v128, %v1587
  %1589 = vdwg.mxu0
  %v1591 = vsel %vm513, %v1296, 0
  %v1594 = vsel %vm513, %v1299, 0
  %v1597 = vsel %vm513, %v1388, 0
  %v1600 = vsel %vm513, %v1391, 0
  %1602 = vmatpush.xpose.msra.mxu0 0.0
  %1603 = vmatpush.xpose.msra.mxu0 0.0
  %1604 = vmatpush.xpose.msra.mxu0 0.0
  %1605 = vmatpush.xpose.msra.mxu0 0.0
  %1606 = vmatpush.xpose.msra.mxu0 0.0
  %1607 = vmatpush.xpose.msra.mxu0 0.0
  %1608 = vmatpush.xpose.msra.mxu0 0.0
  %1609 = vmatpush.xpose.msra.mxu0 0.0
  %1610 = vmatpush.xpose.msra.mxu0 0.0
  %1611 = vmatpush.xpose.msra.mxu0 0.0
  %1612 = vmatpush.xpose.msra.mxu0 0.0
  %1613 = vmatpush.xpose.msra.mxu0 0.0
  %1614 = vmatpush.xpose.msra.mxu0 0.0
  %1615 = vmatpush.xpose.msra.mxu0 0.0
  %1616 = vmatpush.xpose.msra.mxu0 %v1600
  %1617 = vmatpush.xpose.msra.mxu0 %v1597
  %1618 = vmatmul.f32.gmra.mxu0 %v1591
  %v1619 = vpop.f32.mrf.mxu0
  %v1620 = vadd.f32 %v129, %v1619
  %1621 = vmatmul.f32.gmra.mxu0 %v1594
  %v1622 = vpop.f32.mrf.mxu0
  %v1623 = vadd.f32 %v130, %v1622
  %1624 = vdwg.mxu0
  %v1625 = vsel %vm654, %v1515, -inf
  %1626 = vmax.xlane.f32.xlu0 %v1625
  %v1627 = vpop.xlane.xlu0 %1626
  %v1628 = vsel %vm654, %v1518, -inf
  %1629 = vmax.xlane.f32.xlu0 %v1628
  %v1630 = vpop.xlane.xlu0 %1629
  %v1631 = vsel %vm654, %v1550, -inf
  %1632 = vmax.xlane.f32.xlu0 %v1631
  %v1633 = vpop.xlane.xlu0 %1632
  %v1634 = vsel %vm654, %v1553, -inf
  %1635 = vmax.xlane.f32.xlu0 %v1634
  %v1636 = vpop.xlane.xlu0 %1635
  %v1637 = vsel %vm654, %v1585, -inf
  %1638 = vmax.xlane.f32.xlu0 %v1637
  %v1639 = vpop.xlane.xlu0 %1638
  %v1640 = vsel %vm654, %v1588, -inf
  %1641 = vmax.xlane.f32.xlu0 %v1640
  %v1642 = vpop.xlane.xlu0 %1641
  %v1643 = vsel %vm654, %v1620, -inf
  %1644 = vmax.xlane.f32.xlu0 %v1643
  %v1645 = vpop.xlane.xlu0 %1644
  %v1646 = vsel %vm654, %v1623, -inf
  %1647 = vmax.xlane.f32.xlu0 %v1646
  %v1648 = vpop.xlane.xlu0 %1647
  %v1649 = vsub.f32 %v1515, %v1627
  %v1650 = vsub.f32 %v1518, %v1630
  %v1651 = vsub.f32 %v1550, %v1633
  %v1652 = vsub.f32 %v1553, %v1636
  %v1653 = vsub.f32 %v1585, %v1639
  %v1654 = vsub.f32 %v1588, %v1642
  %v1655 = vsub.f32 %v1620, %v1645
  %v1656 = vsub.f32 %v1623, %v1648
  %v1657 = vmul.f32 %v1649, 1.442695
  %v1658 = vpow.pop %v1657
  %v1659 = vmul.f32 %v1650, 1.442695
  %v1660 = vpow.pop %v1659
  %v1661 = vmul.f32 %v1651, 1.442695
  %v1662 = vpow.pop %v1661
  %v1663 = vmul.f32 %v1652, 1.442695
  %v1664 = vpow.pop %v1663
  %v1665 = vmul.f32 %v1653, 1.442695
  %v1666 = vpow.pop %v1665
  %v1667 = vmul.f32 %v1654, 1.442695
  %v1668 = vpow.pop %v1667
  %v1669 = vmul.f32 %v1655, 1.442695
  %v1670 = vpow.pop %v1669
  %v1671 = vmul.f32 %v1656, 1.442695
  %v1672 = vpow.pop %v1671
  %v1673 = vsel %vm654, %v1658, 0.0
  %1674 = vadd.xlane.f32.xlu0 %v1673
  %v1675 = vpop.xlane.xlu0 %1674
  %v1676 = vsel %vm654, %v1660, 0.0
  %1677 = vadd.xlane.f32.xlu0 %v1676
  %v1678 = vpop.xlane.xlu0 %1677
  %v1679 = vsel %vm654, %v1662, 0.0
  %1680 = vadd.xlane.f32.xlu0 %v1679
  %v1681 = vpop.xlane.xlu0 %1680
  %v1682 = vsel %vm654, %v1664, 0.0
  %1683 = vadd.xlane.f32.xlu0 %v1682
  %v1684 = vpop.xlane.xlu0 %1683
  %v1685 = vsel %vm654, %v1666, 0.0
  %1686 = vadd.xlane.f32.xlu0 %v1685
  %v1687 = vpop.xlane.xlu0 %1686
  %v1688 = vsel %vm654, %v1668, 0.0
  %1689 = vadd.xlane.f32.xlu0 %v1688
  %v1690 = vpop.xlane.xlu0 %1689
  %v1691 = vsel %vm654, %v1670, 0.0
  %1692 = vadd.xlane.f32.xlu0 %v1691
  %v1693 = vpop.xlane.xlu0 %1692
  %v1694 = vsel %vm654, %v1672, 0.0
  %1695 = vadd.xlane.f32.xlu0 %v1694
  %v1696 = vpop.xlane.xlu0 %1695
  %v1697 = vrcp.pop %v1675
  %v1698 = vrcp.pop %v1678
  %v1699 = vrcp.pop %v1681
  %v1700 = vrcp.pop %v1684
  %v1701 = vrcp.pop %v1687
  %v1702 = vrcp.pop %v1690
  %v1703 = vrcp.pop %v1693
  %v1704 = vrcp.pop %v1696
  %v1705 = vmul.f32 %v1658, %v1697
  %v1706 = vmul.f32 %v1660, %v1698
  %v1707 = vmul.f32 %v1662, %v1699
  %v1708 = vmul.f32 %v1664, %v1700
  %v1709 = vmul.f32 %v1666, %v1701
  %v1710 = vmul.f32 %v1668, %v1702
  %v1711 = vmul.f32 %v1670, %v1703
  %v1712 = vmul.f32 %v1672, %v1704
  %v1714 = vsel %vm654, %v1705, 0
  %v1717 = vsel %vm654, %v1706, 0
  %1719 = vmatpush.msra.mxu0 0.0
  %1720 = vmatpush.msra.mxu0 0.0
  %1721 = vmatpush.msra.mxu0 0.0
  %1722 = vmatpush.msra.mxu0 0.0
  %1723 = vmatpush.msra.mxu0 0.0
  %1724 = vmatpush.msra.mxu0 0.0
  %1725 = vmatpush.msra.mxu0 0.0
  %1726 = vmatpush.msra.mxu0 0.0
  %1727 = vmatpush.msra.mxu0 0.0
  %1728 = vmatpush.msra.mxu0 0.0
  %1729 = vmatpush.msra.mxu0 0.0
  %1730 = vmatpush.msra.mxu0 0.0
  %1731 = vmatpush.msra.mxu0 0.0
  %1732 = vmatpush.msra.mxu0 0.0
  %1733 = vmatpush.msra.mxu0 %v1414
  %1734 = vmatpush.msra.mxu0 %v1411
  %1735 = vmatmul.f32.gmra.mxu0 %v1714
  %v1736 = vpop.f32.mrf.mxu0
  %v1737 = vadd.f32 0.0, %v1736
  %1738 = vmatmul.f32.gmra.mxu0 %v1717
  %v1739 = vpop.f32.mrf.mxu0
  %v1740 = vadd.f32 0.0, %v1739
  %1741 = vdwg.mxu0
  %v1743 = vsel %vm654, %v1707, 0
  %v1746 = vsel %vm654, %v1708, 0
  %1748 = vmatpush.msra.mxu0 0.0
  %1749 = vmatpush.msra.mxu0 0.0
  %1750 = vmatpush.msra.mxu0 0.0
  %1751 = vmatpush.msra.mxu0 0.0
  %1752 = vmatpush.msra.mxu0 0.0
  %1753 = vmatpush.msra.mxu0 0.0
  %1754 = vmatpush.msra.mxu0 0.0
  %1755 = vmatpush.msra.mxu0 0.0
  %1756 = vmatpush.msra.mxu0 0.0
  %1757 = vmatpush.msra.mxu0 0.0
  %1758 = vmatpush.msra.mxu0 0.0
  %1759 = vmatpush.msra.mxu0 0.0
  %1760 = vmatpush.msra.mxu0 0.0
  %1761 = vmatpush.msra.mxu0 0.0
  %1762 = vmatpush.msra.mxu0 %v1437
  %1763 = vmatpush.msra.mxu0 %v1434
  %1764 = vmatmul.f32.gmra.mxu0 %v1743
  %v1765 = vpop.f32.mrf.mxu0
  %v1766 = vadd.f32 0.0, %v1765
  %1767 = vmatmul.f32.gmra.mxu0 %v1746
  %v1768 = vpop.f32.mrf.mxu0
  %v1769 = vadd.f32 0.0, %v1768
  %1770 = vdwg.mxu0
  %v1772 = vsel %vm654, %v1709, 0
  %v1775 = vsel %vm654, %v1710, 0
  %1777 = vmatpush.msra.mxu0 0.0
  %1778 = vmatpush.msra.mxu0 0.0
  %1779 = vmatpush.msra.mxu0 0.0
  %1780 = vmatpush.msra.mxu0 0.0
  %1781 = vmatpush.msra.mxu0 0.0
  %1782 = vmatpush.msra.mxu0 0.0
  %1783 = vmatpush.msra.mxu0 0.0
  %1784 = vmatpush.msra.mxu0 0.0
  %1785 = vmatpush.msra.mxu0 0.0
  %1786 = vmatpush.msra.mxu0 0.0
  %1787 = vmatpush.msra.mxu0 0.0
  %1788 = vmatpush.msra.mxu0 0.0
  %1789 = vmatpush.msra.mxu0 0.0
  %1790 = vmatpush.msra.mxu0 0.0
  %1791 = vmatpush.msra.mxu0 %v1460
  %1792 = vmatpush.msra.mxu0 %v1457
  %1793 = vmatmul.f32.gmra.mxu0 %v1772
  %v1794 = vpop.f32.mrf.mxu0
  %v1795 = vadd.f32 0.0, %v1794
  %1796 = vmatmul.f32.gmra.mxu0 %v1775
  %v1797 = vpop.f32.mrf.mxu0
  %v1798 = vadd.f32 0.0, %v1797
  %1799 = vdwg.mxu0
  %v1801 = vsel %vm654, %v1711, 0
  %v1804 = vsel %vm654, %v1712, 0
  %1806 = vmatpush.msra.mxu0 0.0
  %1807 = vmatpush.msra.mxu0 0.0
  %1808 = vmatpush.msra.mxu0 0.0
  %1809 = vmatpush.msra.mxu0 0.0
  %1810 = vmatpush.msra.mxu0 0.0
  %1811 = vmatpush.msra.mxu0 0.0
  %1812 = vmatpush.msra.mxu0 0.0
  %1813 = vmatpush.msra.mxu0 0.0
  %1814 = vmatpush.msra.mxu0 0.0
  %1815 = vmatpush.msra.mxu0 0.0
  %1816 = vmatpush.msra.mxu0 0.0
  %1817 = vmatpush.msra.mxu0 0.0
  %1818 = vmatpush.msra.mxu0 0.0
  %1819 = vmatpush.msra.mxu0 0.0
  %1820 = vmatpush.msra.mxu0 %v1483
  %1821 = vmatpush.msra.mxu0 %v1480
  %1822 = vmatmul.f32.gmra.mxu0 %v1801
  %v1823 = vpop.f32.mrf.mxu0
  %v1824 = vadd.f32 0.0, %v1823
  %1825 = vmatmul.f32.gmra.mxu0 %v1804
  %v1826 = vpop.f32.mrf.mxu0
  %v1827 = vadd.f32 0.0, %v1826
  %1828 = vdwg.mxu0
  %v1830 = vsel %vm513, %v1737, 0
  %v1833 = vsel %vm513, %v1740, 0
  %1835 = vmatpush.msra.mxu0 0.0
  %1836 = vmatpush.msra.mxu0 0.0
  %1837 = vmatpush.msra.mxu0 0.0
  %1838 = vmatpush.msra.mxu0 0.0
  %1839 = vmatpush.msra.mxu0 0.0
  %1840 = vmatpush.msra.mxu0 0.0
  %1841 = vmatpush.msra.mxu0 0.0
  %1842 = vmatpush.msra.mxu0 0.0
  %1843 = vmatpush.msra.mxu0 0.0
  %1844 = vmatpush.msra.mxu0 0.0
  %1845 = vmatpush.msra.mxu0 0.0
  %1846 = vmatpush.msra.mxu0 0.0
  %1847 = vmatpush.msra.mxu0 0.0
  %1848 = vmatpush.msra.mxu0 0.0
  %1849 = vmatpush.msra.mxu0 0.0
  %1850 = vmatpush.msra.mxu0 %v1199
  %1851 = vmatmul.f32.gmra.mxu0 %v1830
  %v1852 = vpop.f32.mrf.mxu0
  %v1853 = vadd.f32 0.0, %v1852
  %1854 = vmatmul.f32.gmra.mxu0 %v1833
  %v1855 = vpop.f32.mrf.mxu0
  %v1856 = vadd.f32 0.0, %v1855
  %1857 = vdwg.mxu0
  %v1859 = vsel %vm513, %v1766, 0
  %v1862 = vsel %vm513, %v1769, 0
  %1864 = vmatpush.msra.mxu0 0.0
  %1865 = vmatpush.msra.mxu0 0.0
  %1866 = vmatpush.msra.mxu0 0.0
  %1867 = vmatpush.msra.mxu0 0.0
  %1868 = vmatpush.msra.mxu0 0.0
  %1869 = vmatpush.msra.mxu0 0.0
  %1870 = vmatpush.msra.mxu0 0.0
  %1871 = vmatpush.msra.mxu0 0.0
  %1872 = vmatpush.msra.mxu0 0.0
  %1873 = vmatpush.msra.mxu0 0.0
  %1874 = vmatpush.msra.mxu0 0.0
  %1875 = vmatpush.msra.mxu0 0.0
  %1876 = vmatpush.msra.mxu0 0.0
  %1877 = vmatpush.msra.mxu0 0.0
  %1878 = vmatpush.msra.mxu0 0.0
  %1879 = vmatpush.msra.mxu0 %v1200
  %1880 = vmatmul.f32.gmra.mxu0 %v1859
  %v1881 = vpop.f32.mrf.mxu0
  %v1882 = vadd.f32 0.0, %v1881
  %1883 = vmatmul.f32.gmra.mxu0 %v1862
  %v1884 = vpop.f32.mrf.mxu0
  %v1885 = vadd.f32 0.0, %v1884
  %1886 = vdwg.mxu0
  %v1888 = vsel %vm513, %v1795, 0
  %v1891 = vsel %vm513, %v1798, 0
  %1893 = vmatpush.msra.mxu0 0.0
  %1894 = vmatpush.msra.mxu0 0.0
  %1895 = vmatpush.msra.mxu0 0.0
  %1896 = vmatpush.msra.mxu0 0.0
  %1897 = vmatpush.msra.mxu0 0.0
  %1898 = vmatpush.msra.mxu0 0.0
  %1899 = vmatpush.msra.mxu0 0.0
  %1900 = vmatpush.msra.mxu0 0.0
  %1901 = vmatpush.msra.mxu0 0.0
  %1902 = vmatpush.msra.mxu0 0.0
  %1903 = vmatpush.msra.mxu0 0.0
  %1904 = vmatpush.msra.mxu0 0.0
  %1905 = vmatpush.msra.mxu0 0.0
  %1906 = vmatpush.msra.mxu0 0.0
  %1907 = vmatpush.msra.mxu0 0.0
  %1908 = vmatpush.msra.mxu0 %v1201
  %1909 = vmatmul.f32.gmra.mxu0 %v1888
  %v1910 = vpop.f32.mrf.mxu0
  %v1911 = vadd.f32 0.0, %v1910
  %1912 = vmatmul.f32.gmra.mxu0 %v1891
  %v1913 = vpop.f32.mrf.mxu0
  %v1914 = vadd.f32 0.0, %v1913
  %1915 = vdwg.mxu0
  %v1917 = vsel %vm513, %v1824, 0
  %v1920 = vsel %vm513, %v1827, 0
  %1922 = vmatpush.msra.mxu0 0.0
  %1923 = vmatpush.msra.mxu0 0.0
  %1924 = vmatpush.msra.mxu0 0.0
  %1925 = vmatpush.msra.mxu0 0.0
  %1926 = vmatpush.msra.mxu0 0.0
  %1927 = vmatpush.msra.mxu0 0.0
  %1928 = vmatpush.msra.mxu0 0.0
  %1929 = vmatpush.msra.mxu0 0.0
  %1930 = vmatpush.msra.mxu0 0.0
  %1931 = vmatpush.msra.mxu0 0.0
  %1932 = vmatpush.msra.mxu0 0.0
  %1933 = vmatpush.msra.mxu0 0.0
  %1934 = vmatpush.msra.mxu0 0.0
  %1935 = vmatpush.msra.mxu0 0.0
  %1936 = vmatpush.msra.mxu0 0.0
  %1937 = vmatpush.msra.mxu0 %v1202
  %1938 = vmatmul.f32.gmra.mxu0 %v1917
  %v1939 = vpop.f32.mrf.mxu0
  %v1940 = vadd.f32 0.0, %v1939
  %1941 = vmatmul.f32.gmra.mxu0 %v1920
  %v1942 = vpop.f32.mrf.mxu0
  %v1943 = vadd.f32 0.0, %v1942
  %1944 = vdwg.mxu0
  %v1945 = vsel %vm134, %v1853, 0.0
  %v1946 = vsel %vm134, %v1882, 0.0
  %v1947 = vadd.f32 %v1945, %v1946
  %v1948 = vsel %vm134, %v1911, 0.0
  %v1949 = vadd.f32 %v1947, %v1948
  %v1950 = vsel %vm134, %v1940, 0.0
  %v1951 = vadd.f32 %v1949, %v1950
  %v1952 = vsel %vm134, %v1856, 0.0
  %v1953 = vsel %vm134, %v1885, 0.0
  %v1954 = vadd.f32 %v1952, %v1953
  %v1955 = vsel %vm134, %v1914, 0.0
  %v1956 = vadd.f32 %v1954, %v1955
  %v1957 = vsel %vm134, %v1943, 0.0
  %v1958 = vadd.f32 %v1956, %v1957
  %v1959 = vadd.f32 %v1104, %v1951
  %v1960 = vadd.f32 %v1105, %v1958
  %s1961 = scalar_lea.vmem %s17, 1
  %v1962 = vld [vmem:[%s1961] sm:$0x1]
  %v1963 = vmul.f32 %v1959, %v1959
  %v1964 = vmul.f32 %v1960, %v1960
  %v1965 = vsel %vm134, %v1963, 0.0
  %1966 = vadd.xlane.f32.xlu0 %v1965
  %v1967 = vpop.xlane.xlu0 %1966
  %v1968 = vsel %vm134, %v1964, 0.0
  %1969 = vadd.xlane.f32.xlu0 %v1968
  %v1970 = vpop.xlane.xlu0 %1969
  %v1971 = vmul.f32 %v1967, %v147
  %v1972 = vmul.f32 %v1970, %v147
  %v1973 = vadd.f32 %v1971, 1e-06
  %v1974 = vadd.f32 %v1972, 1e-06
  %v1975 = vrsqrt.pop %v1973
  %v1976 = vmul.f32 %v1975, %v1973
  %v1977 = vmul.f32 %v1976, %v1975
  %v1978 = vmul.f32 0.5, %v1977
  %v1979 = vsub.f32 1.5, %v1978
  %v1980 = vmul.f32 %v1975, %v1979
  %vm1981 = vweird.f32 %v1973
  %vm1982 = vweird.f32 %v1975
  %vm1983 = vmor %vm1981, %vm1982
  %v1984 = vsel %vm1983, %v1975, %v1980
  %v1985 = vrsqrt.pop %v1974
  %v1986 = vmul.f32 %v1985, %v1974
  %v1987 = vmul.f32 %v1986, %v1985
  %v1988 = vmul.f32 0.5, %v1987
  %v1989 = vsub.f32 1.5, %v1988
  %v1990 = vmul.f32 %v1985, %v1989
  %vm1991 = vweird.f32 %v1974
  %vm1992 = vweird.f32 %v1985
  %vm1993 = vmor %vm1991, %vm1992
  %v1994 = vsel %vm1993, %v1985, %v1990
  %v1995 = vmul.f32 %v1959, %v1984
  %v1996 = vmul.f32 %v1960, %v1994
  %v1998 = vperm.slane %v1962, 0
  %v2000 = vmul.f32 %v1995, %v1998
  %v2001 = vmul.f32 %v1996, %v1998
  %s2002 = scalar_lea.vmem %s19, 32
  %v2003 = vld [vmem:[%s2002] sm:$0xff]
  %v2004 = vld [vmem:[%s2002 + $0x8] sm:$0xff]
  %v2005 = vld [vmem:[%s2002 + $0x10] sm:$0xff]
  %v2006 = vld [vmem:[%s2002 + $0x18] sm:$0xff]
  %s2007 = scalar_lea.vmem %s21, 64
  %v2008 = vld [vmem:[%s2007] sm:$0xff]
  %v2009 = vld [vmem:[%s2007 + $0x8] sm:$0xff]
  %v2010 = vld [vmem:[%s2007 + $0x10] sm:$0xff]
  %v2011 = vld [vmem:[%s2007 + $0x18] sm:$0xff]
  %v2012 = vld [vmem:[%s2007 + $0x20] sm:$0xff]
  %v2013 = vld [vmem:[%s2007 + $0x28] sm:$0xff]
  %v2014 = vld [vmem:[%s2007 + $0x30] sm:$0xff]
  %v2015 = vld [vmem:[%s2007 + $0x38] sm:$0xff]
  %v2017 = vsel %vm134, %v2000, 0
  %v2020 = vsel %vm134, %v2001, 0
  %2022 = vmatpush.msra.mxu0 0.0
  %2023 = vmatpush.msra.mxu0 0.0
  %2024 = vmatpush.msra.mxu0 0.0
  %2025 = vmatpush.msra.mxu0 0.0
  %2026 = vmatpush.msra.mxu0 0.0
  %2027 = vmatpush.msra.mxu0 0.0
  %2028 = vmatpush.msra.mxu0 0.0
  %2029 = vmatpush.msra.mxu0 0.0
  %2030 = vmatpush.msra.mxu0 0.0
  %2031 = vmatpush.msra.mxu0 0.0
  %2032 = vmatpush.msra.mxu0 0.0
  %2033 = vmatpush.msra.mxu0 0.0
  %2034 = vmatpush.msra.mxu0 %v2006
  %2035 = vmatpush.msra.mxu0 %v2005
  %2036 = vmatpush.msra.mxu0 %v2004
  %2037 = vmatpush.msra.mxu0 %v2003
  %2038 = vmatmul.f32.gmra.mxu0 %v2017
  %v2039 = vpop.f32.mrf.mxu0
  %v2040 = vadd.f32 0.0, %v2039
  %2041 = vmatmul.f32.gmra.mxu0 %v2020
  %v2042 = vpop.f32.mrf.mxu0
  %v2043 = vadd.f32 0.0, %v2042
  %2044 = vdwg.mxu0
  %v2045 = vmax.f32 %v2040, 0.0
  %v2046 = vmax.f32 %v2043, 0.0
  %v2048 = vsel %vm1074, %v2045, 0
  %v2051 = vsel %vm1074, %v2046, 0
  %2053 = vmatpush.msra.mxu0 0.0
  %2054 = vmatpush.msra.mxu0 0.0
  %2055 = vmatpush.msra.mxu0 0.0
  %2056 = vmatpush.msra.mxu0 0.0
  %2057 = vmatpush.msra.mxu0 0.0
  %2058 = vmatpush.msra.mxu0 0.0
  %2059 = vmatpush.msra.mxu0 0.0
  %2060 = vmatpush.msra.mxu0 0.0
  %2061 = vmatpush.msra.mxu0 %v2015
  %2062 = vmatpush.msra.mxu0 %v2014
  %2063 = vmatpush.msra.mxu0 %v2013
  %2064 = vmatpush.msra.mxu0 %v2012
  %2065 = vmatpush.msra.mxu0 %v2011
  %2066 = vmatpush.msra.mxu0 %v2010
  %2067 = vmatpush.msra.mxu0 %v2009
  %2068 = vmatpush.msra.mxu0 %v2008
  %2069 = vmatmul.f32.gmra.mxu0 %v2048
  %v2070 = vpop.f32.mrf.mxu0
  %v2071 = vadd.f32 0.0, %v2070
  %2072 = vmatmul.f32.gmra.mxu0 %v2051
  %v2073 = vpop.f32.mrf.mxu0
  %v2074 = vadd.f32 0.0, %v2073
  %2075 = vdwg.mxu0
  %v2076 = vadd.f32 %v1959, %v2071
  %v2077 = vadd.f32 %v1960, %v2074
  %v2078 = vld [vmem:[%s5] sm:$0x1]
  %v2079 = vmul.f32 %v2076, %v2076
  %v2080 = vmul.f32 %v2077, %v2077
  %v2081 = vsel %vm134, %v2079, 0.0
  %2082 = vadd.xlane.f32.xlu0 %v2081
  %v2083 = vpop.xlane.xlu0 %2082
  %v2084 = vsel %vm134, %v2080, 0.0
  %2085 = vadd.xlane.f32.xlu0 %v2084
  %v2086 = vpop.xlane.xlu0 %2085
  %v2087 = vmul.f32 %v2083, %v147
  %v2088 = vmul.f32 %v2086, %v147
  %v2089 = vadd.f32 %v2087, 1e-06
  %v2090 = vadd.f32 %v2088, 1e-06
  %v2091 = vrsqrt.pop %v2089
  %v2092 = vmul.f32 %v2091, %v2089
  %v2093 = vmul.f32 %v2092, %v2091
  %v2094 = vmul.f32 0.5, %v2093
  %v2095 = vsub.f32 1.5, %v2094
  %v2096 = vmul.f32 %v2091, %v2095
  %vm2097 = vweird.f32 %v2089
  %vm2098 = vweird.f32 %v2091
  %vm2099 = vmor %vm2097, %vm2098
  %v2100 = vsel %vm2099, %v2091, %v2096
  %v2101 = vrsqrt.pop %v2090
  %v2102 = vmul.f32 %v2101, %v2090
  %v2103 = vmul.f32 %v2102, %v2101
  %v2104 = vmul.f32 0.5, %v2103
  %v2105 = vsub.f32 1.5, %v2104
  %v2106 = vmul.f32 %v2101, %v2105
  %vm2107 = vweird.f32 %v2090
  %vm2108 = vweird.f32 %v2101
  %vm2109 = vmor %vm2107, %vm2108
  %v2110 = vsel %vm2109, %v2101, %v2106
  %v2111 = vmul.f32 %v2076, %v2100
  %v2112 = vmul.f32 %v2077, %v2110
  %v2114 = vperm.slane %v2078, 0
  %v2116 = vmul.f32 %v2111, %v2114
  %v2117 = vmul.f32 %v2112, %v2114
  %v2118 = vld [vmem:[%s23] sm:$0x3]
  %v2119 = vld [vmem:[%s25] sm:$0x3]
  %v2120 = vld [vmem:[%s25 + $0x2] sm:$0x3]
  %v2121 = vld [vmem:[%s25 + $0x4] sm:$0x3]
  %v2122 = vld [vmem:[%s25 + $0x6] sm:$0x3]
  %v2123 = vld [vmem:[%s31] sm:$0x1]
  %v2124 = vmul.f32 %v2118, %v2118
  %vm2125 = vcmask 254976
  %v2126 = vsel %vm2125, %v2124, 0.0
  %2127 = vadd.xlane.f32.xlu0 %v2126
  %v2128 = vpop.xlane.xlu0 %2127
  %v2129 = vmul.f32 %v2128, %v147
  %v2130 = vadd.f32 %v2129, 1e-06
  %v2131 = vrsqrt.pop %v2130
  %v2132 = vmul.f32 %v2131, %v2130
  %v2133 = vmul.f32 %v2132, %v2131
  %v2134 = vmul.f32 0.5, %v2133
  %v2135 = vsub.f32 1.5, %v2134
  %v2136 = vmul.f32 %v2131, %v2135
  %vm2137 = vweird.f32 %v2130
  %vm2138 = vweird.f32 %v2131
  %vm2139 = vmor %vm2137, %vm2138
  %v2140 = vsel %vm2139, %v2131, %v2136
  %v2141 = vmul.f32 %v2118, %v2140
  %v2143 = vperm.slane %v2123, 0
  %v2145 = vmul.f32 %v2141, %v2143
  %v2146 = vld [vmem:[%s33] sm:$0xff]
  %v2147 = vld [vmem:[%s33 + $0x8] sm:$0xff]
  %v2148 = vld [vmem:[%s33 + $0x10] sm:$0xff]
  %v2149 = vld [vmem:[%s33 + $0x18] sm:$0xff]
  %v2150 = vld [vmem:[%s33 + $0x20] sm:$0xff]
  %v2151 = vld [vmem:[%s33 + $0x28] sm:$0xff]
  %v2152 = vld [vmem:[%s33 + $0x30] sm:$0xff]
  %v2153 = vld [vmem:[%s33 + $0x38] sm:$0xff]
  %v2154 = vld [vmem:[%s33 + $0x40] sm:$0xff]
  %v2155 = vld [vmem:[%s33 + $0x48] sm:$0xff]
  %v2156 = vld [vmem:[%s33 + $0x50] sm:$0xff]
  %v2157 = vld [vmem:[%s33 + $0x58] sm:$0xff]
  %v2158 = vld [vmem:[%s33 + $0x60] sm:$0xff]
  %v2159 = vld [vmem:[%s33 + $0x68] sm:$0xff]
  %v2160 = vld [vmem:[%s33 + $0x70] sm:$0xff]
  %v2161 = vld [vmem:[%s33 + $0x78] sm:$0xff]
  %v2162 = vld [vmem:[%s35] sm:$0xff]
  %v2163 = vld [vmem:[%s35 + $0x8] sm:$0xff]
  %v2164 = vld [vmem:[%s35 + $0x10] sm:$0xff]
  %v2165 = vld [vmem:[%s35 + $0x18] sm:$0xff]
  %v2166 = vld [vmem:[%s35 + $0x20] sm:$0xff]
  %v2167 = vld [vmem:[%s35 + $0x28] sm:$0xff]
  %v2168 = vld [vmem:[%s35 + $0x30] sm:$0xff]
  %v2169 = vld [vmem:[%s35 + $0x38] sm:$0xff]
  %v2170 = vld [vmem:[%s35 + $0x40] sm:$0xff]
  %v2171 = vld [vmem:[%s35 + $0x48] sm:$0xff]
  %v2172 = vld [vmem:[%s35 + $0x50] sm:$0xff]
  %v2173 = vld [vmem:[%s35 + $0x58] sm:$0xff]
  %v2174 = vld [vmem:[%s35 + $0x60] sm:$0xff]
  %v2175 = vld [vmem:[%s35 + $0x68] sm:$0xff]
  %v2176 = vld [vmem:[%s35 + $0x70] sm:$0xff]
  %v2177 = vld [vmem:[%s35 + $0x78] sm:$0xff]
  %v2178 = vld [vmem:[%s37] sm:$0xff]
  %v2179 = vld [vmem:[%s37 + $0x8] sm:$0xff]
  %v2180 = vld [vmem:[%s37 + $0x10] sm:$0xff]
  %v2181 = vld [vmem:[%s37 + $0x18] sm:$0xff]
  %v2182 = vld [vmem:[%s37 + $0x20] sm:$0xff]
  %v2183 = vld [vmem:[%s37 + $0x28] sm:$0xff]
  %v2184 = vld [vmem:[%s37 + $0x30] sm:$0xff]
  %v2185 = vld [vmem:[%s37 + $0x38] sm:$0xff]
  %v2186 = vld [vmem:[%s37 + $0x40] sm:$0xff]
  %v2187 = vld [vmem:[%s37 + $0x48] sm:$0xff]
  %v2188 = vld [vmem:[%s37 + $0x50] sm:$0xff]
  %v2189 = vld [vmem:[%s37 + $0x58] sm:$0xff]
  %v2190 = vld [vmem:[%s37 + $0x60] sm:$0xff]
  %v2191 = vld [vmem:[%s37 + $0x68] sm:$0xff]
  %v2192 = vld [vmem:[%s37 + $0x70] sm:$0xff]
  %v2193 = vld [vmem:[%s37 + $0x78] sm:$0xff]
  %v2194 = vld [vmem:[%s39] sm:$0xff]
  %v2195 = vld [vmem:[%s39 + $0x8] sm:$0xff]
  %v2196 = vld [vmem:[%s39 + $0x10] sm:$0xff]
  %v2197 = vld [vmem:[%s39 + $0x18] sm:$0xff]
  %v2199 = vsel %vm134, %v2145, 0
  %2201 = vmatpush.msra.mxu0 0.0
  %2202 = vmatpush.msra.mxu0 0.0
  %2203 = vmatpush.msra.mxu0 0.0
  %2204 = vmatpush.msra.mxu0 0.0
  %2205 = vmatpush.msra.mxu0 0.0
  %2206 = vmatpush.msra.mxu0 0.0
  %2207 = vmatpush.msra.mxu0 0.0
  %2208 = vmatpush.msra.mxu0 0.0
  %2209 = vmatpush.msra.mxu0 0.0
  %2210 = vmatpush.msra.mxu0 0.0
  %2211 = vmatpush.msra.mxu0 0.0
  %2212 = vmatpush.msra.mxu0 0.0
  %2213 = vmatpush.msra.mxu0 %v2149
  %2214 = vmatpush.msra.mxu0 %v2148
  %2215 = vmatpush.msra.mxu0 %v2147
  %2216 = vmatpush.msra.mxu0 %v2146
  %2217 = vmatmul.f32.gmra.mxu0 %v2199
  %v2218 = vpop.f32.mrf.mxu0
  %v2219 = vadd.f32 0.0, %v2218
  %2220 = vdwg.mxu0
  %2221 = vmatpush.msra.mxu0 0.0
  %2222 = vmatpush.msra.mxu0 0.0
  %2223 = vmatpush.msra.mxu0 0.0
  %2224 = vmatpush.msra.mxu0 0.0
  %2225 = vmatpush.msra.mxu0 0.0
  %2226 = vmatpush.msra.mxu0 0.0
  %2227 = vmatpush.msra.mxu0 0.0
  %2228 = vmatpush.msra.mxu0 0.0
  %2229 = vmatpush.msra.mxu0 0.0
  %2230 = vmatpush.msra.mxu0 0.0
  %2231 = vmatpush.msra.mxu0 0.0
  %2232 = vmatpush.msra.mxu0 0.0
  %2233 = vmatpush.msra.mxu0 %v2153
  %2234 = vmatpush.msra.mxu0 %v2152
  %2235 = vmatpush.msra.mxu0 %v2151
  %2236 = vmatpush.msra.mxu0 %v2150
  %2237 = vmatmul.f32.gmra.mxu0 %v2199
  %v2238 = vpop.f32.mrf.mxu0
  %v2239 = vadd.f32 0.0, %v2238
  %2240 = vdwg.mxu0
  %2241 = vmatpush.msra.mxu0 0.0
  %2242 = vmatpush.msra.mxu0 0.0
  %2243 = vmatpush.msra.mxu0 0.0
  %2244 = vmatpush.msra.mxu0 0.0
  %2245 = vmatpush.msra.mxu0 0.0
  %2246 = vmatpush.msra.mxu0 0.0
  %2247 = vmatpush.msra.mxu0 0.0
  %2248 = vmatpush.msra.mxu0 0.0
  %2249 = vmatpush.msra.mxu0 0.0
  %2250 = vmatpush.msra.mxu0 0.0
  %2251 = vmatpush.msra.mxu0 0.0
  %2252 = vmatpush.msra.mxu0 0.0
  %2253 = vmatpush.msra.mxu0 %v2157
  %2254 = vmatpush.msra.mxu0 %v2156
  %2255 = vmatpush.msra.mxu0 %v2155
  %2256 = vmatpush.msra.mxu0 %v2154
  %2257 = vmatmul.f32.gmra.mxu0 %v2199
  %v2258 = vpop.f32.mrf.mxu0
  %v2259 = vadd.f32 0.0, %v2258
  %2260 = vdwg.mxu0
  %2261 = vmatpush.msra.mxu0 0.0
  %2262 = vmatpush.msra.mxu0 0.0
  %2263 = vmatpush.msra.mxu0 0.0
  %2264 = vmatpush.msra.mxu0 0.0
  %2265 = vmatpush.msra.mxu0 0.0
  %2266 = vmatpush.msra.mxu0 0.0
  %2267 = vmatpush.msra.mxu0 0.0
  %2268 = vmatpush.msra.mxu0 0.0
  %2269 = vmatpush.msra.mxu0 0.0
  %2270 = vmatpush.msra.mxu0 0.0
  %2271 = vmatpush.msra.mxu0 0.0
  %2272 = vmatpush.msra.mxu0 0.0
  %2273 = vmatpush.msra.mxu0 %v2161
  %2274 = vmatpush.msra.mxu0 %v2160
  %2275 = vmatpush.msra.mxu0 %v2159
  %2276 = vmatpush.msra.mxu0 %v2158
  %2277 = vmatmul.f32.gmra.mxu0 %v2199
  %v2278 = vpop.f32.mrf.mxu0
  %v2279 = vadd.f32 0.0, %v2278
  %2280 = vdwg.mxu0
  %2281 = vmatpush.msra.mxu0 0.0
  %2282 = vmatpush.msra.mxu0 0.0
  %2283 = vmatpush.msra.mxu0 0.0
  %2284 = vmatpush.msra.mxu0 0.0
  %2285 = vmatpush.msra.mxu0 0.0
  %2286 = vmatpush.msra.mxu0 0.0
  %2287 = vmatpush.msra.mxu0 0.0
  %2288 = vmatpush.msra.mxu0 0.0
  %2289 = vmatpush.msra.mxu0 0.0
  %2290 = vmatpush.msra.mxu0 0.0
  %2291 = vmatpush.msra.mxu0 0.0
  %2292 = vmatpush.msra.mxu0 0.0
  %2293 = vmatpush.msra.mxu0 %v2165
  %2294 = vmatpush.msra.mxu0 %v2164
  %2295 = vmatpush.msra.mxu0 %v2163
  %2296 = vmatpush.msra.mxu0 %v2162
  %2297 = vmatmul.f32.gmra.mxu0 %v2199
  %v2298 = vpop.f32.mrf.mxu0
  %v2299 = vadd.f32 0.0, %v2298
  %2300 = vdwg.mxu0
  %2301 = vmatpush.msra.mxu0 0.0
  %2302 = vmatpush.msra.mxu0 0.0
  %2303 = vmatpush.msra.mxu0 0.0
  %2304 = vmatpush.msra.mxu0 0.0
  %2305 = vmatpush.msra.mxu0 0.0
  %2306 = vmatpush.msra.mxu0 0.0
  %2307 = vmatpush.msra.mxu0 0.0
  %2308 = vmatpush.msra.mxu0 0.0
  %2309 = vmatpush.msra.mxu0 0.0
  %2310 = vmatpush.msra.mxu0 0.0
  %2311 = vmatpush.msra.mxu0 0.0
  %2312 = vmatpush.msra.mxu0 0.0
  %2313 = vmatpush.msra.mxu0 %v2169
  %2314 = vmatpush.msra.mxu0 %v2168
  %2315 = vmatpush.msra.mxu0 %v2167
  %2316 = vmatpush.msra.mxu0 %v2166
  %2317 = vmatmul.f32.gmra.mxu0 %v2199
  %v2318 = vpop.f32.mrf.mxu0
  %v2319 = vadd.f32 0.0, %v2318
  %2320 = vdwg.mxu0
  %2321 = vmatpush.msra.mxu0 0.0
  %2322 = vmatpush.msra.mxu0 0.0
  %2323 = vmatpush.msra.mxu0 0.0
  %2324 = vmatpush.msra.mxu0 0.0
  %2325 = vmatpush.msra.mxu0 0.0
  %2326 = vmatpush.msra.mxu0 0.0
  %2327 = vmatpush.msra.mxu0 0.0
  %2328 = vmatpush.msra.mxu0 0.0
  %2329 = vmatpush.msra.mxu0 0.0
  %2330 = vmatpush.msra.mxu0 0.0
  %2331 = vmatpush.msra.mxu0 0.0
  %2332 = vmatpush.msra.mxu0 0.0
  %2333 = vmatpush.msra.mxu0 %v2173
  %2334 = vmatpush.msra.mxu0 %v2172
  %2335 = vmatpush.msra.mxu0 %v2171
  %2336 = vmatpush.msra.mxu0 %v2170
  %2337 = vmatmul.f32.gmra.mxu0 %v2199
  %v2338 = vpop.f32.mrf.mxu0
  %v2339 = vadd.f32 0.0, %v2338
  %2340 = vdwg.mxu0
  %2341 = vmatpush.msra.mxu0 0.0
  %2342 = vmatpush.msra.mxu0 0.0
  %2343 = vmatpush.msra.mxu0 0.0
  %2344 = vmatpush.msra.mxu0 0.0
  %2345 = vmatpush.msra.mxu0 0.0
  %2346 = vmatpush.msra.mxu0 0.0
  %2347 = vmatpush.msra.mxu0 0.0
  %2348 = vmatpush.msra.mxu0 0.0
  %2349 = vmatpush.msra.mxu0 0.0
  %2350 = vmatpush.msra.mxu0 0.0
  %2351 = vmatpush.msra.mxu0 0.0
  %2352 = vmatpush.msra.mxu0 0.0
  %2353 = vmatpush.msra.mxu0 %v2177
  %2354 = vmatpush.msra.mxu0 %v2176
  %2355 = vmatpush.msra.mxu0 %v2175
  %2356 = vmatpush.msra.mxu0 %v2174
  %2357 = vmatmul.f32.gmra.mxu0 %v2199
  %v2358 = vpop.f32.mrf.mxu0
  %v2359 = vadd.f32 0.0, %v2358
  %2360 = vdwg.mxu0
  %2361 = vmatpush.msra.mxu0 0.0
  %2362 = vmatpush.msra.mxu0 0.0
  %2363 = vmatpush.msra.mxu0 0.0
  %2364 = vmatpush.msra.mxu0 0.0
  %2365 = vmatpush.msra.mxu0 0.0
  %2366 = vmatpush.msra.mxu0 0.0
  %2367 = vmatpush.msra.mxu0 0.0
  %2368 = vmatpush.msra.mxu0 0.0
  %2369 = vmatpush.msra.mxu0 0.0
  %2370 = vmatpush.msra.mxu0 0.0
  %2371 = vmatpush.msra.mxu0 0.0
  %2372 = vmatpush.msra.mxu0 0.0
  %2373 = vmatpush.msra.mxu0 %v2181
  %2374 = vmatpush.msra.mxu0 %v2180
  %2375 = vmatpush.msra.mxu0 %v2179
  %2376 = vmatpush.msra.mxu0 %v2178
  %2377 = vmatmul.f32.gmra.mxu0 %v2199
  %v2378 = vpop.f32.mrf.mxu0
  %v2379 = vadd.f32 0.0, %v2378
  %2380 = vdwg.mxu0
  %2381 = vmatpush.msra.mxu0 0.0
  %2382 = vmatpush.msra.mxu0 0.0
  %2383 = vmatpush.msra.mxu0 0.0
  %2384 = vmatpush.msra.mxu0 0.0
  %2385 = vmatpush.msra.mxu0 0.0
  %2386 = vmatpush.msra.mxu0 0.0
  %2387 = vmatpush.msra.mxu0 0.0
  %2388 = vmatpush.msra.mxu0 0.0
  %2389 = vmatpush.msra.mxu0 0.0
  %2390 = vmatpush.msra.mxu0 0.0
  %2391 = vmatpush.msra.mxu0 0.0
  %2392 = vmatpush.msra.mxu0 0.0
  %2393 = vmatpush.msra.mxu0 %v2185
  %2394 = vmatpush.msra.mxu0 %v2184
  %2395 = vmatpush.msra.mxu0 %v2183
  %2396 = vmatpush.msra.mxu0 %v2182
  %2397 = vmatmul.f32.gmra.mxu0 %v2199
  %v2398 = vpop.f32.mrf.mxu0
  %v2399 = vadd.f32 0.0, %v2398
  %2400 = vdwg.mxu0
  %2401 = vmatpush.msra.mxu0 0.0
  %2402 = vmatpush.msra.mxu0 0.0
  %2403 = vmatpush.msra.mxu0 0.0
  %2404 = vmatpush.msra.mxu0 0.0
  %2405 = vmatpush.msra.mxu0 0.0
  %2406 = vmatpush.msra.mxu0 0.0
  %2407 = vmatpush.msra.mxu0 0.0
  %2408 = vmatpush.msra.mxu0 0.0
  %2409 = vmatpush.msra.mxu0 0.0
  %2410 = vmatpush.msra.mxu0 0.0
  %2411 = vmatpush.msra.mxu0 0.0
  %2412 = vmatpush.msra.mxu0 0.0
  %2413 = vmatpush.msra.mxu0 %v2189
  %2414 = vmatpush.msra.mxu0 %v2188
  %2415 = vmatpush.msra.mxu0 %v2187
  %2416 = vmatpush.msra.mxu0 %v2186
  %2417 = vmatmul.f32.gmra.mxu0 %v2199
  %v2418 = vpop.f32.mrf.mxu0
  %v2419 = vadd.f32 0.0, %v2418
  %2420 = vdwg.mxu0
  %2421 = vmatpush.msra.mxu0 0.0
  %2422 = vmatpush.msra.mxu0 0.0
  %2423 = vmatpush.msra.mxu0 0.0
  %2424 = vmatpush.msra.mxu0 0.0
  %2425 = vmatpush.msra.mxu0 0.0
  %2426 = vmatpush.msra.mxu0 0.0
  %2427 = vmatpush.msra.mxu0 0.0
  %2428 = vmatpush.msra.mxu0 0.0
  %2429 = vmatpush.msra.mxu0 0.0
  %2430 = vmatpush.msra.mxu0 0.0
  %2431 = vmatpush.msra.mxu0 0.0
  %2432 = vmatpush.msra.mxu0 0.0
  %2433 = vmatpush.msra.mxu0 %v2193
  %2434 = vmatpush.msra.mxu0 %v2192
  %2435 = vmatpush.msra.mxu0 %v2191
  %2436 = vmatpush.msra.mxu0 %v2190
  %2437 = vmatmul.f32.gmra.mxu0 %v2199
  %v2438 = vpop.f32.mrf.mxu0
  %v2439 = vadd.f32 0.0, %v2438
  %2440 = vdwg.mxu0
  %v2442 = vsel %vm513, %v2219, 0
  %v2445 = vsel %vm513, %v2299, 0
  %2447 = vmatpush.xpose.msra.mxu0 0.0
  %2448 = vmatpush.xpose.msra.mxu0 0.0
  %2449 = vmatpush.xpose.msra.mxu0 0.0
  %2450 = vmatpush.xpose.msra.mxu0 0.0
  %2451 = vmatpush.xpose.msra.mxu0 0.0
  %2452 = vmatpush.xpose.msra.mxu0 0.0
  %2453 = vmatpush.xpose.msra.mxu0 0.0
  %2454 = vmatpush.xpose.msra.mxu0 0.0
  %2455 = vmatpush.xpose.msra.mxu0 0.0
  %2456 = vmatpush.xpose.msra.mxu0 0.0
  %2457 = vmatpush.xpose.msra.mxu0 0.0
  %2458 = vmatpush.xpose.msra.mxu0 0.0
  %2459 = vmatpush.xpose.msra.mxu0 0.0
  %2460 = vmatpush.xpose.msra.mxu0 0.0
  %2461 = vmatpush.xpose.msra.mxu0 0.0
  %2462 = vmatpush.xpose.msra.mxu0 %v2445
  %2463 = vmatmul.f32.gmra.mxu0 %v2442
  %v2464 = vpop.f32.mrf.mxu0
  %v2465 = vadd.f32 %v2119, %v2464
  %2466 = vdwg.mxu0
  %v2468 = vsel %vm513, %v2239, 0
  %v2471 = vsel %vm513, %v2319, 0
  %2473 = vmatpush.xpose.msra.mxu0 0.0
  %2474 = vmatpush.xpose.msra.mxu0 0.0
  %2475 = vmatpush.xpose.msra.mxu0 0.0
  %2476 = vmatpush.xpose.msra.mxu0 0.0
  %2477 = vmatpush.xpose.msra.mxu0 0.0
  %2478 = vmatpush.xpose.msra.mxu0 0.0
  %2479 = vmatpush.xpose.msra.mxu0 0.0
  %2480 = vmatpush.xpose.msra.mxu0 0.0
  %2481 = vmatpush.xpose.msra.mxu0 0.0
  %2482 = vmatpush.xpose.msra.mxu0 0.0
  %2483 = vmatpush.xpose.msra.mxu0 0.0
  %2484 = vmatpush.xpose.msra.mxu0 0.0
  %2485 = vmatpush.xpose.msra.mxu0 0.0
  %2486 = vmatpush.xpose.msra.mxu0 0.0
  %2487 = vmatpush.xpose.msra.mxu0 0.0
  %2488 = vmatpush.xpose.msra.mxu0 %v2471
  %2489 = vmatmul.f32.gmra.mxu0 %v2468
  %v2490 = vpop.f32.mrf.mxu0
  %v2491 = vadd.f32 %v2120, %v2490
  %2492 = vdwg.mxu0
  %v2494 = vsel %vm513, %v2259, 0
  %v2497 = vsel %vm513, %v2339, 0
  %2499 = vmatpush.xpose.msra.mxu0 0.0
  %2500 = vmatpush.xpose.msra.mxu0 0.0
  %2501 = vmatpush.xpose.msra.mxu0 0.0
  %2502 = vmatpush.xpose.msra.mxu0 0.0
  %2503 = vmatpush.xpose.msra.mxu0 0.0
  %2504 = vmatpush.xpose.msra.mxu0 0.0
  %2505 = vmatpush.xpose.msra.mxu0 0.0
  %2506 = vmatpush.xpose.msra.mxu0 0.0
  %2507 = vmatpush.xpose.msra.mxu0 0.0
  %2508 = vmatpush.xpose.msra.mxu0 0.0
  %2509 = vmatpush.xpose.msra.mxu0 0.0
  %2510 = vmatpush.xpose.msra.mxu0 0.0
  %2511 = vmatpush.xpose.msra.mxu0 0.0
  %2512 = vmatpush.xpose.msra.mxu0 0.0
  %2513 = vmatpush.xpose.msra.mxu0 0.0
  %2514 = vmatpush.xpose.msra.mxu0 %v2497
  %2515 = vmatmul.f32.gmra.mxu0 %v2494
  %v2516 = vpop.f32.mrf.mxu0
  %v2517 = vadd.f32 %v2121, %v2516
  %2518 = vdwg.mxu0
  %v2520 = vsel %vm513, %v2279, 0
  %v2523 = vsel %vm513, %v2359, 0
  %2525 = vmatpush.xpose.msra.mxu0 0.0
  %2526 = vmatpush.xpose.msra.mxu0 0.0
  %2527 = vmatpush.xpose.msra.mxu0 0.0
  %2528 = vmatpush.xpose.msra.mxu0 0.0
  %2529 = vmatpush.xpose.msra.mxu0 0.0
  %2530 = vmatpush.xpose.msra.mxu0 0.0
  %2531 = vmatpush.xpose.msra.mxu0 0.0
  %2532 = vmatpush.xpose.msra.mxu0 0.0
  %2533 = vmatpush.xpose.msra.mxu0 0.0
  %2534 = vmatpush.xpose.msra.mxu0 0.0
  %2535 = vmatpush.xpose.msra.mxu0 0.0
  %2536 = vmatpush.xpose.msra.mxu0 0.0
  %2537 = vmatpush.xpose.msra.mxu0 0.0
  %2538 = vmatpush.xpose.msra.mxu0 0.0
  %2539 = vmatpush.xpose.msra.mxu0 0.0
  %2540 = vmatpush.xpose.msra.mxu0 %v2523
  %2541 = vmatmul.f32.gmra.mxu0 %v2520
  %v2542 = vpop.f32.mrf.mxu0
  %v2543 = vadd.f32 %v2122, %v2542
  %2544 = vdwg.mxu0
  %vm2545 = vcmask 9216
  %v2546 = vsel %vm2545, %v2465, -inf
  %2547 = vmax.xlane.f32.xlu0 %v2546
  %v2548 = vpop.xlane.xlu0 %2547
  %v2549 = vsel %vm2545, %v2491, -inf
  %2550 = vmax.xlane.f32.xlu0 %v2549
  %v2551 = vpop.xlane.xlu0 %2550
  %v2552 = vsel %vm2545, %v2517, -inf
  %2553 = vmax.xlane.f32.xlu0 %v2552
  %v2554 = vpop.xlane.xlu0 %2553
  %v2555 = vsel %vm2545, %v2543, -inf
  %2556 = vmax.xlane.f32.xlu0 %v2555
  %v2557 = vpop.xlane.xlu0 %2556
  %v2558 = vsub.f32 %v2465, %v2548
  %v2559 = vsub.f32 %v2491, %v2551
  %v2560 = vsub.f32 %v2517, %v2554
  %v2561 = vsub.f32 %v2543, %v2557
  %v2562 = vmul.f32 %v2558, 1.442695
  %v2563 = vpow.pop %v2562
  %v2564 = vmul.f32 %v2559, 1.442695
  %v2565 = vpow.pop %v2564
  %v2566 = vmul.f32 %v2560, 1.442695
  %v2567 = vpow.pop %v2566
  %v2568 = vmul.f32 %v2561, 1.442695
  %v2569 = vpow.pop %v2568
  %v2570 = vsel %vm2545, %v2563, 0.0
  %2571 = vadd.xlane.f32.xlu0 %v2570
  %v2572 = vpop.xlane.xlu0 %2571
  %v2573 = vsel %vm2545, %v2565, 0.0
  %2574 = vadd.xlane.f32.xlu0 %v2573
  %v2575 = vpop.xlane.xlu0 %2574
  %v2576 = vsel %vm2545, %v2567, 0.0
  %2577 = vadd.xlane.f32.xlu0 %v2576
  %v2578 = vpop.xlane.xlu0 %2577
  %v2579 = vsel %vm2545, %v2569, 0.0
  %2580 = vadd.xlane.f32.xlu0 %v2579
  %v2581 = vpop.xlane.xlu0 %2580
  %v2582 = vrcp.pop %v2572
  %v2583 = vrcp.pop %v2575
  %v2584 = vrcp.pop %v2578
  %v2585 = vrcp.pop %v2581
  %v2586 = vmul.f32 %v2563, %v2582
  %v2587 = vmul.f32 %v2565, %v2583
  %v2588 = vmul.f32 %v2567, %v2584
  %v2589 = vmul.f32 %v2569, %v2585
  %vm2590 = vcmask 15360
  %v2592 = vsel %vm2590, %v2586, 0
  %vm2594 = vcmask 1041408
  %v2596 = vsel %vm2594, %v2379, 0
  %2598 = vmatpush.msra.mxu0 0.0
  %2599 = vmatpush.msra.mxu0 0.0
  %2600 = vmatpush.msra.mxu0 0.0
  %2601 = vmatpush.msra.mxu0 0.0
  %2602 = vmatpush.msra.mxu0 0.0
  %2603 = vmatpush.msra.mxu0 0.0
  %2604 = vmatpush.msra.mxu0 0.0
  %2605 = vmatpush.msra.mxu0 0.0
  %2606 = vmatpush.msra.mxu0 0.0
  %2607 = vmatpush.msra.mxu0 0.0
  %2608 = vmatpush.msra.mxu0 0.0
  %2609 = vmatpush.msra.mxu0 0.0
  %2610 = vmatpush.msra.mxu0 0.0
  %2611 = vmatpush.msra.mxu0 0.0
  %2612 = vmatpush.msra.mxu0 0.0
  %2613 = vmatpush.msra.mxu0 %v2596
  %2614 = vmatmul.f32.gmra.mxu0 %v2592
  %v2615 = vpop.f32.mrf.mxu0
  %v2616 = vadd.f32 0.0, %v2615
  %2617 = vdwg.mxu0
  %v2619 = vsel %vm2590, %v2587, 0
  %v2622 = vsel %vm2594, %v2399, 0
  %2624 = vmatpush.msra.mxu0 0.0
  %2625 = vmatpush.msra.mxu0 0.0
  %2626 = vmatpush.msra.mxu0 0.0
  %2627 = vmatpush.msra.mxu0 0.0
  %2628 = vmatpush.msra.mxu0 0.0
  %2629 = vmatpush.msra.mxu0 0.0
  %2630 = vmatpush.msra.mxu0 0.0
  %2631 = vmatpush.msra.mxu0 0.0
  %2632 = vmatpush.msra.mxu0 0.0
  %2633 = vmatpush.msra.mxu0 0.0
  %2634 = vmatpush.msra.mxu0 0.0
  %2635 = vmatpush.msra.mxu0 0.0
  %2636 = vmatpush.msra.mxu0 0.0
  %2637 = vmatpush.msra.mxu0 0.0
  %2638 = vmatpush.msra.mxu0 0.0
  %2639 = vmatpush.msra.mxu0 %v2622
  %2640 = vmatmul.f32.gmra.mxu0 %v2619
  %v2641 = vpop.f32.mrf.mxu0
  %v2642 = vadd.f32 0.0, %v2641
  %2643 = vdwg.mxu0
  %v2645 = vsel %vm2590, %v2588, 0
  %v2648 = vsel %vm2594, %v2419, 0
  %2650 = vmatpush.msra.mxu0 0.0
  %2651 = vmatpush.msra.mxu0 0.0
  %2652 = vmatpush.msra.mxu0 0.0
  %2653 = vmatpush.msra.mxu0 0.0
  %2654 = vmatpush.msra.mxu0 0.0
  %2655 = vmatpush.msra.mxu0 0.0
  %2656 = vmatpush.msra.mxu0 0.0
  %2657 = vmatpush.msra.mxu0 0.0
  %2658 = vmatpush.msra.mxu0 0.0
  %2659 = vmatpush.msra.mxu0 0.0
  %2660 = vmatpush.msra.mxu0 0.0
  %2661 = vmatpush.msra.mxu0 0.0
  %2662 = vmatpush.msra.mxu0 0.0
  %2663 = vmatpush.msra.mxu0 0.0
  %2664 = vmatpush.msra.mxu0 0.0
  %2665 = vmatpush.msra.mxu0 %v2648
  %2666 = vmatmul.f32.gmra.mxu0 %v2645
  %v2667 = vpop.f32.mrf.mxu0
  %v2668 = vadd.f32 0.0, %v2667
  %2669 = vdwg.mxu0
  %v2671 = vsel %vm2590, %v2589, 0
  %v2674 = vsel %vm2594, %v2439, 0
  %2676 = vmatpush.msra.mxu0 0.0
  %2677 = vmatpush.msra.mxu0 0.0
  %2678 = vmatpush.msra.mxu0 0.0
  %2679 = vmatpush.msra.mxu0 0.0
  %2680 = vmatpush.msra.mxu0 0.0
  %2681 = vmatpush.msra.mxu0 0.0
  %2682 = vmatpush.msra.mxu0 0.0
  %2683 = vmatpush.msra.mxu0 0.0
  %2684 = vmatpush.msra.mxu0 0.0
  %2685 = vmatpush.msra.mxu0 0.0
  %2686 = vmatpush.msra.mxu0 0.0
  %2687 = vmatpush.msra.mxu0 0.0
  %2688 = vmatpush.msra.mxu0 0.0
  %2689 = vmatpush.msra.mxu0 0.0
  %2690 = vmatpush.msra.mxu0 0.0
  %2691 = vmatpush.msra.mxu0 %v2674
  %2692 = vmatmul.f32.gmra.mxu0 %v2671
  %v2693 = vpop.f32.mrf.mxu0
  %v2694 = vadd.f32 0.0, %v2693
  %2695 = vdwg.mxu0
  %v2697 = vsel %vm513, %v2616, 0
  %2699 = vmatpush.msra.mxu0 0.0
  %2700 = vmatpush.msra.mxu0 0.0
  %2701 = vmatpush.msra.mxu0 0.0
  %2702 = vmatpush.msra.mxu0 0.0
  %2703 = vmatpush.msra.mxu0 0.0
  %2704 = vmatpush.msra.mxu0 0.0
  %2705 = vmatpush.msra.mxu0 0.0
  %2706 = vmatpush.msra.mxu0 0.0
  %2707 = vmatpush.msra.mxu0 0.0
  %2708 = vmatpush.msra.mxu0 0.0
  %2709 = vmatpush.msra.mxu0 0.0
  %2710 = vmatpush.msra.mxu0 0.0
  %2711 = vmatpush.msra.mxu0 0.0
  %2712 = vmatpush.msra.mxu0 0.0
  %2713 = vmatpush.msra.mxu0 0.0
  %2714 = vmatpush.msra.mxu0 %v2194
  %2715 = vmatmul.f32.gmra.mxu0 %v2697
  %v2716 = vpop.f32.mrf.mxu0
  %v2717 = vadd.f32 0.0, %v2716
  %2718 = vdwg.mxu0
  %v2720 = vsel %vm513, %v2642, 0
  %2722 = vmatpush.msra.mxu0 0.0
  %2723 = vmatpush.msra.mxu0 0.0
  %2724 = vmatpush.msra.mxu0 0.0
  %2725 = vmatpush.msra.mxu0 0.0
  %2726 = vmatpush.msra.mxu0 0.0
  %2727 = vmatpush.msra.mxu0 0.0
  %2728 = vmatpush.msra.mxu0 0.0
  %2729 = vmatpush.msra.mxu0 0.0
  %2730 = vmatpush.msra.mxu0 0.0
  %2731 = vmatpush.msra.mxu0 0.0
  %2732 = vmatpush.msra.mxu0 0.0
  %2733 = vmatpush.msra.mxu0 0.0
  %2734 = vmatpush.msra.mxu0 0.0
  %2735 = vmatpush.msra.mxu0 0.0
  %2736 = vmatpush.msra.mxu0 0.0
  %2737 = vmatpush.msra.mxu0 %v2195
  %2738 = vmatmul.f32.gmra.mxu0 %v2720
  %v2739 = vpop.f32.mrf.mxu0
  %v2740 = vadd.f32 0.0, %v2739
  %2741 = vdwg.mxu0
  %v2743 = vsel %vm513, %v2668, 0
  %2745 = vmatpush.msra.mxu0 0.0
  %2746 = vmatpush.msra.mxu0 0.0
  %2747 = vmatpush.msra.mxu0 0.0
  %2748 = vmatpush.msra.mxu0 0.0
  %2749 = vmatpush.msra.mxu0 0.0
  %2750 = vmatpush.msra.mxu0 0.0
  %2751 = vmatpush.msra.mxu0 0.0
  %2752 = vmatpush.msra.mxu0 0.0
  %2753 = vmatpush.msra.mxu0 0.0
  %2754 = vmatpush.msra.mxu0 0.0
  %2755 = vmatpush.msra.mxu0 0.0
  %2756 = vmatpush.msra.mxu0 0.0
  %2757 = vmatpush.msra.mxu0 0.0
  %2758 = vmatpush.msra.mxu0 0.0
  %2759 = vmatpush.msra.mxu0 0.0
  %2760 = vmatpush.msra.mxu0 %v2196
  %2761 = vmatmul.f32.gmra.mxu0 %v2743
  %v2762 = vpop.f32.mrf.mxu0
  %v2763 = vadd.f32 0.0, %v2762
  %2764 = vdwg.mxu0
  %v2766 = vsel %vm513, %v2694, 0
  %2768 = vmatpush.msra.mxu0 0.0
  %2769 = vmatpush.msra.mxu0 0.0
  %2770 = vmatpush.msra.mxu0 0.0
  %2771 = vmatpush.msra.mxu0 0.0
  %2772 = vmatpush.msra.mxu0 0.0
  %2773 = vmatpush.msra.mxu0 0.0
  %2774 = vmatpush.msra.mxu0 0.0
  %2775 = vmatpush.msra.mxu0 0.0
  %2776 = vmatpush.msra.mxu0 0.0
  %2777 = vmatpush.msra.mxu0 0.0
  %2778 = vmatpush.msra.mxu0 0.0
  %2779 = vmatpush.msra.mxu0 0.0
  %2780 = vmatpush.msra.mxu0 0.0
  %2781 = vmatpush.msra.mxu0 0.0
  %2782 = vmatpush.msra.mxu0 0.0
  %2783 = vmatpush.msra.mxu0 %v2197
  %2784 = vmatmul.f32.gmra.mxu0 %v2766
  %v2785 = vpop.f32.mrf.mxu0
  %v2786 = vadd.f32 0.0, %v2785
  %2787 = vdwg.mxu0
  %v2788 = vsel %vm2125, %v2717, 0.0
  %v2789 = vsel %vm2125, %v2740, 0.0
  %v2790 = vadd.f32 %v2788, %v2789
  %v2791 = vsel %vm2125, %v2763, 0.0
  %v2792 = vadd.f32 %v2790, %v2791
  %v2793 = vsel %vm2125, %v2786, 0.0
  %v2794 = vadd.f32 %v2792, %v2793
  %v2795 = vadd.f32 %v2118, %v2794
  %v2796 = vld [vmem:[%s41] sm:$0x1]
  %v2797 = vmul.f32 %v2795, %v2795
  %v2798 = vsel %vm2125, %v2797, 0.0
  %2799 = vadd.xlane.f32.xlu0 %v2798
  %v2800 = vpop.xlane.xlu0 %2799
  %v2801 = vmul.f32 %v2800, %v147
  %v2802 = vadd.f32 %v2801, 1e-06
  %v2803 = vrsqrt.pop %v2802
  %v2804 = vmul.f32 %v2803, %v2802
  %v2805 = vmul.f32 %v2804, %v2803
  %v2806 = vmul.f32 0.5, %v2805
  %v2807 = vsub.f32 1.5, %v2806
  %v2808 = vmul.f32 %v2803, %v2807
  %vm2809 = vweird.f32 %v2802
  %vm2810 = vweird.f32 %v2803
  %vm2811 = vmor %vm2809, %vm2810
  %v2812 = vsel %vm2811, %v2803, %v2808
  %v2813 = vmul.f32 %v2795, %v2812
  %v2815 = vperm.slane %v2796, 0
  %v2817 = vmul.f32 %v2813, %v2815
  %v2818 = vld [vmem:[%s43] sm:$0xff]
  %v2819 = vld [vmem:[%s43 + $0x8] sm:$0xff]
  %v2820 = vld [vmem:[%s43 + $0x10] sm:$0xff]
  %v2821 = vld [vmem:[%s43 + $0x18] sm:$0xff]
  %v2822 = vld [vmem:[%s43 + $0x20] sm:$0xff]
  %v2823 = vld [vmem:[%s43 + $0x28] sm:$0xff]
  %v2824 = vld [vmem:[%s43 + $0x30] sm:$0xff]
  %v2825 = vld [vmem:[%s43 + $0x38] sm:$0xff]
  %v2826 = vld [vmem:[%s43 + $0x40] sm:$0xff]
  %v2827 = vld [vmem:[%s43 + $0x48] sm:$0xff]
  %v2828 = vld [vmem:[%s43 + $0x50] sm:$0xff]
  %v2829 = vld [vmem:[%s43 + $0x58] sm:$0xff]
  %v2830 = vld [vmem:[%s43 + $0x60] sm:$0xff]
  %v2831 = vld [vmem:[%s43 + $0x68] sm:$0xff]
  %v2832 = vld [vmem:[%s43 + $0x70] sm:$0xff]
  %v2833 = vld [vmem:[%s43 + $0x78] sm:$0xff]
  %v2834 = vld [vmem:[%s45] sm:$0xff]
  %v2835 = vld [vmem:[%s45 + $0x8] sm:$0xff]
  %v2836 = vld [vmem:[%s45 + $0x10] sm:$0xff]
  %v2837 = vld [vmem:[%s45 + $0x18] sm:$0xff]
  %v2838 = vld [vmem:[%s45 + $0x20] sm:$0xff]
  %v2839 = vld [vmem:[%s45 + $0x28] sm:$0xff]
  %v2840 = vld [vmem:[%s45 + $0x30] sm:$0xff]
  %v2841 = vld [vmem:[%s45 + $0x38] sm:$0xff]
  %v2842 = vld [vmem:[%s45 + $0x40] sm:$0xff]
  %v2843 = vld [vmem:[%s45 + $0x48] sm:$0xff]
  %v2844 = vld [vmem:[%s45 + $0x50] sm:$0xff]
  %v2845 = vld [vmem:[%s45 + $0x58] sm:$0xff]
  %v2846 = vld [vmem:[%s45 + $0x60] sm:$0xff]
  %v2847 = vld [vmem:[%s45 + $0x68] sm:$0xff]
  %v2848 = vld [vmem:[%s45 + $0x70] sm:$0xff]
  %v2849 = vld [vmem:[%s45 + $0x78] sm:$0xff]
  %v2850 = vld [vmem:[%s47] sm:$0xff]
  %v2851 = vld [vmem:[%s47 + $0x8] sm:$0xff]
  %v2852 = vld [vmem:[%s47 + $0x10] sm:$0xff]
  %v2853 = vld [vmem:[%s47 + $0x18] sm:$0xff]
  %v2854 = vld [vmem:[%s47 + $0x20] sm:$0xff]
  %v2855 = vld [vmem:[%s47 + $0x28] sm:$0xff]
  %v2856 = vld [vmem:[%s47 + $0x30] sm:$0xff]
  %v2857 = vld [vmem:[%s47 + $0x38] sm:$0xff]
  %v2858 = vld [vmem:[%s47 + $0x40] sm:$0xff]
  %v2859 = vld [vmem:[%s47 + $0x48] sm:$0xff]
  %v2860 = vld [vmem:[%s47 + $0x50] sm:$0xff]
  %v2861 = vld [vmem:[%s47 + $0x58] sm:$0xff]
  %v2862 = vld [vmem:[%s47 + $0x60] sm:$0xff]
  %v2863 = vld [vmem:[%s47 + $0x68] sm:$0xff]
  %v2864 = vld [vmem:[%s47 + $0x70] sm:$0xff]
  %v2865 = vld [vmem:[%s47 + $0x78] sm:$0xff]
  %v2866 = vld [vmem:[%s49] sm:$0xff]
  %v2867 = vld [vmem:[%s49 + $0x8] sm:$0xff]
  %v2868 = vld [vmem:[%s49 + $0x10] sm:$0xff]
  %v2869 = vld [vmem:[%s49 + $0x18] sm:$0xff]
  %v2871 = vsel %vm134, %v2817, 0
  %2873 = vmatpush.msra.mxu0 0.0
  %2874 = vmatpush.msra.mxu0 0.0
  %2875 = vmatpush.msra.mxu0 0.0
  %2876 = vmatpush.msra.mxu0 0.0
  %2877 = vmatpush.msra.mxu0 0.0
  %2878 = vmatpush.msra.mxu0 0.0
  %2879 = vmatpush.msra.mxu0 0.0
  %2880 = vmatpush.msra.mxu0 0.0
  %2881 = vmatpush.msra.mxu0 0.0
  %2882 = vmatpush.msra.mxu0 0.0
  %2883 = vmatpush.msra.mxu0 0.0
  %2884 = vmatpush.msra.mxu0 0.0
  %2885 = vmatpush.msra.mxu0 %v2821
  %2886 = vmatpush.msra.mxu0 %v2820
  %2887 = vmatpush.msra.mxu0 %v2819
  %2888 = vmatpush.msra.mxu0 %v2818
  %2889 = vmatmul.f32.gmra.mxu0 %v2871
  %v2890 = vpop.f32.mrf.mxu0
  %v2891 = vadd.f32 0.0, %v2890
  %2892 = vdwg.mxu0
  %2893 = vmatpush.msra.mxu0 0.0
  %2894 = vmatpush.msra.mxu0 0.0
  %2895 = vmatpush.msra.mxu0 0.0
  %2896 = vmatpush.msra.mxu0 0.0
  %2897 = vmatpush.msra.mxu0 0.0
  %2898 = vmatpush.msra.mxu0 0.0
  %2899 = vmatpush.msra.mxu0 0.0
  %2900 = vmatpush.msra.mxu0 0.0
  %2901 = vmatpush.msra.mxu0 0.0
  %2902 = vmatpush.msra.mxu0 0.0
  %2903 = vmatpush.msra.mxu0 0.0
  %2904 = vmatpush.msra.mxu0 0.0
  %2905 = vmatpush.msra.mxu0 %v2825
  %2906 = vmatpush.msra.mxu0 %v2824
  %2907 = vmatpush.msra.mxu0 %v2823
  %2908 = vmatpush.msra.mxu0 %v2822
  %2909 = vmatmul.f32.gmra.mxu0 %v2871
  %v2910 = vpop.f32.mrf.mxu0
  %v2911 = vadd.f32 0.0, %v2910
  %2912 = vdwg.mxu0
  %2913 = vmatpush.msra.mxu0 0.0
  %2914 = vmatpush.msra.mxu0 0.0
  %2915 = vmatpush.msra.mxu0 0.0
  %2916 = vmatpush.msra.mxu0 0.0
  %2917 = vmatpush.msra.mxu0 0.0
  %2918 = vmatpush.msra.mxu0 0.0
  %2919 = vmatpush.msra.mxu0 0.0
  %2920 = vmatpush.msra.mxu0 0.0
  %2921 = vmatpush.msra.mxu0 0.0
  %2922 = vmatpush.msra.mxu0 0.0
  %2923 = vmatpush.msra.mxu0 0.0
  %2924 = vmatpush.msra.mxu0 0.0
  %2925 = vmatpush.msra.mxu0 %v2829
  %2926 = vmatpush.msra.mxu0 %v2828
  %2927 = vmatpush.msra.mxu0 %v2827
  %2928 = vmatpush.msra.mxu0 %v2826
  %2929 = vmatmul.f32.gmra.mxu0 %v2871
  %v2930 = vpop.f32.mrf.mxu0
  %v2931 = vadd.f32 0.0, %v2930
  %2932 = vdwg.mxu0
  %2933 = vmatpush.msra.mxu0 0.0
  %2934 = vmatpush.msra.mxu0 0.0
  %2935 = vmatpush.msra.mxu0 0.0
  %2936 = vmatpush.msra.mxu0 0.0
  %2937 = vmatpush.msra.mxu0 0.0
  %2938 = vmatpush.msra.mxu0 0.0
  %2939 = vmatpush.msra.mxu0 0.0
  %2940 = vmatpush.msra.mxu0 0.0
  %2941 = vmatpush.msra.mxu0 0.0
  %2942 = vmatpush.msra.mxu0 0.0
  %2943 = vmatpush.msra.mxu0 0.0
  %2944 = vmatpush.msra.mxu0 0.0
  %2945 = vmatpush.msra.mxu0 %v2833
  %2946 = vmatpush.msra.mxu0 %v2832
  %2947 = vmatpush.msra.mxu0 %v2831
  %2948 = vmatpush.msra.mxu0 %v2830
  %2949 = vmatmul.f32.gmra.mxu0 %v2871
  %v2950 = vpop.f32.mrf.mxu0
  %v2951 = vadd.f32 0.0, %v2950
  %2952 = vdwg.mxu0
  %v2954 = vsel %vm134, %v2116, 0
  %v2957 = vsel %vm134, %v2117, 0
  %2959 = vmatpush.msra.mxu0 0.0
  %2960 = vmatpush.msra.mxu0 0.0
  %2961 = vmatpush.msra.mxu0 0.0
  %2962 = vmatpush.msra.mxu0 0.0
  %2963 = vmatpush.msra.mxu0 0.0
  %2964 = vmatpush.msra.mxu0 0.0
  %2965 = vmatpush.msra.mxu0 0.0
  %2966 = vmatpush.msra.mxu0 0.0
  %2967 = vmatpush.msra.mxu0 0.0
  %2968 = vmatpush.msra.mxu0 0.0
  %2969 = vmatpush.msra.mxu0 0.0
  %2970 = vmatpush.msra.mxu0 0.0
  %2971 = vmatpush.msra.mxu0 %v2837
  %2972 = vmatpush.msra.mxu0 %v2836
  %2973 = vmatpush.msra.mxu0 %v2835
  %2974 = vmatpush.msra.mxu0 %v2834
  %2975 = vmatmul.f32.gmra.mxu0 %v2954
  %v2976 = vpop.f32.mrf.mxu0
  %v2977 = vadd.f32 0.0, %v2976
  %2978 = vmatmul.f32.gmra.mxu0 %v2957
  %v2979 = vpop.f32.mrf.mxu0
  %v2980 = vadd.f32 0.0, %v2979
  %2981 = vdwg.mxu0
  %2982 = vmatpush.msra.mxu0 0.0
  %2983 = vmatpush.msra.mxu0 0.0
  %2984 = vmatpush.msra.mxu0 0.0
  %2985 = vmatpush.msra.mxu0 0.0
  %2986 = vmatpush.msra.mxu0 0.0
  %2987 = vmatpush.msra.mxu0 0.0
  %2988 = vmatpush.msra.mxu0 0.0
  %2989 = vmatpush.msra.mxu0 0.0
  %2990 = vmatpush.msra.mxu0 0.0
  %2991 = vmatpush.msra.mxu0 0.0
  %2992 = vmatpush.msra.mxu0 0.0
  %2993 = vmatpush.msra.mxu0 0.0
  %2994 = vmatpush.msra.mxu0 %v2841
  %2995 = vmatpush.msra.mxu0 %v2840
  %2996 = vmatpush.msra.mxu0 %v2839
  %2997 = vmatpush.msra.mxu0 %v2838
  %2998 = vmatmul.f32.gmra.mxu0 %v2954
  %v2999 = vpop.f32.mrf.mxu0
  %v3000 = vadd.f32 0.0, %v2999
  %3001 = vmatmul.f32.gmra.mxu0 %v2957
  %v3002 = vpop.f32.mrf.mxu0
  %v3003 = vadd.f32 0.0, %v3002
  %3004 = vdwg.mxu0
  %3005 = vmatpush.msra.mxu0 0.0
  %3006 = vmatpush.msra.mxu0 0.0
  %3007 = vmatpush.msra.mxu0 0.0
  %3008 = vmatpush.msra.mxu0 0.0
  %3009 = vmatpush.msra.mxu0 0.0
  %3010 = vmatpush.msra.mxu0 0.0
  %3011 = vmatpush.msra.mxu0 0.0
  %3012 = vmatpush.msra.mxu0 0.0
  %3013 = vmatpush.msra.mxu0 0.0
  %3014 = vmatpush.msra.mxu0 0.0
  %3015 = vmatpush.msra.mxu0 0.0
  %3016 = vmatpush.msra.mxu0 0.0
  %3017 = vmatpush.msra.mxu0 %v2845
  %3018 = vmatpush.msra.mxu0 %v2844
  %3019 = vmatpush.msra.mxu0 %v2843
  %3020 = vmatpush.msra.mxu0 %v2842
  %3021 = vmatmul.f32.gmra.mxu0 %v2954
  %v3022 = vpop.f32.mrf.mxu0
  %v3023 = vadd.f32 0.0, %v3022
  %3024 = vmatmul.f32.gmra.mxu0 %v2957
  %v3025 = vpop.f32.mrf.mxu0
  %v3026 = vadd.f32 0.0, %v3025
  %3027 = vdwg.mxu0
  %3028 = vmatpush.msra.mxu0 0.0
  %3029 = vmatpush.msra.mxu0 0.0
  %3030 = vmatpush.msra.mxu0 0.0
  %3031 = vmatpush.msra.mxu0 0.0
  %3032 = vmatpush.msra.mxu0 0.0
  %3033 = vmatpush.msra.mxu0 0.0
  %3034 = vmatpush.msra.mxu0 0.0
  %3035 = vmatpush.msra.mxu0 0.0
  %3036 = vmatpush.msra.mxu0 0.0
  %3037 = vmatpush.msra.mxu0 0.0
  %3038 = vmatpush.msra.mxu0 0.0
  %3039 = vmatpush.msra.mxu0 0.0
  %3040 = vmatpush.msra.mxu0 %v2849
  %3041 = vmatpush.msra.mxu0 %v2848
  %3042 = vmatpush.msra.mxu0 %v2847
  %3043 = vmatpush.msra.mxu0 %v2846
  %3044 = vmatmul.f32.gmra.mxu0 %v2954
  %v3045 = vpop.f32.mrf.mxu0
  %v3046 = vadd.f32 0.0, %v3045
  %3047 = vmatmul.f32.gmra.mxu0 %v2957
  %v3048 = vpop.f32.mrf.mxu0
  %v3049 = vadd.f32 0.0, %v3048
  %3050 = vdwg.mxu0
  %3051 = vmatpush.msra.mxu0 0.0
  %3052 = vmatpush.msra.mxu0 0.0
  %3053 = vmatpush.msra.mxu0 0.0
  %3054 = vmatpush.msra.mxu0 0.0
  %3055 = vmatpush.msra.mxu0 0.0
  %3056 = vmatpush.msra.mxu0 0.0
  %3057 = vmatpush.msra.mxu0 0.0
  %3058 = vmatpush.msra.mxu0 0.0
  %3059 = vmatpush.msra.mxu0 0.0
  %3060 = vmatpush.msra.mxu0 0.0
  %3061 = vmatpush.msra.mxu0 0.0
  %3062 = vmatpush.msra.mxu0 0.0
  %3063 = vmatpush.msra.mxu0 %v2853
  %3064 = vmatpush.msra.mxu0 %v2852
  %3065 = vmatpush.msra.mxu0 %v2851
  %3066 = vmatpush.msra.mxu0 %v2850
  %3067 = vmatmul.f32.gmra.mxu0 %v2954
  %v3068 = vpop.f32.mrf.mxu0
  %v3069 = vadd.f32 0.0, %v3068
  %3070 = vmatmul.f32.gmra.mxu0 %v2957
  %v3071 = vpop.f32.mrf.mxu0
  %v3072 = vadd.f32 0.0, %v3071
  %3073 = vdwg.mxu0
  %3074 = vmatpush.msra.mxu0 0.0
  %3075 = vmatpush.msra.mxu0 0.0
  %3076 = vmatpush.msra.mxu0 0.0
  %3077 = vmatpush.msra.mxu0 0.0
  %3078 = vmatpush.msra.mxu0 0.0
  %3079 = vmatpush.msra.mxu0 0.0
  %3080 = vmatpush.msra.mxu0 0.0
  %3081 = vmatpush.msra.mxu0 0.0
  %3082 = vmatpush.msra.mxu0 0.0
  %3083 = vmatpush.msra.mxu0 0.0
  %3084 = vmatpush.msra.mxu0 0.0
  %3085 = vmatpush.msra.mxu0 0.0
  %3086 = vmatpush.msra.mxu0 %v2857
  %3087 = vmatpush.msra.mxu0 %v2856
  %3088 = vmatpush.msra.mxu0 %v2855
  %3089 = vmatpush.msra.mxu0 %v2854
  %3090 = vmatmul.f32.gmra.mxu0 %v2954
  %v3091 = vpop.f32.mrf.mxu0
  %v3092 = vadd.f32 0.0, %v3091
  %3093 = vmatmul.f32.gmra.mxu0 %v2957
  %v3094 = vpop.f32.mrf.mxu0
  %v3095 = vadd.f32 0.0, %v3094
  %3096 = vdwg.mxu0
  %3097 = vmatpush.msra.mxu0 0.0
  %3098 = vmatpush.msra.mxu0 0.0
  %3099 = vmatpush.msra.mxu0 0.0
  %3100 = vmatpush.msra.mxu0 0.0
  %3101 = vmatpush.msra.mxu0 0.0
  %3102 = vmatpush.msra.mxu0 0.0
  %3103 = vmatpush.msra.mxu0 0.0
  %3104 = vmatpush.msra.mxu0 0.0
  %3105 = vmatpush.msra.mxu0 0.0
  %3106 = vmatpush.msra.mxu0 0.0
  %3107 = vmatpush.msra.mxu0 0.0
  %3108 = vmatpush.msra.mxu0 0.0
  %3109 = vmatpush.msra.mxu0 %v2861
  %3110 = vmatpush.msra.mxu0 %v2860
  %3111 = vmatpush.msra.mxu0 %v2859
  %3112 = vmatpush.msra.mxu0 %v2858
  %3113 = vmatmul.f32.gmra.mxu0 %v2954
  %v3114 = vpop.f32.mrf.mxu0
  %v3115 = vadd.f32 0.0, %v3114
  %3116 = vmatmul.f32.gmra.mxu0 %v2957
  %v3117 = vpop.f32.mrf.mxu0
  %v3118 = vadd.f32 0.0, %v3117
  %3119 = vdwg.mxu0
  %3120 = vmatpush.msra.mxu0 0.0
  %3121 = vmatpush.msra.mxu0 0.0
  %3122 = vmatpush.msra.mxu0 0.0
  %3123 = vmatpush.msra.mxu0 0.0
  %3124 = vmatpush.msra.mxu0 0.0
  %3125 = vmatpush.msra.mxu0 0.0
  %3126 = vmatpush.msra.mxu0 0.0
  %3127 = vmatpush.msra.mxu0 0.0
  %3128 = vmatpush.msra.mxu0 0.0
  %3129 = vmatpush.msra.mxu0 0.0
  %3130 = vmatpush.msra.mxu0 0.0
  %3131 = vmatpush.msra.mxu0 0.0
  %3132 = vmatpush.msra.mxu0 %v2865
  %3133 = vmatpush.msra.mxu0 %v2864
  %3134 = vmatpush.msra.mxu0 %v2863
  %3135 = vmatpush.msra.mxu0 %v2862
  %3136 = vmatmul.f32.gmra.mxu0 %v2954
  %v3137 = vpop.f32.mrf.mxu0
  %v3138 = vadd.f32 0.0, %v3137
  %3139 = vmatmul.f32.gmra.mxu0 %v2957
  %v3140 = vpop.f32.mrf.mxu0
  %v3141 = vadd.f32 0.0, %v3140
  %3142 = vdwg.mxu0
  %v3144 = vsel %vm513, %v2891, 0
  %v3147 = vsel %vm513, %v2977, 0
  %v3150 = vsel %vm513, %v2980, 0
  %3152 = vmatpush.xpose.msra.mxu0 0.0
  %3153 = vmatpush.xpose.msra.mxu0 0.0
  %3154 = vmatpush.xpose.msra.mxu0 0.0
  %3155 = vmatpush.xpose.msra.mxu0 0.0
  %3156 = vmatpush.xpose.msra.mxu0 0.0
  %3157 = vmatpush.xpose.msra.mxu0 0.0
  %3158 = vmatpush.xpose.msra.mxu0 0.0
  %3159 = vmatpush.xpose.msra.mxu0 0.0
  %3160 = vmatpush.xpose.msra.mxu0 0.0
  %3161 = vmatpush.xpose.msra.mxu0 0.0
  %3162 = vmatpush.xpose.msra.mxu0 0.0
  %3163 = vmatpush.xpose.msra.mxu0 0.0
  %3164 = vmatpush.xpose.msra.mxu0 0.0
  %3165 = vmatpush.xpose.msra.mxu0 0.0
  %3166 = vmatpush.xpose.msra.mxu0 %v3150
  %3167 = vmatpush.xpose.msra.mxu0 %v3147
  %3168 = vmatmul.f32.gmra.mxu0 %v3144
  %v3169 = vpop.f32.mrf.mxu0
  %v3170 = vadd.f32 0.0, %v3169
  %3171 = vdwg.mxu0
  %v3173 = vsel %vm513, %v2911, 0
  %v3176 = vsel %vm513, %v3000, 0
  %v3179 = vsel %vm513, %v3003, 0
  %3181 = vmatpush.xpose.msra.mxu0 0.0
  %3182 = vmatpush.xpose.msra.mxu0 0.0
  %3183 = vmatpush.xpose.msra.mxu0 0.0
  %3184 = vmatpush.xpose.msra.mxu0 0.0
  %3185 = vmatpush.xpose.msra.mxu0 0.0
  %3186 = vmatpush.xpose.msra.mxu0 0.0
  %3187 = vmatpush.xpose.msra.mxu0 0.0
  %3188 = vmatpush.xpose.msra.mxu0 0.0
  %3189 = vmatpush.xpose.msra.mxu0 0.0
  %3190 = vmatpush.xpose.msra.mxu0 0.0
  %3191 = vmatpush.xpose.msra.mxu0 0.0
  %3192 = vmatpush.xpose.msra.mxu0 0.0
  %3193 = vmatpush.xpose.msra.mxu0 0.0
  %3194 = vmatpush.xpose.msra.mxu0 0.0
  %3195 = vmatpush.xpose.msra.mxu0 %v3179
  %3196 = vmatpush.xpose.msra.mxu0 %v3176
  %3197 = vmatmul.f32.gmra.mxu0 %v3173
  %v3198 = vpop.f32.mrf.mxu0
  %v3199 = vadd.f32 0.0, %v3198
  %3200 = vdwg.mxu0
  %v3202 = vsel %vm513, %v2931, 0
  %v3205 = vsel %vm513, %v3023, 0
  %v3208 = vsel %vm513, %v3026, 0
  %3210 = vmatpush.xpose.msra.mxu0 0.0
  %3211 = vmatpush.xpose.msra.mxu0 0.0
  %3212 = vmatpush.xpose.msra.mxu0 0.0
  %3213 = vmatpush.xpose.msra.mxu0 0.0
  %3214 = vmatpush.xpose.msra.mxu0 0.0
  %3215 = vmatpush.xpose.msra.mxu0 0.0
  %3216 = vmatpush.xpose.msra.mxu0 0.0
  %3217 = vmatpush.xpose.msra.mxu0 0.0
  %3218 = vmatpush.xpose.msra.mxu0 0.0
  %3219 = vmatpush.xpose.msra.mxu0 0.0
  %3220 = vmatpush.xpose.msra.mxu0 0.0
  %3221 = vmatpush.xpose.msra.mxu0 0.0
  %3222 = vmatpush.xpose.msra.mxu0 0.0
  %3223 = vmatpush.xpose.msra.mxu0 0.0
  %3224 = vmatpush.xpose.msra.mxu0 %v3208
  %3225 = vmatpush.xpose.msra.mxu0 %v3205
  %3226 = vmatmul.f32.gmra.mxu0 %v3202
  %v3227 = vpop.f32.mrf.mxu0
  %v3228 = vadd.f32 0.0, %v3227
  %3229 = vdwg.mxu0
  %v3231 = vsel %vm513, %v2951, 0
  %v3234 = vsel %vm513, %v3046, 0
  %v3237 = vsel %vm513, %v3049, 0
  %3239 = vmatpush.xpose.msra.mxu0 0.0
  %3240 = vmatpush.xpose.msra.mxu0 0.0
  %3241 = vmatpush.xpose.msra.mxu0 0.0
  %3242 = vmatpush.xpose.msra.mxu0 0.0
  %3243 = vmatpush.xpose.msra.mxu0 0.0
  %3244 = vmatpush.xpose.msra.mxu0 0.0
  %3245 = vmatpush.xpose.msra.mxu0 0.0
  %3246 = vmatpush.xpose.msra.mxu0 0.0
  %3247 = vmatpush.xpose.msra.mxu0 0.0
  %3248 = vmatpush.xpose.msra.mxu0 0.0
  %3249 = vmatpush.xpose.msra.mxu0 0.0
  %3250 = vmatpush.xpose.msra.mxu0 0.0
  %3251 = vmatpush.xpose.msra.mxu0 0.0
  %3252 = vmatpush.xpose.msra.mxu0 0.0
  %3253 = vmatpush.xpose.msra.mxu0 %v3237
  %3254 = vmatpush.xpose.msra.mxu0 %v3234
  %3255 = vmatmul.f32.gmra.mxu0 %v3231
  %v3256 = vpop.f32.mrf.mxu0
  %v3257 = vadd.f32 0.0, %v3256
  %3258 = vdwg.mxu0
  %vm3259 = vcmask 123904
  %v3260 = vsel %vm3259, %v3170, -inf
  %3261 = vmax.xlane.f32.xlu0 %v3260
  %v3262 = vpop.xlane.xlu0 %3261
  %v3263 = vsel %vm3259, %v3199, -inf
  %3264 = vmax.xlane.f32.xlu0 %v3263
  %v3265 = vpop.xlane.xlu0 %3264
  %v3266 = vsel %vm3259, %v3228, -inf
  %3267 = vmax.xlane.f32.xlu0 %v3266
  %v3268 = vpop.xlane.xlu0 %3267
  %v3269 = vsel %vm3259, %v3257, -inf
  %3270 = vmax.xlane.f32.xlu0 %v3269
  %v3271 = vpop.xlane.xlu0 %3270
  %v3272 = vsub.f32 %v3170, %v3262
  %v3273 = vsub.f32 %v3199, %v3265
  %v3274 = vsub.f32 %v3228, %v3268
  %v3275 = vsub.f32 %v3257, %v3271
  %v3276 = vmul.f32 %v3272, 1.442695
  %v3277 = vpow.pop %v3276
  %v3278 = vmul.f32 %v3273, 1.442695
  %v3279 = vpow.pop %v3278
  %v3280 = vmul.f32 %v3274, 1.442695
  %v3281 = vpow.pop %v3280
  %v3282 = vmul.f32 %v3275, 1.442695
  %v3283 = vpow.pop %v3282
  %v3284 = vsel %vm3259, %v3277, 0.0
  %3285 = vadd.xlane.f32.xlu0 %v3284
  %v3286 = vpop.xlane.xlu0 %3285
  %v3287 = vsel %vm3259, %v3279, 0.0
  %3288 = vadd.xlane.f32.xlu0 %v3287
  %v3289 = vpop.xlane.xlu0 %3288
  %v3290 = vsel %vm3259, %v3281, 0.0
  %3291 = vadd.xlane.f32.xlu0 %v3290
  %v3292 = vpop.xlane.xlu0 %3291
  %v3293 = vsel %vm3259, %v3283, 0.0
  %3294 = vadd.xlane.f32.xlu0 %v3293
  %v3295 = vpop.xlane.xlu0 %3294
  %v3296 = vrcp.pop %v3286
  %v3297 = vrcp.pop %v3289
  %v3298 = vrcp.pop %v3292
  %v3299 = vrcp.pop %v3295
  %v3300 = vmul.f32 %v3277, %v3296
  %v3301 = vmul.f32 %v3279, %v3297
  %v3302 = vmul.f32 %v3281, %v3298
  %v3303 = vmul.f32 %v3283, %v3299
  %v3305 = vsel %vm654, %v3300, 0
  %3307 = vmatpush.msra.mxu0 0.0
  %3308 = vmatpush.msra.mxu0 0.0
  %3309 = vmatpush.msra.mxu0 0.0
  %3310 = vmatpush.msra.mxu0 0.0
  %3311 = vmatpush.msra.mxu0 0.0
  %3312 = vmatpush.msra.mxu0 0.0
  %3313 = vmatpush.msra.mxu0 0.0
  %3314 = vmatpush.msra.mxu0 0.0
  %3315 = vmatpush.msra.mxu0 0.0
  %3316 = vmatpush.msra.mxu0 0.0
  %3317 = vmatpush.msra.mxu0 0.0
  %3318 = vmatpush.msra.mxu0 0.0
  %3319 = vmatpush.msra.mxu0 0.0
  %3320 = vmatpush.msra.mxu0 0.0
  %3321 = vmatpush.msra.mxu0 %v3072
  %3322 = vmatpush.msra.mxu0 %v3069
  %3323 = vmatmul.f32.gmra.mxu0 %v3305
  %v3324 = vpop.f32.mrf.mxu0
  %v3325 = vadd.f32 0.0, %v3324
  %3326 = vdwg.mxu0
  %v3328 = vsel %vm654, %v3301, 0
  %3330 = vmatpush.msra.mxu0 0.0
  %3331 = vmatpush.msra.mxu0 0.0
  %3332 = vmatpush.msra.mxu0 0.0
  %3333 = vmatpush.msra.mxu0 0.0
  %3334 = vmatpush.msra.mxu0 0.0
  %3335 = vmatpush.msra.mxu0 0.0
  %3336 = vmatpush.msra.mxu0 0.0
  %3337 = vmatpush.msra.mxu0 0.0
  %3338 = vmatpush.msra.mxu0 0.0
  %3339 = vmatpush.msra.mxu0 0.0
  %3340 = vmatpush.msra.mxu0 0.0
  %3341 = vmatpush.msra.mxu0 0.0
  %3342 = vmatpush.msra.mxu0 0.0
  %3343 = vmatpush.msra.mxu0 0.0
  %3344 = vmatpush.msra.mxu0 %v3095
  %3345 = vmatpush.msra.mxu0 %v3092
  %3346 = vmatmul.f32.gmra.mxu0 %v3328
  %v3347 = vpop.f32.mrf.mxu0
  %v3348 = vadd.f32 0.0, %v3347
  %3349 = vdwg.mxu0
  %v3351 = vsel %vm654, %v3302, 0
  %3353 = vmatpush.msra.mxu0 0.0
  %3354 = vmatpush.msra.mxu0 0.0
  %3355 = vmatpush.msra.mxu0 0.0
  %3356 = vmatpush.msra.mxu0 0.0
  %3357 = vmatpush.msra.mxu0 0.0
  %3358 = vmatpush.msra.mxu0 0.0
  %3359 = vmatpush.msra.mxu0 0.0
  %3360 = vmatpush.msra.mxu0 0.0
  %3361 = vmatpush.msra.mxu0 0.0
  %3362 = vmatpush.msra.mxu0 0.0
  %3363 = vmatpush.msra.mxu0 0.0
  %3364 = vmatpush.msra.mxu0 0.0
  %3365 = vmatpush.msra.mxu0 0.0
  %3366 = vmatpush.msra.mxu0 0.0
  %3367 = vmatpush.msra.mxu0 %v3118
  %3368 = vmatpush.msra.mxu0 %v3115
  %3369 = vmatmul.f32.gmra.mxu0 %v3351
  %v3370 = vpop.f32.mrf.mxu0
  %v3371 = vadd.f32 0.0, %v3370
  %3372 = vdwg.mxu0
  %v3374 = vsel %vm654, %v3303, 0
  %3376 = vmatpush.msra.mxu0 0.0
  %3377 = vmatpush.msra.mxu0 0.0
  %3378 = vmatpush.msra.mxu0 0.0
  %3379 = vmatpush.msra.mxu0 0.0
  %3380 = vmatpush.msra.mxu0 0.0
  %3381 = vmatpush.msra.mxu0 0.0
  %3382 = vmatpush.msra.mxu0 0.0
  %3383 = vmatpush.msra.mxu0 0.0
  %3384 = vmatpush.msra.mxu0 0.0
  %3385 = vmatpush.msra.mxu0 0.0
  %3386 = vmatpush.msra.mxu0 0.0
  %3387 = vmatpush.msra.mxu0 0.0
  %3388 = vmatpush.msra.mxu0 0.0
  %3389 = vmatpush.msra.mxu0 0.0
  %3390 = vmatpush.msra.mxu0 %v3141
  %3391 = vmatpush.msra.mxu0 %v3138
  %3392 = vmatmul.f32.gmra.mxu0 %v3374
  %v3393 = vpop.f32.mrf.mxu0
  %v3394 = vadd.f32 0.0, %v3393
  %3395 = vdwg.mxu0
  %v3397 = vsel %vm513, %v3325, 0
  %3399 = vmatpush.msra.mxu0 0.0
  %3400 = vmatpush.msra.mxu0 0.0
  %3401 = vmatpush.msra.mxu0 0.0
  %3402 = vmatpush.msra.mxu0 0.0
  %3403 = vmatpush.msra.mxu0 0.0
  %3404 = vmatpush.msra.mxu0 0.0
  %3405 = vmatpush.msra.mxu0 0.0
  %3406 = vmatpush.msra.mxu0 0.0
  %3407 = vmatpush.msra.mxu0 0.0
  %3408 = vmatpush.msra.mxu0 0.0
  %3409 = vmatpush.msra.mxu0 0.0
  %3410 = vmatpush.msra.mxu0 0.0
  %3411 = vmatpush.msra.mxu0 0.0
  %3412 = vmatpush.msra.mxu0 0.0
  %3413 = vmatpush.msra.mxu0 0.0
  %3414 = vmatpush.msra.mxu0 %v2866
  %3415 = vmatmul.f32.gmra.mxu0 %v3397
  %v3416 = vpop.f32.mrf.mxu0
  %v3417 = vadd.f32 0.0, %v3416
  %3418 = vdwg.mxu0
  %v3420 = vsel %vm513, %v3348, 0
  %3422 = vmatpush.msra.mxu0 0.0
  %3423 = vmatpush.msra.mxu0 0.0
  %3424 = vmatpush.msra.mxu0 0.0
  %3425 = vmatpush.msra.mxu0 0.0
  %3426 = vmatpush.msra.mxu0 0.0
  %3427 = vmatpush.msra.mxu0 0.0
  %3428 = vmatpush.msra.mxu0 0.0
  %3429 = vmatpush.msra.mxu0 0.0
  %3430 = vmatpush.msra.mxu0 0.0
  %3431 = vmatpush.msra.mxu0 0.0
  %3432 = vmatpush.msra.mxu0 0.0
  %3433 = vmatpush.msra.mxu0 0.0
  %3434 = vmatpush.msra.mxu0 0.0
  %3435 = vmatpush.msra.mxu0 0.0
  %3436 = vmatpush.msra.mxu0 0.0
  %3437 = vmatpush.msra.mxu0 %v2867
  %3438 = vmatmul.f32.gmra.mxu0 %v3420
  %v3439 = vpop.f32.mrf.mxu0
  %v3440 = vadd.f32 0.0, %v3439
  %3441 = vdwg.mxu0
  %v3443 = vsel %vm513, %v3371, 0
  %3445 = vmatpush.msra.mxu0 0.0
  %3446 = vmatpush.msra.mxu0 0.0
  %3447 = vmatpush.msra.mxu0 0.0
  %3448 = vmatpush.msra.mxu0 0.0
  %3449 = vmatpush.msra.mxu0 0.0
  %3450 = vmatpush.msra.mxu0 0.0
  %3451 = vmatpush.msra.mxu0 0.0
  %3452 = vmatpush.msra.mxu0 0.0
  %3453 = vmatpush.msra.mxu0 0.0
  %3454 = vmatpush.msra.mxu0 0.0
  %3455 = vmatpush.msra.mxu0 0.0
  %3456 = vmatpush.msra.mxu0 0.0
  %3457 = vmatpush.msra.mxu0 0.0
  %3458 = vmatpush.msra.mxu0 0.0
  %3459 = vmatpush.msra.mxu0 0.0
  %3460 = vmatpush.msra.mxu0 %v2868
  %3461 = vmatmul.f32.gmra.mxu0 %v3443
  %v3462 = vpop.f32.mrf.mxu0
  %v3463 = vadd.f32 0.0, %v3462
  %3464 = vdwg.mxu0
  %v3466 = vsel %vm513, %v3394, 0
  %3468 = vmatpush.msra.mxu0 0.0
  %3469 = vmatpush.msra.mxu0 0.0
  %3470 = vmatpush.msra.mxu0 0.0
  %3471 = vmatpush.msra.mxu0 0.0
  %3472 = vmatpush.msra.mxu0 0.0
  %3473 = vmatpush.msra.mxu0 0.0
  %3474 = vmatpush.msra.mxu0 0.0
  %3475 = vmatpush.msra.mxu0 0.0
  %3476 = vmatpush.msra.mxu0 0.0
  %3477 = vmatpush.msra.mxu0 0.0
  %3478 = vmatpush.msra.mxu0 0.0
  %3479 = vmatpush.msra.mxu0 0.0
  %3480 = vmatpush.msra.mxu0 0.0
  %3481 = vmatpush.msra.mxu0 0.0
  %3482 = vmatpush.msra.mxu0 0.0
  %3483 = vmatpush.msra.mxu0 %v2869
  %3484 = vmatmul.f32.gmra.mxu0 %v3466
  %v3485 = vpop.f32.mrf.mxu0
  %v3486 = vadd.f32 0.0, %v3485
  %3487 = vdwg.mxu0
  %v3488 = vsel %vm2125, %v3417, 0.0
  %v3489 = vsel %vm2125, %v3440, 0.0
  %v3490 = vadd.f32 %v3488, %v3489
  %v3491 = vsel %vm2125, %v3463, 0.0
  %v3492 = vadd.f32 %v3490, %v3491
  %v3493 = vsel %vm2125, %v3486, 0.0
  %v3494 = vadd.f32 %v3492, %v3493
  %v3495 = vadd.f32 %v2795, %v3494
  %v3496 = vld [vmem:[%s51] sm:$0x1]
  %v3497 = vmul.f32 %v3495, %v3495
  %v3498 = vsel %vm2125, %v3497, 0.0
  %3499 = vadd.xlane.f32.xlu0 %v3498
  %v3500 = vpop.xlane.xlu0 %3499
  %v3501 = vmul.f32 %v3500, %v147
  %v3502 = vadd.f32 %v3501, 1e-06
  %v3503 = vrsqrt.pop %v3502
  %v3504 = vmul.f32 %v3503, %v3502
  %v3505 = vmul.f32 %v3504, %v3503
  %v3506 = vmul.f32 0.5, %v3505
  %v3507 = vsub.f32 1.5, %v3506
  %v3508 = vmul.f32 %v3503, %v3507
  %vm3509 = vweird.f32 %v3502
  %vm3510 = vweird.f32 %v3503
  %vm3511 = vmor %vm3509, %vm3510
  %v3512 = vsel %vm3511, %v3503, %v3508
  %v3513 = vmul.f32 %v3495, %v3512
  %v3515 = vperm.slane %v3496, 0
  %v3517 = vmul.f32 %v3513, %v3515
  %v3518 = vld [vmem:[%s53] sm:$0xff]
  %v3519 = vld [vmem:[%s53 + $0x8] sm:$0xff]
  %v3520 = vld [vmem:[%s53 + $0x10] sm:$0xff]
  %v3521 = vld [vmem:[%s53 + $0x18] sm:$0xff]
  %v3522 = vld [vmem:[%s55] sm:$0xff]
  %v3523 = vld [vmem:[%s55 + $0x8] sm:$0xff]
  %v3524 = vld [vmem:[%s55 + $0x10] sm:$0xff]
  %v3525 = vld [vmem:[%s55 + $0x18] sm:$0xff]
  %v3526 = vld [vmem:[%s55 + $0x20] sm:$0xff]
  %v3527 = vld [vmem:[%s55 + $0x28] sm:$0xff]
  %v3528 = vld [vmem:[%s55 + $0x30] sm:$0xff]
  %v3529 = vld [vmem:[%s55 + $0x38] sm:$0xff]
  %v3531 = vsel %vm134, %v3517, 0
  %3533 = vmatpush.msra.mxu0 0.0
  %3534 = vmatpush.msra.mxu0 0.0
  %3535 = vmatpush.msra.mxu0 0.0
  %3536 = vmatpush.msra.mxu0 0.0
  %3537 = vmatpush.msra.mxu0 0.0
  %3538 = vmatpush.msra.mxu0 0.0
  %3539 = vmatpush.msra.mxu0 0.0
  %3540 = vmatpush.msra.mxu0 0.0
  %3541 = vmatpush.msra.mxu0 0.0
  %3542 = vmatpush.msra.mxu0 0.0
  %3543 = vmatpush.msra.mxu0 0.0
  %3544 = vmatpush.msra.mxu0 0.0
  %3545 = vmatpush.msra.mxu0 %v3521
  %3546 = vmatpush.msra.mxu0 %v3520
  %3547 = vmatpush.msra.mxu0 %v3519
  %3548 = vmatpush.msra.mxu0 %v3518
  %3549 = vmatmul.f32.gmra.mxu0 %v3531
  %v3550 = vpop.f32.mrf.mxu0
  %v3551 = vadd.f32 0.0, %v3550
  %3552 = vdwg.mxu0
  %v3553 = vmax.f32 %v3551, 0.0
  %v3555 = vsel %vm1074, %v3553, 0
  %3557 = vmatpush.msra.mxu0 0.0
  %3558 = vmatpush.msra.mxu0 0.0
  %3559 = vmatpush.msra.mxu0 0.0
  %3560 = vmatpush.msra.mxu0 0.0
  %3561 = vmatpush.msra.mxu0 0.0
  %3562 = vmatpush.msra.mxu0 0.0
  %3563 = vmatpush.msra.mxu0 0.0
  %3564 = vmatpush.msra.mxu0 0.0
  %3565 = vmatpush.msra.mxu0 %v3529
  %3566 = vmatpush.msra.mxu0 %v3528
  %3567 = vmatpush.msra.mxu0 %v3527
  %3568 = vmatpush.msra.mxu0 %v3526
  %3569 = vmatpush.msra.mxu0 %v3525
  %3570 = vmatpush.msra.mxu0 %v3524
  %3571 = vmatpush.msra.mxu0 %v3523
  %3572 = vmatpush.msra.mxu0 %v3522
  %3573 = vmatmul.f32.gmra.mxu0 %v3555
  %v3574 = vpop.f32.mrf.mxu0
  %v3575 = vadd.f32 0.0, %v3574
  %3576 = vdwg.mxu0
  %v3577 = vadd.f32 %v3495, %v3575
  %3578 = vst.msk [vmem:[%s57] sm:$0x3] %vm2125, %v3577
  %s3579 = scalar_lea.vmem %s31, 1
  %v3580 = vld [vmem:[%s3579] sm:$0x1]
  %v3581 = vmul.f32 %v3577, %v3577
  %v3582 = vsel %vm2125, %v3581, 0.0
  %3583 = vadd.xlane.f32.xlu0 %v3582
  %v3584 = vpop.xlane.xlu0 %3583
  %v3585 = vmul.f32 %v3584, %v147
  %v3586 = vadd.f32 %v3585, 1e-06
  %v3587 = vrsqrt.pop %v3586
  %v3588 = vmul.f32 %v3587, %v3586
  %v3589 = vmul.f32 %v3588, %v3587
  %v3590 = vmul.f32 0.5, %v3589
  %v3591 = vsub.f32 1.5, %v3590
  %v3592 = vmul.f32 %v3587, %v3591
  %vm3593 = vweird.f32 %v3586
  %vm3594 = vweird.f32 %v3587
  %vm3595 = vmor %vm3593, %vm3594
  %v3596 = vsel %vm3595, %v3587, %v3592
  %v3597 = vmul.f32 %v3577, %v3596
  %v3599 = vperm.slane %v3580, 0
  %v3601 = vmul.f32 %v3597, %v3599
  %s3602 = scalar_lea.vmem %s33, 128
  %v3603 = vld [vmem:[%s3602] sm:$0xff]
  %v3604 = vld [vmem:[%s3602 + $0x8] sm:$0xff]
  %v3605 = vld [vmem:[%s3602 + $0x10] sm:$0xff]
  %v3606 = vld [vmem:[%s3602 + $0x18] sm:$0xff]
  %v3607 = vld [vmem:[%s3602 + $0x20] sm:$0xff]
  %v3608 = vld [vmem:[%s3602 + $0x28] sm:$0xff]
  %v3609 = vld [vmem:[%s3602 + $0x30] sm:$0xff]
  %v3610 = vld [vmem:[%s3602 + $0x38] sm:$0xff]
  %v3611 = vld [vmem:[%s3602 + $0x40] sm:$0xff]
  %v3612 = vld [vmem:[%s3602 + $0x48] sm:$0xff]
  %v3613 = vld [vmem:[%s3602 + $0x50] sm:$0xff]
  %v3614 = vld [vmem:[%s3602 + $0x58] sm:$0xff]
  %v3615 = vld [vmem:[%s3602 + $0x60] sm:$0xff]
  %v3616 = vld [vmem:[%s3602 + $0x68] sm:$0xff]
  %v3617 = vld [vmem:[%s3602 + $0x70] sm:$0xff]
  %v3618 = vld [vmem:[%s3602 + $0x78] sm:$0xff]
  %s3619 = scalar_lea.vmem %s35, 128
  %v3620 = vld [vmem:[%s3619] sm:$0xff]
  %v3621 = vld [vmem:[%s3619 + $0x8] sm:$0xff]
  %v3622 = vld [vmem:[%s3619 + $0x10] sm:$0xff]
  %v3623 = vld [vmem:[%s3619 + $0x18] sm:$0xff]
  %v3624 = vld [vmem:[%s3619 + $0x20] sm:$0xff]
  %v3625 = vld [vmem:[%s3619 + $0x28] sm:$0xff]
  %v3626 = vld [vmem:[%s3619 + $0x30] sm:$0xff]
  %v3627 = vld [vmem:[%s3619 + $0x38] sm:$0xff]
  %v3628 = vld [vmem:[%s3619 + $0x40] sm:$0xff]
  %v3629 = vld [vmem:[%s3619 + $0x48] sm:$0xff]
  %v3630 = vld [vmem:[%s3619 + $0x50] sm:$0xff]
  %v3631 = vld [vmem:[%s3619 + $0x58] sm:$0xff]
  %v3632 = vld [vmem:[%s3619 + $0x60] sm:$0xff]
  %v3633 = vld [vmem:[%s3619 + $0x68] sm:$0xff]
  %v3634 = vld [vmem:[%s3619 + $0x70] sm:$0xff]
  %v3635 = vld [vmem:[%s3619 + $0x78] sm:$0xff]
  %s3636 = scalar_lea.vmem %s37, 128
  %v3637 = vld [vmem:[%s3636] sm:$0xff]
  %v3638 = vld [vmem:[%s3636 + $0x8] sm:$0xff]
  %v3639 = vld [vmem:[%s3636 + $0x10] sm:$0xff]
  %v3640 = vld [vmem:[%s3636 + $0x18] sm:$0xff]
  %v3641 = vld [vmem:[%s3636 + $0x20] sm:$0xff]
  %v3642 = vld [vmem:[%s3636 + $0x28] sm:$0xff]
  %v3643 = vld [vmem:[%s3636 + $0x30] sm:$0xff]
  %v3644 = vld [vmem:[%s3636 + $0x38] sm:$0xff]
  %v3645 = vld [vmem:[%s3636 + $0x40] sm:$0xff]
  %v3646 = vld [vmem:[%s3636 + $0x48] sm:$0xff]
  %v3647 = vld [vmem:[%s3636 + $0x50] sm:$0xff]
  %v3648 = vld [vmem:[%s3636 + $0x58] sm:$0xff]
  %v3649 = vld [vmem:[%s3636 + $0x60] sm:$0xff]
  %v3650 = vld [vmem:[%s3636 + $0x68] sm:$0xff]
  %v3651 = vld [vmem:[%s3636 + $0x70] sm:$0xff]
  %v3652 = vld [vmem:[%s3636 + $0x78] sm:$0xff]
  %s3653 = scalar_lea.vmem %s39, 32
  %v3654 = vld [vmem:[%s3653] sm:$0xff]
  %v3655 = vld [vmem:[%s3653 + $0x8] sm:$0xff]
  %v3656 = vld [vmem:[%s3653 + $0x10] sm:$0xff]
  %v3657 = vld [vmem:[%s3653 + $0x18] sm:$0xff]
  %v3659 = vsel %vm134, %v3601, 0
  %3661 = vmatpush.msra.mxu0 0.0
  %3662 = vmatpush.msra.mxu0 0.0
  %3663 = vmatpush.msra.mxu0 0.0
  %3664 = vmatpush.msra.mxu0 0.0
  %3665 = vmatpush.msra.mxu0 0.0
  %3666 = vmatpush.msra.mxu0 0.0
  %3667 = vmatpush.msra.mxu0 0.0
  %3668 = vmatpush.msra.mxu0 0.0
  %3669 = vmatpush.msra.mxu0 0.0
  %3670 = vmatpush.msra.mxu0 0.0
  %3671 = vmatpush.msra.mxu0 0.0
  %3672 = vmatpush.msra.mxu0 0.0
  %3673 = vmatpush.msra.mxu0 %v3606
  %3674 = vmatpush.msra.mxu0 %v3605
  %3675 = vmatpush.msra.mxu0 %v3604
  %3676 = vmatpush.msra.mxu0 %v3603
  %3677 = vmatmul.f32.gmra.mxu0 %v3659
  %v3678 = vpop.f32.mrf.mxu0
  %v3679 = vadd.f32 0.0, %v3678
  %3680 = vdwg.mxu0
  %3681 = vmatpush.msra.mxu0 0.0
  %3682 = vmatpush.msra.mxu0 0.0
  %3683 = vmatpush.msra.mxu0 0.0
  %3684 = vmatpush.msra.mxu0 0.0
  %3685 = vmatpush.msra.mxu0 0.0
  %3686 = vmatpush.msra.mxu0 0.0
  %3687 = vmatpush.msra.mxu0 0.0
  %3688 = vmatpush.msra.mxu0 0.0
  %3689 = vmatpush.msra.mxu0 0.0
  %3690 = vmatpush.msra.mxu0 0.0
  %3691 = vmatpush.msra.mxu0 0.0
  %3692 = vmatpush.msra.mxu0 0.0
  %3693 = vmatpush.msra.mxu0 %v3610
  %3694 = vmatpush.msra.mxu0 %v3609
  %3695 = vmatpush.msra.mxu0 %v3608
  %3696 = vmatpush.msra.mxu0 %v3607
  %3697 = vmatmul.f32.gmra.mxu0 %v3659
  %v3698 = vpop.f32.mrf.mxu0
  %v3699 = vadd.f32 0.0, %v3698
  %3700 = vdwg.mxu0
  %3701 = vmatpush.msra.mxu0 0.0
  %3702 = vmatpush.msra.mxu0 0.0
  %3703 = vmatpush.msra.mxu0 0.0
  %3704 = vmatpush.msra.mxu0 0.0
  %3705 = vmatpush.msra.mxu0 0.0
  %3706 = vmatpush.msra.mxu0 0.0
  %3707 = vmatpush.msra.mxu0 0.0
  %3708 = vmatpush.msra.mxu0 0.0
  %3709 = vmatpush.msra.mxu0 0.0
  %3710 = vmatpush.msra.mxu0 0.0
  %3711 = vmatpush.msra.mxu0 0.0
  %3712 = vmatpush.msra.mxu0 0.0
  %3713 = vmatpush.msra.mxu0 %v3614
  %3714 = vmatpush.msra.mxu0 %v3613
  %3715 = vmatpush.msra.mxu0 %v3612
  %3716 = vmatpush.msra.mxu0 %v3611
  %3717 = vmatmul.f32.gmra.mxu0 %v3659
  %v3718 = vpop.f32.mrf.mxu0
  %v3719 = vadd.f32 0.0, %v3718
  %3720 = vdwg.mxu0
  %3721 = vmatpush.msra.mxu0 0.0
  %3722 = vmatpush.msra.mxu0 0.0
  %3723 = vmatpush.msra.mxu0 0.0
  %3724 = vmatpush.msra.mxu0 0.0
  %3725 = vmatpush.msra.mxu0 0.0
  %3726 = vmatpush.msra.mxu0 0.0
  %3727 = vmatpush.msra.mxu0 0.0
  %3728 = vmatpush.msra.mxu0 0.0
  %3729 = vmatpush.msra.mxu0 0.0
  %3730 = vmatpush.msra.mxu0 0.0
  %3731 = vmatpush.msra.mxu0 0.0
  %3732 = vmatpush.msra.mxu0 0.0
  %3733 = vmatpush.msra.mxu0 %v3618
  %3734 = vmatpush.msra.mxu0 %v3617
  %3735 = vmatpush.msra.mxu0 %v3616
  %3736 = vmatpush.msra.mxu0 %v3615
  %3737 = vmatmul.f32.gmra.mxu0 %v3659
  %v3738 = vpop.f32.mrf.mxu0
  %v3739 = vadd.f32 0.0, %v3738
  %3740 = vdwg.mxu0
  %3741 = vmatpush.msra.mxu0 0.0
  %3742 = vmatpush.msra.mxu0 0.0
  %3743 = vmatpush.msra.mxu0 0.0
  %3744 = vmatpush.msra.mxu0 0.0
  %3745 = vmatpush.msra.mxu0 0.0
  %3746 = vmatpush.msra.mxu0 0.0
  %3747 = vmatpush.msra.mxu0 0.0
  %3748 = vmatpush.msra.mxu0 0.0
  %3749 = vmatpush.msra.mxu0 0.0
  %3750 = vmatpush.msra.mxu0 0.0
  %3751 = vmatpush.msra.mxu0 0.0
  %3752 = vmatpush.msra.mxu0 0.0
  %3753 = vmatpush.msra.mxu0 %v3623
  %3754 = vmatpush.msra.mxu0 %v3622
  %3755 = vmatpush.msra.mxu0 %v3621
  %3756 = vmatpush.msra.mxu0 %v3620
  %3757 = vmatmul.f32.gmra.mxu0 %v3659
  %v3758 = vpop.f32.mrf.mxu0
  %v3759 = vadd.f32 0.0, %v3758
  %3760 = vdwg.mxu0
  %3761 = vmatpush.msra.mxu0 0.0
  %3762 = vmatpush.msra.mxu0 0.0
  %3763 = vmatpush.msra.mxu0 0.0
  %3764 = vmatpush.msra.mxu0 0.0
  %3765 = vmatpush.msra.mxu0 0.0
  %3766 = vmatpush.msra.mxu0 0.0
  %3767 = vmatpush.msra.mxu0 0.0
  %3768 = vmatpush.msra.mxu0 0.0
  %3769 = vmatpush.msra.mxu0 0.0
  %3770 = vmatpush.msra.mxu0 0.0
  %3771 = vmatpush.msra.mxu0 0.0
  %3772 = vmatpush.msra.mxu0 0.0
  %3773 = vmatpush.msra.mxu0 %v3627
  %3774 = vmatpush.msra.mxu0 %v3626
  %3775 = vmatpush.msra.mxu0 %v3625
  %3776 = vmatpush.msra.mxu0 %v3624
  %3777 = vmatmul.f32.gmra.mxu0 %v3659
  %v3778 = vpop.f32.mrf.mxu0
  %v3779 = vadd.f32 0.0, %v3778
  %3780 = vdwg.mxu0
  %3781 = vmatpush.msra.mxu0 0.0
  %3782 = vmatpush.msra.mxu0 0.0
  %3783 = vmatpush.msra.mxu0 0.0
  %3784 = vmatpush.msra.mxu0 0.0
  %3785 = vmatpush.msra.mxu0 0.0
  %3786 = vmatpush.msra.mxu0 0.0
  %3787 = vmatpush.msra.mxu0 0.0
  %3788 = vmatpush.msra.mxu0 0.0
  %3789 = vmatpush.msra.mxu0 0.0
  %3790 = vmatpush.msra.mxu0 0.0
  %3791 = vmatpush.msra.mxu0 0.0
  %3792 = vmatpush.msra.mxu0 0.0
  %3793 = vmatpush.msra.mxu0 %v3631
  %3794 = vmatpush.msra.mxu0 %v3630
  %3795 = vmatpush.msra.mxu0 %v3629
  %3796 = vmatpush.msra.mxu0 %v3628
  %3797 = vmatmul.f32.gmra.mxu0 %v3659
  %v3798 = vpop.f32.mrf.mxu0
  %v3799 = vadd.f32 0.0, %v3798
  %3800 = vdwg.mxu0
  %3801 = vmatpush.msra.mxu0 0.0
  %3802 = vmatpush.msra.mxu0 0.0
  %3803 = vmatpush.msra.mxu0 0.0
  %3804 = vmatpush.msra.mxu0 0.0
  %3805 = vmatpush.msra.mxu0 0.0
  %3806 = vmatpush.msra.mxu0 0.0
  %3807 = vmatpush.msra.mxu0 0.0
  %3808 = vmatpush.msra.mxu0 0.0
  %3809 = vmatpush.msra.mxu0 0.0
  %3810 = vmatpush.msra.mxu0 0.0
  %3811 = vmatpush.msra.mxu0 0.0
  %3812 = vmatpush.msra.mxu0 0.0
  %3813 = vmatpush.msra.mxu0 %v3635
  %3814 = vmatpush.msra.mxu0 %v3634
  %3815 = vmatpush.msra.mxu0 %v3633
  %3816 = vmatpush.msra.mxu0 %v3632
  %3817 = vmatmul.f32.gmra.mxu0 %v3659
  %v3818 = vpop.f32.mrf.mxu0
  %v3819 = vadd.f32 0.0, %v3818
  %3820 = vdwg.mxu0
  %3821 = vmatpush.msra.mxu0 0.0
  %3822 = vmatpush.msra.mxu0 0.0
  %3823 = vmatpush.msra.mxu0 0.0
  %3824 = vmatpush.msra.mxu0 0.0
  %3825 = vmatpush.msra.mxu0 0.0
  %3826 = vmatpush.msra.mxu0 0.0
  %3827 = vmatpush.msra.mxu0 0.0
  %3828 = vmatpush.msra.mxu0 0.0
  %3829 = vmatpush.msra.mxu0 0.0
  %3830 = vmatpush.msra.mxu0 0.0
  %3831 = vmatpush.msra.mxu0 0.0
  %3832 = vmatpush.msra.mxu0 0.0
  %3833 = vmatpush.msra.mxu0 %v3640
  %3834 = vmatpush.msra.mxu0 %v3639
  %3835 = vmatpush.msra.mxu0 %v3638
  %3836 = vmatpush.msra.mxu0 %v3637
  %3837 = vmatmul.f32.gmra.mxu0 %v3659
  %v3838 = vpop.f32.mrf.mxu0
  %v3839 = vadd.f32 0.0, %v3838
  %3840 = vdwg.mxu0
  %3841 = vmatpush.msra.mxu0 0.0
  %3842 = vmatpush.msra.mxu0 0.0
  %3843 = vmatpush.msra.mxu0 0.0
  %3844 = vmatpush.msra.mxu0 0.0
  %3845 = vmatpush.msra.mxu0 0.0
  %3846 = vmatpush.msra.mxu0 0.0
  %3847 = vmatpush.msra.mxu0 0.0
  %3848 = vmatpush.msra.mxu0 0.0
  %3849 = vmatpush.msra.mxu0 0.0
  %3850 = vmatpush.msra.mxu0 0.0
  %3851 = vmatpush.msra.mxu0 0.0
  %3852 = vmatpush.msra.mxu0 0.0
  %3853 = vmatpush.msra.mxu0 %v3644
  %3854 = vmatpush.msra.mxu0 %v3643
  %3855 = vmatpush.msra.mxu0 %v3642
  %3856 = vmatpush.msra.mxu0 %v3641
  %3857 = vmatmul.f32.gmra.mxu0 %v3659
  %v3858 = vpop.f32.mrf.mxu0
  %v3859 = vadd.f32 0.0, %v3858
  %3860 = vdwg.mxu0
  %3861 = vmatpush.msra.mxu0 0.0
  %3862 = vmatpush.msra.mxu0 0.0
  %3863 = vmatpush.msra.mxu0 0.0
  %3864 = vmatpush.msra.mxu0 0.0
  %3865 = vmatpush.msra.mxu0 0.0
  %3866 = vmatpush.msra.mxu0 0.0
  %3867 = vmatpush.msra.mxu0 0.0
  %3868 = vmatpush.msra.mxu0 0.0
  %3869 = vmatpush.msra.mxu0 0.0
  %3870 = vmatpush.msra.mxu0 0.0
  %3871 = vmatpush.msra.mxu0 0.0
  %3872 = vmatpush.msra.mxu0 0.0
  %3873 = vmatpush.msra.mxu0 %v3648
  %3874 = vmatpush.msra.mxu0 %v3647
  %3875 = vmatpush.msra.mxu0 %v3646
  %3876 = vmatpush.msra.mxu0 %v3645
  %3877 = vmatmul.f32.gmra.mxu0 %v3659
  %v3878 = vpop.f32.mrf.mxu0
  %v3879 = vadd.f32 0.0, %v3878
  %3880 = vdwg.mxu0
  %3881 = vmatpush.msra.mxu0 0.0
  %3882 = vmatpush.msra.mxu0 0.0
  %3883 = vmatpush.msra.mxu0 0.0
  %3884 = vmatpush.msra.mxu0 0.0
  %3885 = vmatpush.msra.mxu0 0.0
  %3886 = vmatpush.msra.mxu0 0.0
  %3887 = vmatpush.msra.mxu0 0.0
  %3888 = vmatpush.msra.mxu0 0.0
  %3889 = vmatpush.msra.mxu0 0.0
  %3890 = vmatpush.msra.mxu0 0.0
  %3891 = vmatpush.msra.mxu0 0.0
  %3892 = vmatpush.msra.mxu0 0.0
  %3893 = vmatpush.msra.mxu0 %v3652
  %3894 = vmatpush.msra.mxu0 %v3651
  %3895 = vmatpush.msra.mxu0 %v3650
  %3896 = vmatpush.msra.mxu0 %v3649
  %3897 = vmatmul.f32.gmra.mxu0 %v3659
  %v3898 = vpop.f32.mrf.mxu0
  %v3899 = vadd.f32 0.0, %v3898
  %3900 = vdwg.mxu0
  %v3902 = vsel %vm513, %v3679, 0
  %v3905 = vsel %vm513, %v3759, 0
  %3907 = vmatpush.xpose.msra.mxu0 0.0
  %3908 = vmatpush.xpose.msra.mxu0 0.0
  %3909 = vmatpush.xpose.msra.mxu0 0.0
  %3910 = vmatpush.xpose.msra.mxu0 0.0
  %3911 = vmatpush.xpose.msra.mxu0 0.0
  %3912 = vmatpush.xpose.msra.mxu0 0.0
  %3913 = vmatpush.xpose.msra.mxu0 0.0
  %3914 = vmatpush.xpose.msra.mxu0 0.0
  %3915 = vmatpush.xpose.msra.mxu0 0.0
  %3916 = vmatpush.xpose.msra.mxu0 0.0
  %3917 = vmatpush.xpose.msra.mxu0 0.0
  %3918 = vmatpush.xpose.msra.mxu0 0.0
  %3919 = vmatpush.xpose.msra.mxu0 0.0
  %3920 = vmatpush.xpose.msra.mxu0 0.0
  %3921 = vmatpush.xpose.msra.mxu0 0.0
  %3922 = vmatpush.xpose.msra.mxu0 %v3905
  %3923 = vmatmul.f32.gmra.mxu0 %v3902
  %v3924 = vpop.f32.mrf.mxu0
  %v3925 = vadd.f32 %v2119, %v3924
  %3926 = vdwg.mxu0
  %v3928 = vsel %vm513, %v3699, 0
  %v3931 = vsel %vm513, %v3779, 0
  %3933 = vmatpush.xpose.msra.mxu0 0.0
  %3934 = vmatpush.xpose.msra.mxu0 0.0
  %3935 = vmatpush.xpose.msra.mxu0 0.0
  %3936 = vmatpush.xpose.msra.mxu0 0.0
  %3937 = vmatpush.xpose.msra.mxu0 0.0
  %3938 = vmatpush.xpose.msra.mxu0 0.0
  %3939 = vmatpush.xpose.msra.mxu0 0.0
  %3940 = vmatpush.xpose.msra.mxu0 0.0
  %3941 = vmatpush.xpose.msra.mxu0 0.0
  %3942 = vmatpush.xpose.msra.mxu0 0.0
  %3943 = vmatpush.xpose.msra.mxu0 0.0
  %3944 = vmatpush.xpose.msra.mxu0 0.0
  %3945 = vmatpush.xpose.msra.mxu0 0.0
  %3946 = vmatpush.xpose.msra.mxu0 0.0
  %3947 = vmatpush.xpose.msra.mxu0 0.0
  %3948 = vmatpush.xpose.msra.mxu0 %v3931
  %3949 = vmatmul.f32.gmra.mxu0 %v3928
  %v3950 = vpop.f32.mrf.mxu0
  %v3951 = vadd.f32 %v2120, %v3950
  %3952 = vdwg.mxu0
  %v3954 = vsel %vm513, %v3719, 0
  %v3957 = vsel %vm513, %v3799, 0
  %3959 = vmatpush.xpose.msra.mxu0 0.0
  %3960 = vmatpush.xpose.msra.mxu0 0.0
  %3961 = vmatpush.xpose.msra.mxu0 0.0
  %3962 = vmatpush.xpose.msra.mxu0 0.0
  %3963 = vmatpush.xpose.msra.mxu0 0.0
  %3964 = vmatpush.xpose.msra.mxu0 0.0
  %3965 = vmatpush.xpose.msra.mxu0 0.0
  %3966 = vmatpush.xpose.msra.mxu0 0.0
  %3967 = vmatpush.xpose.msra.mxu0 0.0
  %3968 = vmatpush.xpose.msra.mxu0 0.0
  %3969 = vmatpush.xpose.msra.mxu0 0.0
  %3970 = vmatpush.xpose.msra.mxu0 0.0
  %3971 = vmatpush.xpose.msra.mxu0 0.0
  %3972 = vmatpush.xpose.msra.mxu0 0.0
  %3973 = vmatpush.xpose.msra.mxu0 0.0
  %3974 = vmatpush.xpose.msra.mxu0 %v3957
  %3975 = vmatmul.f32.gmra.mxu0 %v3954
  %v3976 = vpop.f32.mrf.mxu0
  %v3977 = vadd.f32 %v2121, %v3976
  %3978 = vdwg.mxu0
  %v3980 = vsel %vm513, %v3739, 0
  %v3983 = vsel %vm513, %v3819, 0
  %3985 = vmatpush.xpose.msra.mxu0 0.0
  %3986 = vmatpush.xpose.msra.mxu0 0.0
  %3987 = vmatpush.xpose.msra.mxu0 0.0
  %3988 = vmatpush.xpose.msra.mxu0 0.0
  %3989 = vmatpush.xpose.msra.mxu0 0.0
  %3990 = vmatpush.xpose.msra.mxu0 0.0
  %3991 = vmatpush.xpose.msra.mxu0 0.0
  %3992 = vmatpush.xpose.msra.mxu0 0.0
  %3993 = vmatpush.xpose.msra.mxu0 0.0
  %3994 = vmatpush.xpose.msra.mxu0 0.0
  %3995 = vmatpush.xpose.msra.mxu0 0.0
  %3996 = vmatpush.xpose.msra.mxu0 0.0
  %3997 = vmatpush.xpose.msra.mxu0 0.0
  %3998 = vmatpush.xpose.msra.mxu0 0.0
  %3999 = vmatpush.xpose.msra.mxu0 0.0
  %4000 = vmatpush.xpose.msra.mxu0 %v3983
  %4001 = vmatmul.f32.gmra.mxu0 %v3980
  %v4002 = vpop.f32.mrf.mxu0
  %v4003 = vadd.f32 %v2122, %v4002
  %4004 = vdwg.mxu0
  %v4005 = vsel %vm2545, %v3925, -inf
  %4006 = vmax.xlane.f32.xlu0 %v4005
  %v4007 = vpop.xlane.xlu0 %4006
  %v4008 = vsel %vm2545, %v3951, -inf
  %4009 = vmax.xlane.f32.xlu0 %v4008
  %v4010 = vpop.xlane.xlu0 %4009
  %v4011 = vsel %vm2545, %v3977, -inf
  %4012 = vmax.xlane.f32.xlu0 %v4011
  %v4013 = vpop.xlane.xlu0 %4012
  %v4014 = vsel %vm2545, %v4003, -inf
  %4015 = vmax.xlane.f32.xlu0 %v4014
  %v4016 = vpop.xlane.xlu0 %4015
  %v4017 = vsub.f32 %v3925, %v4007
  %v4018 = vsub.f32 %v3951, %v4010
  %v4019 = vsub.f32 %v3977, %v4013
  %v4020 = vsub.f32 %v4003, %v4016
  %v4021 = vmul.f32 %v4017, 1.442695
  %v4022 = vpow.pop %v4021
  %v4023 = vmul.f32 %v4018, 1.442695
  %v4024 = vpow.pop %v4023
  %v4025 = vmul.f32 %v4019, 1.442695
  %v4026 = vpow.pop %v4025
  %v4027 = vmul.f32 %v4020, 1.442695
  %v4028 = vpow.pop %v4027
  %v4029 = vsel %vm2545, %v4022, 0.0
  %4030 = vadd.xlane.f32.xlu0 %v4029
  %v4031 = vpop.xlane.xlu0 %4030
  %v4032 = vsel %vm2545, %v4024, 0.0
  %4033 = vadd.xlane.f32.xlu0 %v4032
  %v4034 = vpop.xlane.xlu0 %4033
  %v4035 = vsel %vm2545, %v4026, 0.0
  %4036 = vadd.xlane.f32.xlu0 %v4035
  %v4037 = vpop.xlane.xlu0 %4036
  %v4038 = vsel %vm2545, %v4028, 0.0
  %4039 = vadd.xlane.f32.xlu0 %v4038
  %v4040 = vpop.xlane.xlu0 %4039
  %v4041 = vrcp.pop %v4031
  %v4042 = vrcp.pop %v4034
  %v4043 = vrcp.pop %v4037
  %v4044 = vrcp.pop %v4040
  %v4045 = vmul.f32 %v4022, %v4041
  %v4046 = vmul.f32 %v4024, %v4042
  %v4047 = vmul.f32 %v4026, %v4043
  %v4048 = vmul.f32 %v4028, %v4044
  %v4050 = vsel %vm2590, %v4045, 0
  %v4053 = vsel %vm2594, %v3839, 0
  %4055 = vmatpush.msra.mxu0 0.0
  %4056 = vmatpush.msra.mxu0 0.0
  %4057 = vmatpush.msra.mxu0 0.0
  %4058 = vmatpush.msra.mxu0 0.0
  %4059 = vmatpush.msra.mxu0 0.0
  %4060 = vmatpush.msra.mxu0 0.0
  %4061 = vmatpush.msra.mxu0 0.0
  %4062 = vmatpush.msra.mxu0 0.0
  %4063 = vmatpush.msra.mxu0 0.0
  %4064 = vmatpush.msra.mxu0 0.0
  %4065 = vmatpush.msra.mxu0 0.0
  %4066 = vmatpush.msra.mxu0 0.0
  %4067 = vmatpush.msra.mxu0 0.0
  %4068 = vmatpush.msra.mxu0 0.0
  %4069 = vmatpush.msra.mxu0 0.0
  %4070 = vmatpush.msra.mxu0 %v4053
  %4071 = vmatmul.f32.gmra.mxu0 %v4050
  %v4072 = vpop.f32.mrf.mxu0
  %v4073 = vadd.f32 0.0, %v4072
  %4074 = vdwg.mxu0
  %v4076 = vsel %vm2590, %v4046, 0
  %v4079 = vsel %vm2594, %v3859, 0
  %4081 = vmatpush.msra.mxu0 0.0
  %4082 = vmatpush.msra.mxu0 0.0
  %4083 = vmatpush.msra.mxu0 0.0
  %4084 = vmatpush.msra.mxu0 0.0
  %4085 = vmatpush.msra.mxu0 0.0
  %4086 = vmatpush.msra.mxu0 0.0
  %4087 = vmatpush.msra.mxu0 0.0
  %4088 = vmatpush.msra.mxu0 0.0
  %4089 = vmatpush.msra.mxu0 0.0
  %4090 = vmatpush.msra.mxu0 0.0
  %4091 = vmatpush.msra.mxu0 0.0
  %4092 = vmatpush.msra.mxu0 0.0
  %4093 = vmatpush.msra.mxu0 0.0
  %4094 = vmatpush.msra.mxu0 0.0
  %4095 = vmatpush.msra.mxu0 0.0
  %4096 = vmatpush.msra.mxu0 %v4079
  %4097 = vmatmul.f32.gmra.mxu0 %v4076
  %v4098 = vpop.f32.mrf.mxu0
  %v4099 = vadd.f32 0.0, %v4098
  %4100 = vdwg.mxu0
  %v4102 = vsel %vm2590, %v4047, 0
  %v4105 = vsel %vm2594, %v3879, 0
  %4107 = vmatpush.msra.mxu0 0.0
  %4108 = vmatpush.msra.mxu0 0.0
  %4109 = vmatpush.msra.mxu0 0.0
  %4110 = vmatpush.msra.mxu0 0.0
  %4111 = vmatpush.msra.mxu0 0.0
  %4112 = vmatpush.msra.mxu0 0.0
  %4113 = vmatpush.msra.mxu0 0.0
  %4114 = vmatpush.msra.mxu0 0.0
  %4115 = vmatpush.msra.mxu0 0.0
  %4116 = vmatpush.msra.mxu0 0.0
  %4117 = vmatpush.msra.mxu0 0.0
  %4118 = vmatpush.msra.mxu0 0.0
  %4119 = vmatpush.msra.mxu0 0.0
  %4120 = vmatpush.msra.mxu0 0.0
  %4121 = vmatpush.msra.mxu0 0.0
  %4122 = vmatpush.msra.mxu0 %v4105
  %4123 = vmatmul.f32.gmra.mxu0 %v4102
  %v4124 = vpop.f32.mrf.mxu0
  %v4125 = vadd.f32 0.0, %v4124
  %4126 = vdwg.mxu0
  %v4128 = vsel %vm2590, %v4048, 0
  %v4131 = vsel %vm2594, %v3899, 0
  %4133 = vmatpush.msra.mxu0 0.0
  %4134 = vmatpush.msra.mxu0 0.0
  %4135 = vmatpush.msra.mxu0 0.0
  %4136 = vmatpush.msra.mxu0 0.0
  %4137 = vmatpush.msra.mxu0 0.0
  %4138 = vmatpush.msra.mxu0 0.0
  %4139 = vmatpush.msra.mxu0 0.0
  %4140 = vmatpush.msra.mxu0 0.0
  %4141 = vmatpush.msra.mxu0 0.0
  %4142 = vmatpush.msra.mxu0 0.0
  %4143 = vmatpush.msra.mxu0 0.0
  %4144 = vmatpush.msra.mxu0 0.0
  %4145 = vmatpush.msra.mxu0 0.0
  %4146 = vmatpush.msra.mxu0 0.0
  %4147 = vmatpush.msra.mxu0 0.0
  %4148 = vmatpush.msra.mxu0 %v4131
  %4149 = vmatmul.f32.gmra.mxu0 %v4128
  %v4150 = vpop.f32.mrf.mxu0
  %v4151 = vadd.f32 0.0, %v4150
  %4152 = vdwg.mxu0
  %v4154 = vsel %vm513, %v4073, 0
  %4156 = vmatpush.msra.mxu0 0.0
  %4157 = vmatpush.msra.mxu0 0.0
  %4158 = vmatpush.msra.mxu0 0.0
  %4159 = vmatpush.msra.mxu0 0.0
  %4160 = vmatpush.msra.mxu0 0.0
  %4161 = vmatpush.msra.mxu0 0.0
  %4162 = vmatpush.msra.mxu0 0.0
  %4163 = vmatpush.msra.mxu0 0.0
  %4164 = vmatpush.msra.mxu0 0.0
  %4165 = vmatpush.msra.mxu0 0.0
  %4166 = vmatpush.msra.mxu0 0.0
  %4167 = vmatpush.msra.mxu0 0.0
  %4168 = vmatpush.msra.mxu0 0.0
  %4169 = vmatpush.msra.mxu0 0.0
  %4170 = vmatpush.msra.mxu0 0.0
  %4171 = vmatpush.msra.mxu0 %v3654
  %4172 = vmatmul.f32.gmra.mxu0 %v4154
  %v4173 = vpop.f32.mrf.mxu0
  %v4174 = vadd.f32 0.0, %v4173
  %4175 = vdwg.mxu0
  %v4177 = vsel %vm513, %v4099, 0
  %4179 = vmatpush.msra.mxu0 0.0
  %4180 = vmatpush.msra.mxu0 0.0
  %4181 = vmatpush.msra.mxu0 0.0
  %4182 = vmatpush.msra.mxu0 0.0
  %4183 = vmatpush.msra.mxu0 0.0
  %4184 = vmatpush.msra.mxu0 0.0
  %4185 = vmatpush.msra.mxu0 0.0
  %4186 = vmatpush.msra.mxu0 0.0
  %4187 = vmatpush.msra.mxu0 0.0
  %4188 = vmatpush.msra.mxu0 0.0
  %4189 = vmatpush.msra.mxu0 0.0
  %4190 = vmatpush.msra.mxu0 0.0
  %4191 = vmatpush.msra.mxu0 0.0
  %4192 = vmatpush.msra.mxu0 0.0
  %4193 = vmatpush.msra.mxu0 0.0
  %4194 = vmatpush.msra.mxu0 %v3655
  %4195 = vmatmul.f32.gmra.mxu0 %v4177
  %v4196 = vpop.f32.mrf.mxu0
  %v4197 = vadd.f32 0.0, %v4196
  %4198 = vdwg.mxu0
  %v4200 = vsel %vm513, %v4125, 0
  %4202 = vmatpush.msra.mxu0 0.0
  %4203 = vmatpush.msra.mxu0 0.0
  %4204 = vmatpush.msra.mxu0 0.0
  %4205 = vmatpush.msra.mxu0 0.0
  %4206 = vmatpush.msra.mxu0 0.0
  %4207 = vmatpush.msra.mxu0 0.0
  %4208 = vmatpush.msra.mxu0 0.0
  %4209 = vmatpush.msra.mxu0 0.0
  %4210 = vmatpush.msra.mxu0 0.0
  %4211 = vmatpush.msra.mxu0 0.0
  %4212 = vmatpush.msra.mxu0 0.0
  %4213 = vmatpush.msra.mxu0 0.0
  %4214 = vmatpush.msra.mxu0 0.0
  %4215 = vmatpush.msra.mxu0 0.0
  %4216 = vmatpush.msra.mxu0 0.0
  %4217 = vmatpush.msra.mxu0 %v3656
  %4218 = vmatmul.f32.gmra.mxu0 %v4200
  %v4219 = vpop.f32.mrf.mxu0
  %v4220 = vadd.f32 0.0, %v4219
  %4221 = vdwg.mxu0
  %v4223 = vsel %vm513, %v4151, 0
  %4225 = vmatpush.msra.mxu0 0.0
  %4226 = vmatpush.msra.mxu0 0.0
  %4227 = vmatpush.msra.mxu0 0.0
  %4228 = vmatpush.msra.mxu0 0.0
  %4229 = vmatpush.msra.mxu0 0.0
  %4230 = vmatpush.msra.mxu0 0.0
  %4231 = vmatpush.msra.mxu0 0.0
  %4232 = vmatpush.msra.mxu0 0.0
  %4233 = vmatpush.msra.mxu0 0.0
  %4234 = vmatpush.msra.mxu0 0.0
  %4235 = vmatpush.msra.mxu0 0.0
  %4236 = vmatpush.msra.mxu0 0.0
  %4237 = vmatpush.msra.mxu0 0.0
  %4238 = vmatpush.msra.mxu0 0.0
  %4239 = vmatpush.msra.mxu0 0.0
  %4240 = vmatpush.msra.mxu0 %v3657
  %4241 = vmatmul.f32.gmra.mxu0 %v4223
  %v4242 = vpop.f32.mrf.mxu0
  %v4243 = vadd.f32 0.0, %v4242
  %4244 = vdwg.mxu0
  %v4245 = vsel %vm2125, %v4174, 0.0
  %v4246 = vsel %vm2125, %v4197, 0.0
  %v4247 = vadd.f32 %v4245, %v4246
  %v4248 = vsel %vm2125, %v4220, 0.0
  %v4249 = vadd.f32 %v4247, %v4248
  %v4250 = vsel %vm2125, %v4243, 0.0
  %v4251 = vadd.f32 %v4249, %v4250
  %v4252 = vadd.f32 %v3577, %v4251
  %s4253 = scalar_lea.vmem %s41, 1
  %v4254 = vld [vmem:[%s4253] sm:$0x1]
  %v4255 = vmul.f32 %v4252, %v4252
  %v4256 = vsel %vm2125, %v4255, 0.0
  %4257 = vadd.xlane.f32.xlu0 %v4256
  %v4258 = vpop.xlane.xlu0 %4257
  %v4259 = vmul.f32 %v4258, %v147
  %v4260 = vadd.f32 %v4259, 1e-06
  %v4261 = vrsqrt.pop %v4260
  %v4262 = vmul.f32 %v4261, %v4260
  %v4263 = vmul.f32 %v4262, %v4261
  %v4264 = vmul.f32 0.5, %v4263
  %v4265 = vsub.f32 1.5, %v4264
  %v4266 = vmul.f32 %v4261, %v4265
  %vm4267 = vweird.f32 %v4260
  %vm4268 = vweird.f32 %v4261
  %vm4269 = vmor %vm4267, %vm4268
  %v4270 = vsel %vm4269, %v4261, %v4266
  %v4271 = vmul.f32 %v4252, %v4270
  %v4273 = vperm.slane %v4254, 0
  %v4275 = vmul.f32 %v4271, %v4273
  %s4276 = scalar_lea.vmem %s43, 128
  %v4277 = vld [vmem:[%s4276] sm:$0xff]
  %v4278 = vld [vmem:[%s4276 + $0x8] sm:$0xff]
  %v4279 = vld [vmem:[%s4276 + $0x10] sm:$0xff]
  %v4280 = vld [vmem:[%s4276 + $0x18] sm:$0xff]
  %v4281 = vld [vmem:[%s4276 + $0x20] sm:$0xff]
  %v4282 = vld [vmem:[%s4276 + $0x28] sm:$0xff]
  %v4283 = vld [vmem:[%s4276 + $0x30] sm:$0xff]
  %v4284 = vld [vmem:[%s4276 + $0x38] sm:$0xff]
  %v4285 = vld [vmem:[%s4276 + $0x40] sm:$0xff]
  %v4286 = vld [vmem:[%s4276 + $0x48] sm:$0xff]
  %v4287 = vld [vmem:[%s4276 + $0x50] sm:$0xff]
  %v4288 = vld [vmem:[%s4276 + $0x58] sm:$0xff]
  %v4289 = vld [vmem:[%s4276 + $0x60] sm:$0xff]
  %v4290 = vld [vmem:[%s4276 + $0x68] sm:$0xff]
  %v4291 = vld [vmem:[%s4276 + $0x70] sm:$0xff]
  %v4292 = vld [vmem:[%s4276 + $0x78] sm:$0xff]
  %s4293 = scalar_lea.vmem %s45, 128
  %v4294 = vld [vmem:[%s4293] sm:$0xff]
  %v4295 = vld [vmem:[%s4293 + $0x8] sm:$0xff]
  %v4296 = vld [vmem:[%s4293 + $0x10] sm:$0xff]
  %v4297 = vld [vmem:[%s4293 + $0x18] sm:$0xff]
  %v4298 = vld [vmem:[%s4293 + $0x20] sm:$0xff]
  %v4299 = vld [vmem:[%s4293 + $0x28] sm:$0xff]
  %v4300 = vld [vmem:[%s4293 + $0x30] sm:$0xff]
  %v4301 = vld [vmem:[%s4293 + $0x38] sm:$0xff]
  %v4302 = vld [vmem:[%s4293 + $0x40] sm:$0xff]
  %v4303 = vld [vmem:[%s4293 + $0x48] sm:$0xff]
  %v4304 = vld [vmem:[%s4293 + $0x50] sm:$0xff]
  %v4305 = vld [vmem:[%s4293 + $0x58] sm:$0xff]
  %v4306 = vld [vmem:[%s4293 + $0x60] sm:$0xff]
  %v4307 = vld [vmem:[%s4293 + $0x68] sm:$0xff]
  %v4308 = vld [vmem:[%s4293 + $0x70] sm:$0xff]
  %v4309 = vld [vmem:[%s4293 + $0x78] sm:$0xff]
  %s4310 = scalar_lea.vmem %s47, 128
  %v4311 = vld [vmem:[%s4310] sm:$0xff]
  %v4312 = vld [vmem:[%s4310 + $0x8] sm:$0xff]
  %v4313 = vld [vmem:[%s4310 + $0x10] sm:$0xff]
  %v4314 = vld [vmem:[%s4310 + $0x18] sm:$0xff]
  %v4315 = vld [vmem:[%s4310 + $0x20] sm:$0xff]
  %v4316 = vld [vmem:[%s4310 + $0x28] sm:$0xff]
  %v4317 = vld [vmem:[%s4310 + $0x30] sm:$0xff]
  %v4318 = vld [vmem:[%s4310 + $0x38] sm:$0xff]
  %v4319 = vld [vmem:[%s4310 + $0x40] sm:$0xff]
  %v4320 = vld [vmem:[%s4310 + $0x48] sm:$0xff]
  %v4321 = vld [vmem:[%s4310 + $0x50] sm:$0xff]
  %v4322 = vld [vmem:[%s4310 + $0x58] sm:$0xff]
  %v4323 = vld [vmem:[%s4310 + $0x60] sm:$0xff]
  %v4324 = vld [vmem:[%s4310 + $0x68] sm:$0xff]
  %v4325 = vld [vmem:[%s4310 + $0x70] sm:$0xff]
  %v4326 = vld [vmem:[%s4310 + $0x78] sm:$0xff]
  %s4327 = scalar_lea.vmem %s49, 32
  %v4328 = vld [vmem:[%s4327] sm:$0xff]
  %v4329 = vld [vmem:[%s4327 + $0x8] sm:$0xff]
  %v4330 = vld [vmem:[%s4327 + $0x10] sm:$0xff]
  %v4331 = vld [vmem:[%s4327 + $0x18] sm:$0xff]
  %v4333 = vsel %vm134, %v4275, 0
  %4335 = vmatpush.msra.mxu0 0.0
  %4336 = vmatpush.msra.mxu0 0.0
  %4337 = vmatpush.msra.mxu0 0.0
  %4338 = vmatpush.msra.mxu0 0.0
  %4339 = vmatpush.msra.mxu0 0.0
  %4340 = vmatpush.msra.mxu0 0.0
  %4341 = vmatpush.msra.mxu0 0.0
  %4342 = vmatpush.msra.mxu0 0.0
  %4343 = vmatpush.msra.mxu0 0.0
  %4344 = vmatpush.msra.mxu0 0.0
  %4345 = vmatpush.msra.mxu0 0.0
  %4346 = vmatpush.msra.mxu0 0.0
  %4347 = vmatpush.msra.mxu0 %v4280
  %4348 = vmatpush.msra.mxu0 %v4279
  %4349 = vmatpush.msra.mxu0 %v4278
  %4350 = vmatpush.msra.mxu0 %v4277
  %4351 = vmatmul.f32.gmra.mxu0 %v4333
  %v4352 = vpop.f32.mrf.mxu0
  %v4353 = vadd.f32 0.0, %v4352
  %4354 = vdwg.mxu0
  %4355 = vmatpush.msra.mxu0 0.0
  %4356 = vmatpush.msra.mxu0 0.0
  %4357 = vmatpush.msra.mxu0 0.0
  %4358 = vmatpush.msra.mxu0 0.0
  %4359 = vmatpush.msra.mxu0 0.0
  %4360 = vmatpush.msra.mxu0 0.0
  %4361 = vmatpush.msra.mxu0 0.0
  %4362 = vmatpush.msra.mxu0 0.0
  %4363 = vmatpush.msra.mxu0 0.0
  %4364 = vmatpush.msra.mxu0 0.0
  %4365 = vmatpush.msra.mxu0 0.0
  %4366 = vmatpush.msra.mxu0 0.0
  %4367 = vmatpush.msra.mxu0 %v4284
  %4368 = vmatpush.msra.mxu0 %v4283
  %4369 = vmatpush.msra.mxu0 %v4282
  %4370 = vmatpush.msra.mxu0 %v4281
  %4371 = vmatmul.f32.gmra.mxu0 %v4333
  %v4372 = vpop.f32.mrf.mxu0
  %v4373 = vadd.f32 0.0, %v4372
  %4374 = vdwg.mxu0
  %4375 = vmatpush.msra.mxu0 0.0
  %4376 = vmatpush.msra.mxu0 0.0
  %4377 = vmatpush.msra.mxu0 0.0
  %4378 = vmatpush.msra.mxu0 0.0
  %4379 = vmatpush.msra.mxu0 0.0
  %4380 = vmatpush.msra.mxu0 0.0
  %4381 = vmatpush.msra.mxu0 0.0
  %4382 = vmatpush.msra.mxu0 0.0
  %4383 = vmatpush.msra.mxu0 0.0
  %4384 = vmatpush.msra.mxu0 0.0
  %4385 = vmatpush.msra.mxu0 0.0
  %4386 = vmatpush.msra.mxu0 0.0
  %4387 = vmatpush.msra.mxu0 %v4288
  %4388 = vmatpush.msra.mxu0 %v4287
  %4389 = vmatpush.msra.mxu0 %v4286
  %4390 = vmatpush.msra.mxu0 %v4285
  %4391 = vmatmul.f32.gmra.mxu0 %v4333
  %v4392 = vpop.f32.mrf.mxu0
  %v4393 = vadd.f32 0.0, %v4392
  %4394 = vdwg.mxu0
  %4395 = vmatpush.msra.mxu0 0.0
  %4396 = vmatpush.msra.mxu0 0.0
  %4397 = vmatpush.msra.mxu0 0.0
  %4398 = vmatpush.msra.mxu0 0.0
  %4399 = vmatpush.msra.mxu0 0.0
  %4400 = vmatpush.msra.mxu0 0.0
  %4401 = vmatpush.msra.mxu0 0.0
  %4402 = vmatpush.msra.mxu0 0.0
  %4403 = vmatpush.msra.mxu0 0.0
  %4404 = vmatpush.msra.mxu0 0.0
  %4405 = vmatpush.msra.mxu0 0.0
  %4406 = vmatpush.msra.mxu0 0.0
  %4407 = vmatpush.msra.mxu0 %v4292
  %4408 = vmatpush.msra.mxu0 %v4291
  %4409 = vmatpush.msra.mxu0 %v4290
  %4410 = vmatpush.msra.mxu0 %v4289
  %4411 = vmatmul.f32.gmra.mxu0 %v4333
  %v4412 = vpop.f32.mrf.mxu0
  %v4413 = vadd.f32 0.0, %v4412
  %4414 = vdwg.mxu0
  %4415 = vmatpush.msra.mxu0 0.0
  %4416 = vmatpush.msra.mxu0 0.0
  %4417 = vmatpush.msra.mxu0 0.0
  %4418 = vmatpush.msra.mxu0 0.0
  %4419 = vmatpush.msra.mxu0 0.0
  %4420 = vmatpush.msra.mxu0 0.0
  %4421 = vmatpush.msra.mxu0 0.0
  %4422 = vmatpush.msra.mxu0 0.0
  %4423 = vmatpush.msra.mxu0 0.0
  %4424 = vmatpush.msra.mxu0 0.0
  %4425 = vmatpush.msra.mxu0 0.0
  %4426 = vmatpush.msra.mxu0 0.0
  %4427 = vmatpush.msra.mxu0 %v4297
  %4428 = vmatpush.msra.mxu0 %v4296
  %4429 = vmatpush.msra.mxu0 %v4295
  %4430 = vmatpush.msra.mxu0 %v4294
  %4431 = vmatmul.f32.gmra.mxu0 %v2954
  %v4432 = vpop.f32.mrf.mxu0
  %v4433 = vadd.f32 0.0, %v4432
  %4434 = vmatmul.f32.gmra.mxu0 %v2957
  %v4435 = vpop.f32.mrf.mxu0
  %v4436 = vadd.f32 0.0, %v4435
  %4437 = vdwg.mxu0
  %4438 = vmatpush.msra.mxu0 0.0
  %4439 = vmatpush.msra.mxu0 0.0
  %4440 = vmatpush.msra.mxu0 0.0
  %4441 = vmatpush.msra.mxu0 0.0
  %4442 = vmatpush.msra.mxu0 0.0
  %4443 = vmatpush.msra.mxu0 0.0
  %4444 = vmatpush.msra.mxu0 0.0
  %4445 = vmatpush.msra.mxu0 0.0
  %4446 = vmatpush.msra.mxu0 0.0
  %4447 = vmatpush.msra.mxu0 0.0
  %4448 = vmatpush.msra.mxu0 0.0
  %4449 = vmatpush.msra.mxu0 0.0
  %4450 = vmatpush.msra.mxu0 %v4301
  %4451 = vmatpush.msra.mxu0 %v4300
  %4452 = vmatpush.msra.mxu0 %v4299
  %4453 = vmatpush.msra.mxu0 %v4298
  %4454 = vmatmul.f32.gmra.mxu0 %v2954
  %v4455 = vpop.f32.mrf.mxu0
  %v4456 = vadd.f32 0.0, %v4455
  %4457 = vmatmul.f32.gmra.mxu0 %v2957
  %v4458 = vpop.f32.mrf.mxu0
  %v4459 = vadd.f32 0.0, %v4458
  %4460 = vdwg.mxu0
  %4461 = vmatpush.msra.mxu0 0.0
  %4462 = vmatpush.msra.mxu0 0.0
  %4463 = vmatpush.msra.mxu0 0.0
  %4464 = vmatpush.msra.mxu0 0.0
  %4465 = vmatpush.msra.mxu0 0.0
  %4466 = vmatpush.msra.mxu0 0.0
  %4467 = vmatpush.msra.mxu0 0.0
  %4468 = vmatpush.msra.mxu0 0.0
  %4469 = vmatpush.msra.mxu0 0.0
  %4470 = vmatpush.msra.mxu0 0.0
  %4471 = vmatpush.msra.mxu0 0.0
  %4472 = vmatpush.msra.mxu0 0.0
  %4473 = vmatpush.msra.mxu0 %v4305
  %4474 = vmatpush.msra.mxu0 %v4304
  %4475 = vmatpush.msra.mxu0 %v4303
  %4476 = vmatpush.msra.mxu0 %v4302
  %4477 = vmatmul.f32.gmra.mxu0 %v2954
  %v4478 = vpop.f32.mrf.mxu0
  %v4479 = vadd.f32 0.0, %v4478
  %4480 = vmatmul.f32.gmra.mxu0 %v2957
  %v4481 = vpop.f32.mrf.mxu0
  %v4482 = vadd.f32 0.0, %v4481
  %4483 = vdwg.mxu0
  %4484 = vmatpush.msra.mxu0 0.0
  %4485 = vmatpush.msra.mxu0 0.0
  %4486 = vmatpush.msra.mxu0 0.0
  %4487 = vmatpush.msra.mxu0 0.0
  %4488 = vmatpush.msra.mxu0 0.0
  %4489 = vmatpush.msra.mxu0 0.0
  %4490 = vmatpush.msra.mxu0 0.0
  %4491 = vmatpush.msra.mxu0 0.0
  %4492 = vmatpush.msra.mxu0 0.0
  %4493 = vmatpush.msra.mxu0 0.0
  %4494 = vmatpush.msra.mxu0 0.0
  %4495 = vmatpush.msra.mxu0 0.0
  %4496 = vmatpush.msra.mxu0 %v4309
  %4497 = vmatpush.msra.mxu0 %v4308
  %4498 = vmatpush.msra.mxu0 %v4307
  %4499 = vmatpush.msra.mxu0 %v4306
  %4500 = vmatmul.f32.gmra.mxu0 %v2954
  %v4501 = vpop.f32.mrf.mxu0
  %v4502 = vadd.f32 0.0, %v4501
  %4503 = vmatmul.f32.gmra.mxu0 %v2957
  %v4504 = vpop.f32.mrf.mxu0
  %v4505 = vadd.f32 0.0, %v4504
  %4506 = vdwg.mxu0
  %4507 = vmatpush.msra.mxu0 0.0
  %4508 = vmatpush.msra.mxu0 0.0
  %4509 = vmatpush.msra.mxu0 0.0
  %4510 = vmatpush.msra.mxu0 0.0
  %4511 = vmatpush.msra.mxu0 0.0
  %4512 = vmatpush.msra.mxu0 0.0
  %4513 = vmatpush.msra.mxu0 0.0
  %4514 = vmatpush.msra.mxu0 0.0
  %4515 = vmatpush.msra.mxu0 0.0
  %4516 = vmatpush.msra.mxu0 0.0
  %4517 = vmatpush.msra.mxu0 0.0
  %4518 = vmatpush.msra.mxu0 0.0
  %4519 = vmatpush.msra.mxu0 %v4314
  %4520 = vmatpush.msra.mxu0 %v4313
  %4521 = vmatpush.msra.mxu0 %v4312
  %4522 = vmatpush.msra.mxu0 %v4311
  %4523 = vmatmul.f32.gmra.mxu0 %v2954
  %v4524 = vpop.f32.mrf.mxu0
  %v4525 = vadd.f32 0.0, %v4524
  %4526 = vmatmul.f32.gmra.mxu0 %v2957
  %v4527 = vpop.f32.mrf.mxu0
  %v4528 = vadd.f32 0.0, %v4527
  %4529 = vdwg.mxu0
  %4530 = vmatpush.msra.mxu0 0.0
  %4531 = vmatpush.msra.mxu0 0.0
  %4532 = vmatpush.msra.mxu0 0.0
  %4533 = vmatpush.msra.mxu0 0.0
  %4534 = vmatpush.msra.mxu0 0.0
  %4535 = vmatpush.msra.mxu0 0.0
  %4536 = vmatpush.msra.mxu0 0.0
  %4537 = vmatpush.msra.mxu0 0.0
  %4538 = vmatpush.msra.mxu0 0.0
  %4539 = vmatpush.msra.mxu0 0.0
  %4540 = vmatpush.msra.mxu0 0.0
  %4541 = vmatpush.msra.mxu0 0.0
  %4542 = vmatpush.msra.mxu0 %v4318
  %4543 = vmatpush.msra.mxu0 %v4317
  %4544 = vmatpush.msra.mxu0 %v4316
  %4545 = vmatpush.msra.mxu0 %v4315
  %4546 = vmatmul.f32.gmra.mxu0 %v2954
  %v4547 = vpop.f32.mrf.mxu0
  %v4548 = vadd.f32 0.0, %v4547
  %4549 = vmatmul.f32.gmra.mxu0 %v2957
  %v4550 = vpop.f32.mrf.mxu0
  %v4551 = vadd.f32 0.0, %v4550
  %4552 = vdwg.mxu0
  %4553 = vmatpush.msra.mxu0 0.0
  %4554 = vmatpush.msra.mxu0 0.0
  %4555 = vmatpush.msra.mxu0 0.0
  %4556 = vmatpush.msra.mxu0 0.0
  %4557 = vmatpush.msra.mxu0 0.0
  %4558 = vmatpush.msra.mxu0 0.0
  %4559 = vmatpush.msra.mxu0 0.0
  %4560 = vmatpush.msra.mxu0 0.0
  %4561 = vmatpush.msra.mxu0 0.0
  %4562 = vmatpush.msra.mxu0 0.0
  %4563 = vmatpush.msra.mxu0 0.0
  %4564 = vmatpush.msra.mxu0 0.0
  %4565 = vmatpush.msra.mxu0 %v4322
  %4566 = vmatpush.msra.mxu0 %v4321
  %4567 = vmatpush.msra.mxu0 %v4320
  %4568 = vmatpush.msra.mxu0 %v4319
  %4569 = vmatmul.f32.gmra.mxu0 %v2954
  %v4570 = vpop.f32.mrf.mxu0
  %v4571 = vadd.f32 0.0, %v4570
  %4572 = vmatmul.f32.gmra.mxu0 %v2957
  %v4573 = vpop.f32.mrf.mxu0
  %v4574 = vadd.f32 0.0, %v4573
  %4575 = vdwg.mxu0
  %4576 = vmatpush.msra.mxu0 0.0
  %4577 = vmatpush.msra.mxu0 0.0
  %4578 = vmatpush.msra.mxu0 0.0
  %4579 = vmatpush.msra.mxu0 0.0
  %4580 = vmatpush.msra.mxu0 0.0
  %4581 = vmatpush.msra.mxu0 0.0
  %4582 = vmatpush.msra.mxu0 0.0
  %4583 = vmatpush.msra.mxu0 0.0
  %4584 = vmatpush.msra.mxu0 0.0
  %4585 = vmatpush.msra.mxu0 0.0
  %4586 = vmatpush.msra.mxu0 0.0
  %4587 = vmatpush.msra.mxu0 0.0
  %4588 = vmatpush.msra.mxu0 %v4326
  %4589 = vmatpush.msra.mxu0 %v4325
  %4590 = vmatpush.msra.mxu0 %v4324
  %4591 = vmatpush.msra.mxu0 %v4323
  %4592 = vmatmul.f32.gmra.mxu0 %v2954
  %v4593 = vpop.f32.mrf.mxu0
  %v4594 = vadd.f32 0.0, %v4593
  %4595 = vmatmul.f32.gmra.mxu0 %v2957
  %v4596 = vpop.f32.mrf.mxu0
  %v4597 = vadd.f32 0.0, %v4596
  %4598 = vdwg.mxu0
  %v4600 = vsel %vm513, %v4353, 0
  %v4603 = vsel %vm513, %v4433, 0
  %v4606 = vsel %vm513, %v4436, 0
  %4608 = vmatpush.xpose.msra.mxu0 0.0
  %4609 = vmatpush.xpose.msra.mxu0 0.0
  %4610 = vmatpush.xpose.msra.mxu0 0.0
  %4611 = vmatpush.xpose.msra.mxu0 0.0
  %4612 = vmatpush.xpose.msra.mxu0 0.0
  %4613 = vmatpush.xpose.msra.mxu0 0.0
  %4614 = vmatpush.xpose.msra.mxu0 0.0
  %4615 = vmatpush.xpose.msra.mxu0 0.0
  %4616 = vmatpush.xpose.msra.mxu0 0.0
  %4617 = vmatpush.xpose.msra.mxu0 0.0
  %4618 = vmatpush.xpose.msra.mxu0 0.0
  %4619 = vmatpush.xpose.msra.mxu0 0.0
  %4620 = vmatpush.xpose.msra.mxu0 0.0
  %4621 = vmatpush.xpose.msra.mxu0 0.0
  %4622 = vmatpush.xpose.msra.mxu0 %v4606
  %4623 = vmatpush.xpose.msra.mxu0 %v4603
  %4624 = vmatmul.f32.gmra.mxu0 %v4600
  %v4625 = vpop.f32.mrf.mxu0
  %v4626 = vadd.f32 0.0, %v4625
  %4627 = vdwg.mxu0
  %v4629 = vsel %vm513, %v4373, 0
  %v4632 = vsel %vm513, %v4456, 0
  %v4635 = vsel %vm513, %v4459, 0
  %4637 = vmatpush.xpose.msra.mxu0 0.0
  %4638 = vmatpush.xpose.msra.mxu0 0.0
  %4639 = vmatpush.xpose.msra.mxu0 0.0
  %4640 = vmatpush.xpose.msra.mxu0 0.0
  %4641 = vmatpush.xpose.msra.mxu0 0.0
  %4642 = vmatpush.xpose.msra.mxu0 0.0
  %4643 = vmatpush.xpose.msra.mxu0 0.0
  %4644 = vmatpush.xpose.msra.mxu0 0.0
  %4645 = vmatpush.xpose.msra.mxu0 0.0
  %4646 = vmatpush.xpose.msra.mxu0 0.0
  %4647 = vmatpush.xpose.msra.mxu0 0.0
  %4648 = vmatpush.xpose.msra.mxu0 0.0
  %4649 = vmatpush.xpose.msra.mxu0 0.0
  %4650 = vmatpush.xpose.msra.mxu0 0.0
  %4651 = vmatpush.xpose.msra.mxu0 %v4635
  %4652 = vmatpush.xpose.msra.mxu0 %v4632
  %4653 = vmatmul.f32.gmra.mxu0 %v4629
  %v4654 = vpop.f32.mrf.mxu0
  %v4655 = vadd.f32 0.0, %v4654
  %4656 = vdwg.mxu0
  %v4658 = vsel %vm513, %v4393, 0
  %v4661 = vsel %vm513, %v4479, 0
  %v4664 = vsel %vm513, %v4482, 0
  %4666 = vmatpush.xpose.msra.mxu0 0.0
  %4667 = vmatpush.xpose.msra.mxu0 0.0
  %4668 = vmatpush.xpose.msra.mxu0 0.0
  %4669 = vmatpush.xpose.msra.mxu0 0.0
  %4670 = vmatpush.xpose.msra.mxu0 0.0
  %4671 = vmatpush.xpose.msra.mxu0 0.0
  %4672 = vmatpush.xpose.msra.mxu0 0.0
  %4673 = vmatpush.xpose.msra.mxu0 0.0
  %4674 = vmatpush.xpose.msra.mxu0 0.0
  %4675 = vmatpush.xpose.msra.mxu0 0.0
  %4676 = vmatpush.xpose.msra.mxu0 0.0
  %4677 = vmatpush.xpose.msra.mxu0 0.0
  %4678 = vmatpush.xpose.msra.mxu0 0.0
  %4679 = vmatpush.xpose.msra.mxu0 0.0
  %4680 = vmatpush.xpose.msra.mxu0 %v4664
  %4681 = vmatpush.xpose.msra.mxu0 %v4661
  %4682 = vmatmul.f32.gmra.mxu0 %v4658
  %v4683 = vpop.f32.mrf.mxu0
  %v4684 = vadd.f32 0.0, %v4683
  %4685 = vdwg.mxu0
  %v4687 = vsel %vm513, %v4413, 0
  %v4690 = vsel %vm513, %v4502, 0
  %v4693 = vsel %vm513, %v4505, 0
  %4695 = vmatpush.xpose.msra.mxu0 0.0
  %4696 = vmatpush.xpose.msra.mxu0 0.0
  %4697 = vmatpush.xpose.msra.mxu0 0.0
  %4698 = vmatpush.xpose.msra.mxu0 0.0
  %4699 = vmatpush.xpose.msra.mxu0 0.0
  %4700 = vmatpush.xpose.msra.mxu0 0.0
  %4701 = vmatpush.xpose.msra.mxu0 0.0
  %4702 = vmatpush.xpose.msra.mxu0 0.0
  %4703 = vmatpush.xpose.msra.mxu0 0.0
  %4704 = vmatpush.xpose.msra.mxu0 0.0
  %4705 = vmatpush.xpose.msra.mxu0 0.0
  %4706 = vmatpush.xpose.msra.mxu0 0.0
  %4707 = vmatpush.xpose.msra.mxu0 0.0
  %4708 = vmatpush.xpose.msra.mxu0 0.0
  %4709 = vmatpush.xpose.msra.mxu0 %v4693
  %4710 = vmatpush.xpose.msra.mxu0 %v4690
  %4711 = vmatmul.f32.gmra.mxu0 %v4687
  %v4712 = vpop.f32.mrf.mxu0
  %v4713 = vadd.f32 0.0, %v4712
  %4714 = vdwg.mxu0
  %v4715 = vsel %vm3259, %v4626, -inf
  %4716 = vmax.xlane.f32.xlu0 %v4715
  %v4717 = vpop.xlane.xlu0 %4716
  %v4718 = vsel %vm3259, %v4655, -inf
  %4719 = vmax.xlane.f32.xlu0 %v4718
  %v4720 = vpop.xlane.xlu0 %4719
  %v4721 = vsel %vm3259, %v4684, -inf
  %4722 = vmax.xlane.f32.xlu0 %v4721
  %v4723 = vpop.xlane.xlu0 %4722
  %v4724 = vsel %vm3259, %v4713, -inf
  %4725 = vmax.xlane.f32.xlu0 %v4724
  %v4726 = vpop.xlane.xlu0 %4725
  %v4727 = vsub.f32 %v4626, %v4717
  %v4728 = vsub.f32 %v4655, %v4720
  %v4729 = vsub.f32 %v4684, %v4723
  %v4730 = vsub.f32 %v4713, %v4726
  %v4731 = vmul.f32 %v4727, 1.442695
  %v4732 = vpow.pop %v4731
  %v4733 = vmul.f32 %v4728, 1.442695
  %v4734 = vpow.pop %v4733
  %v4735 = vmul.f32 %v4729, 1.442695
  %v4736 = vpow.pop %v4735
  %v4737 = vmul.f32 %v4730, 1.442695
  %v4738 = vpow.pop %v4737
  %v4739 = vsel %vm3259, %v4732, 0.0
  %4740 = vadd.xlane.f32.xlu0 %v4739
  %v4741 = vpop.xlane.xlu0 %4740
  %v4742 = vsel %vm3259, %v4734, 0.0
  %4743 = vadd.xlane.f32.xlu0 %v4742
  %v4744 = vpop.xlane.xlu0 %4743
  %v4745 = vsel %vm3259, %v4736, 0.0
  %4746 = vadd.xlane.f32.xlu0 %v4745
  %v4747 = vpop.xlane.xlu0 %4746
  %v4748 = vsel %vm3259, %v4738, 0.0
  %4749 = vadd.xlane.f32.xlu0 %v4748
  %v4750 = vpop.xlane.xlu0 %4749
  %v4751 = vrcp.pop %v4741
  %v4752 = vrcp.pop %v4744
  %v4753 = vrcp.pop %v4747
  %v4754 = vrcp.pop %v4750
  %v4755 = vmul.f32 %v4732, %v4751
  %v4756 = vmul.f32 %v4734, %v4752
  %v4757 = vmul.f32 %v4736, %v4753
  %v4758 = vmul.f32 %v4738, %v4754
  %v4760 = vsel %vm654, %v4755, 0
  %4762 = vmatpush.msra.mxu0 0.0
  %4763 = vmatpush.msra.mxu0 0.0
  %4764 = vmatpush.msra.mxu0 0.0
  %4765 = vmatpush.msra.mxu0 0.0
  %4766 = vmatpush.msra.mxu0 0.0
  %4767 = vmatpush.msra.mxu0 0.0
  %4768 = vmatpush.msra.mxu0 0.0
  %4769 = vmatpush.msra.mxu0 0.0
  %4770 = vmatpush.msra.mxu0 0.0
  %4771 = vmatpush.msra.mxu0 0.0
  %4772 = vmatpush.msra.mxu0 0.0
  %4773 = vmatpush.msra.mxu0 0.0
  %4774 = vmatpush.msra.mxu0 0.0
  %4775 = vmatpush.msra.mxu0 0.0
  %4776 = vmatpush.msra.mxu0 %v4528
  %4777 = vmatpush.msra.mxu0 %v4525
  %4778 = vmatmul.f32.gmra.mxu0 %v4760
  %v4779 = vpop.f32.mrf.mxu0
  %v4780 = vadd.f32 0.0, %v4779
  %4781 = vdwg.mxu0
  %v4783 = vsel %vm654, %v4756, 0
  %4785 = vmatpush.msra.mxu0 0.0
  %4786 = vmatpush.msra.mxu0 0.0
  %4787 = vmatpush.msra.mxu0 0.0
  %4788 = vmatpush.msra.mxu0 0.0
  %4789 = vmatpush.msra.mxu0 0.0
  %4790 = vmatpush.msra.mxu0 0.0
  %4791 = vmatpush.msra.mxu0 0.0
  %4792 = vmatpush.msra.mxu0 0.0
  %4793 = vmatpush.msra.mxu0 0.0
  %4794 = vmatpush.msra.mxu0 0.0
  %4795 = vmatpush.msra.mxu0 0.0
  %4796 = vmatpush.msra.mxu0 0.0
  %4797 = vmatpush.msra.mxu0 0.0
  %4798 = vmatpush.msra.mxu0 0.0
  %4799 = vmatpush.msra.mxu0 %v4551
  %4800 = vmatpush.msra.mxu0 %v4548
  %4801 = vmatmul.f32.gmra.mxu0 %v4783
  %v4802 = vpop.f32.mrf.mxu0
  %v4803 = vadd.f32 0.0, %v4802
  %4804 = vdwg.mxu0
  %v4806 = vsel %vm654, %v4757, 0
  %4808 = vmatpush.msra.mxu0 0.0
  %4809 = vmatpush.msra.mxu0 0.0
  %4810 = vmatpush.msra.mxu0 0.0
  %4811 = vmatpush.msra.mxu0 0.0
  %4812 = vmatpush.msra.mxu0 0.0
  %4813 = vmatpush.msra.mxu0 0.0
  %4814 = vmatpush.msra.mxu0 0.0
  %4815 = vmatpush.msra.mxu0 0.0
  %4816 = vmatpush.msra.mxu0 0.0
  %4817 = vmatpush.msra.mxu0 0.0
  %4818 = vmatpush.msra.mxu0 0.0
  %4819 = vmatpush.msra.mxu0 0.0
  %4820 = vmatpush.msra.mxu0 0.0
  %4821 = vmatpush.msra.mxu0 0.0
  %4822 = vmatpush.msra.mxu0 %v4574
  %4823 = vmatpush.msra.mxu0 %v4571
  %4824 = vmatmul.f32.gmra.mxu0 %v4806
  %v4825 = vpop.f32.mrf.mxu0
  %v4826 = vadd.f32 0.0, %v4825
  %4827 = vdwg.mxu0
  %v4829 = vsel %vm654, %v4758, 0
  %4831 = vmatpush.msra.mxu0 0.0
  %4832 = vmatpush.msra.mxu0 0.0
  %4833 = vmatpush.msra.mxu0 0.0
  %4834 = vmatpush.msra.mxu0 0.0
  %4835 = vmatpush.msra.mxu0 0.0
  %4836 = vmatpush.msra.mxu0 0.0
  %4837 = vmatpush.msra.mxu0 0.0
  %4838 = vmatpush.msra.mxu0 0.0
  %4839 = vmatpush.msra.mxu0 0.0
  %4840 = vmatpush.msra.mxu0 0.0
  %4841 = vmatpush.msra.mxu0 0.0
  %4842 = vmatpush.msra.mxu0 0.0
  %4843 = vmatpush.msra.mxu0 0.0
  %4844 = vmatpush.msra.mxu0 0.0
  %4845 = vmatpush.msra.mxu0 %v4597
  %4846 = vmatpush.msra.mxu0 %v4594
  %4847 = vmatmul.f32.gmra.mxu0 %v4829
  %v4848 = vpop.f32.mrf.mxu0
  %v4849 = vadd.f32 0.0, %v4848
  %4850 = vdwg.mxu0
  %v4852 = vsel %vm513, %v4780, 0
  %4854 = vmatpush.msra.mxu0 0.0
  %4855 = vmatpush.msra.mxu0 0.0
  %4856 = vmatpush.msra.mxu0 0.0
  %4857 = vmatpush.msra.mxu0 0.0
  %4858 = vmatpush.msra.mxu0 0.0
  %4859 = vmatpush.msra.mxu0 0.0
  %4860 = vmatpush.msra.mxu0 0.0
  %4861 = vmatpush.msra.mxu0 0.0
  %4862 = vmatpush.msra.mxu0 0.0
  %4863 = vmatpush.msra.mxu0 0.0
  %4864 = vmatpush.msra.mxu0 0.0
  %4865 = vmatpush.msra.mxu0 0.0
  %4866 = vmatpush.msra.mxu0 0.0
  %4867 = vmatpush.msra.mxu0 0.0
  %4868 = vmatpush.msra.mxu0 0.0
  %4869 = vmatpush.msra.mxu0 %v4328
  %4870 = vmatmul.f32.gmra.mxu0 %v4852
  %v4871 = vpop.f32.mrf.mxu0
  %v4872 = vadd.f32 0.0, %v4871
  %4873 = vdwg.mxu0
  %v4875 = vsel %vm513, %v4803, 0
  %4877 = vmatpush.msra.mxu0 0.0
  %4878 = vmatpush.msra.mxu0 0.0
  %4879 = vmatpush.msra.mxu0 0.0
  %4880 = vmatpush.msra.mxu0 0.0
  %4881 = vmatpush.msra.mxu0 0.0
  %4882 = vmatpush.msra.mxu0 0.0
  %4883 = vmatpush.msra.mxu0 0.0
  %4884 = vmatpush.msra.mxu0 0.0
  %4885 = vmatpush.msra.mxu0 0.0
  %4886 = vmatpush.msra.mxu0 0.0
  %4887 = vmatpush.msra.mxu0 0.0
  %4888 = vmatpush.msra.mxu0 0.0
  %4889 = vmatpush.msra.mxu0 0.0
  %4890 = vmatpush.msra.mxu0 0.0
  %4891 = vmatpush.msra.mxu0 0.0
  %4892 = vmatpush.msra.mxu0 %v4329
  %4893 = vmatmul.f32.gmra.mxu0 %v4875
  %v4894 = vpop.f32.mrf.mxu0
  %v4895 = vadd.f32 0.0, %v4894
  %4896 = vdwg.mxu0
  %v4898 = vsel %vm513, %v4826, 0
  %4900 = vmatpush.msra.mxu0 0.0
  %4901 = vmatpush.msra.mxu0 0.0
  %4902 = vmatpush.msra.mxu0 0.0
  %4903 = vmatpush.msra.mxu0 0.0
  %4904 = vmatpush.msra.mxu0 0.0
  %4905 = vmatpush.msra.mxu0 0.0
  %4906 = vmatpush.msra.mxu0 0.0
  %4907 = vmatpush.msra.mxu0 0.0
  %4908 = vmatpush.msra.mxu0 0.0
  %4909 = vmatpush.msra.mxu0 0.0
  %4910 = vmatpush.msra.mxu0 0.0
  %4911 = vmatpush.msra.mxu0 0.0
  %4912 = vmatpush.msra.mxu0 0.0
  %4913 = vmatpush.msra.mxu0 0.0
  %4914 = vmatpush.msra.mxu0 0.0
  %4915 = vmatpush.msra.mxu0 %v4330
  %4916 = vmatmul.f32.gmra.mxu0 %v4898
  %v4917 = vpop.f32.mrf.mxu0
  %v4918 = vadd.f32 0.0, %v4917
  %4919 = vdwg.mxu0
  %v4921 = vsel %vm513, %v4849, 0
  %4923 = vmatpush.msra.mxu0 0.0
  %4924 = vmatpush.msra.mxu0 0.0
  %4925 = vmatpush.msra.mxu0 0.0
  %4926 = vmatpush.msra.mxu0 0.0
  %4927 = vmatpush.msra.mxu0 0.0
  %4928 = vmatpush.msra.mxu0 0.0
  %4929 = vmatpush.msra.mxu0 0.0
  %4930 = vmatpush.msra.mxu0 0.0
  %4931 = vmatpush.msra.mxu0 0.0
  %4932 = vmatpush.msra.mxu0 0.0
  %4933 = vmatpush.msra.mxu0 0.0
  %4934 = vmatpush.msra.mxu0 0.0
  %4935 = vmatpush.msra.mxu0 0.0
  %4936 = vmatpush.msra.mxu0 0.0
  %4937 = vmatpush.msra.mxu0 0.0
  %4938 = vmatpush.msra.mxu0 %v4331
  %4939 = vmatmul.f32.gmra.mxu0 %v4921
  %v4940 = vpop.f32.mrf.mxu0
  %v4941 = vadd.f32 0.0, %v4940
  %4942 = vdwg.mxu0
  %v4943 = vsel %vm2125, %v4872, 0.0
  %v4944 = vsel %vm2125, %v4895, 0.0
  %v4945 = vadd.f32 %v4943, %v4944
  %v4946 = vsel %vm2125, %v4918, 0.0
  %v4947 = vadd.f32 %v4945, %v4946
  %v4948 = vsel %vm2125, %v4941, 0.0
  %v4949 = vadd.f32 %v4947, %v4948
  %v4950 = vadd.f32 %v4252, %v4949
  %s4951 = scalar_lea.vmem %s51, 1
  %v4952 = vld [vmem:[%s4951] sm:$0x1]
  %v4953 = vmul.f32 %v4950, %v4950
  %v4954 = vsel %vm2125, %v4953, 0.0
  %4955 = vadd.xlane.f32.xlu0 %v4954
  %v4956 = vpop.xlane.xlu0 %4955
  %v4957 = vmul.f32 %v4956, %v147
  %v4958 = vadd.f32 %v4957, 1e-06
  %v4959 = vrsqrt.pop %v4958
  %v4960 = vmul.f32 %v4959, %v4958
  %v4961 = vmul.f32 %v4960, %v4959
  %v4962 = vmul.f32 0.5, %v4961
  %v4963 = vsub.f32 1.5, %v4962
  %v4964 = vmul.f32 %v4959, %v4963
  %vm4965 = vweird.f32 %v4958
  %vm4966 = vweird.f32 %v4959
  %vm4967 = vmor %vm4965, %vm4966
  %v4968 = vsel %vm4967, %v4959, %v4964
  %v4969 = vmul.f32 %v4950, %v4968
  %v4971 = vperm.slane %v4952, 0
  %v4973 = vmul.f32 %v4969, %v4971
  %s4974 = scalar_lea.vmem %s53, 32
  %v4975 = vld [vmem:[%s4974] sm:$0xff]
  %v4976 = vld [vmem:[%s4974 + $0x8] sm:$0xff]
  %v4977 = vld [vmem:[%s4974 + $0x10] sm:$0xff]
  %v4978 = vld [vmem:[%s4974 + $0x18] sm:$0xff]
  %s4979 = scalar_lea.vmem %s55, 64
  %v4980 = vld [vmem:[%s4979] sm:$0xff]
  %v4981 = vld [vmem:[%s4979 + $0x8] sm:$0xff]
  %v4982 = vld [vmem:[%s4979 + $0x10] sm:$0xff]
  %v4983 = vld [vmem:[%s4979 + $0x18] sm:$0xff]
  %v4984 = vld [vmem:[%s4979 + $0x20] sm:$0xff]
  %v4985 = vld [vmem:[%s4979 + $0x28] sm:$0xff]
  %v4986 = vld [vmem:[%s4979 + $0x30] sm:$0xff]
  %v4987 = vld [vmem:[%s4979 + $0x38] sm:$0xff]
  %v4989 = vsel %vm134, %v4973, 0
  %4991 = vmatpush.msra.mxu0 0.0
  %4992 = vmatpush.msra.mxu0 0.0
  %4993 = vmatpush.msra.mxu0 0.0
  %4994 = vmatpush.msra.mxu0 0.0
  %4995 = vmatpush.msra.mxu0 0.0
  %4996 = vmatpush.msra.mxu0 0.0
  %4997 = vmatpush.msra.mxu0 0.0
  %4998 = vmatpush.msra.mxu0 0.0
  %4999 = vmatpush.msra.mxu0 0.0
  %5000 = vmatpush.msra.mxu0 0.0
  %5001 = vmatpush.msra.mxu0 0.0
  %5002 = vmatpush.msra.mxu0 0.0
  %5003 = vmatpush.msra.mxu0 %v4978
  %5004 = vmatpush.msra.mxu0 %v4977
  %5005 = vmatpush.msra.mxu0 %v4976
  %5006 = vmatpush.msra.mxu0 %v4975
  %5007 = vmatmul.f32.gmra.mxu0 %v4989
  %v5008 = vpop.f32.mrf.mxu0
  %v5009 = vadd.f32 0.0, %v5008
  %5010 = vdwg.mxu0
  %v5011 = vmax.f32 %v5009, 0.0
  %v5013 = vsel %vm1074, %v5011, 0
  %5015 = vmatpush.msra.mxu0 0.0
  %5016 = vmatpush.msra.mxu0 0.0
  %5017 = vmatpush.msra.mxu0 0.0
  %5018 = vmatpush.msra.mxu0 0.0
  %5019 = vmatpush.msra.mxu0 0.0
  %5020 = vmatpush.msra.mxu0 0.0
  %5021 = vmatpush.msra.mxu0 0.0
  %5022 = vmatpush.msra.mxu0 0.0
  %5023 = vmatpush.msra.mxu0 %v4987
  %5024 = vmatpush.msra.mxu0 %v4986
  %5025 = vmatpush.msra.mxu0 %v4985
  %5026 = vmatpush.msra.mxu0 %v4984
  %5027 = vmatpush.msra.mxu0 %v4983
  %5028 = vmatpush.msra.mxu0 %v4982
  %5029 = vmatpush.msra.mxu0 %v4981
  %5030 = vmatpush.msra.mxu0 %v4980
  %5031 = vmatmul.f32.gmra.mxu0 %v5013
  %v5032 = vpop.f32.mrf.mxu0
  %v5033 = vadd.f32 0.0, %v5032
  %5034 = vdwg.mxu0
  %v5035 = vadd.f32 %v4950, %v5033
  %v5036 = vld [vmem:[%s27] sm:$0x1]
  %v5037 = vmul.f32 %v5035, %v5035
  %v5038 = vsel %vm2125, %v5037, 0.0
  %5039 = vadd.xlane.f32.xlu0 %v5038
  %v5040 = vpop.xlane.xlu0 %5039
  %v5041 = vmul.f32 %v5040, %v147
  %v5042 = vadd.f32 %v5041, 1e-06
  %v5043 = vrsqrt.pop %v5042
  %v5044 = vmul.f32 %v5043, %v5042
  %v5045 = vmul.f32 %v5044, %v5043
  %v5046 = vmul.f32 0.5, %v5045
  %v5047 = vsub.f32 1.5, %v5046
  %v5048 = vmul.f32 %v5043, %v5047
  %vm5049 = vweird.f32 %v5042
  %vm5050 = vweird.f32 %v5043
  %vm5051 = vmor %vm5049, %vm5050
  %v5052 = vsel %vm5051, %v5043, %v5048
  %v5053 = vmul.f32 %v5035, %v5052
  %v5055 = vperm.slane %v5036, 0
  %v5057 = vmul.f32 %v5053, %v5055
  %s5058 = scalar_lea.vmem %s57, 2
  %5059 = vst.msk [vmem:[%s5058] sm:$0x3] %vm2125, %v5057
  %v5060 = vmul.f32 %v5057, 0.17677669
  %v5061 = vld [vmem:[%s29] sm:$0xff]
  %v5062 = vld [vmem:[%s29 + $0x8] sm:$0xff]
  %v5063 = vld [vmem:[%s29 + $0x10] sm:$0xff]
  %v5064 = vld [vmem:[%s29 + $0x18] sm:$0xff]
  %v5066 = vsel %vm134, %v5060, 0
  %5068 = vmatpush.msra.mxu0 0.0
  %5069 = vmatpush.msra.mxu0 0.0
  %5070 = vmatpush.msra.mxu0 0.0
  %5071 = vmatpush.msra.mxu0 0.0
  %5072 = vmatpush.msra.mxu0 0.0
  %5073 = vmatpush.msra.mxu0 0.0
  %5074 = vmatpush.msra.mxu0 0.0
  %5075 = vmatpush.msra.mxu0 0.0
  %5076 = vmatpush.msra.mxu0 0.0
  %5077 = vmatpush.msra.mxu0 0.0
  %5078 = vmatpush.msra.mxu0 0.0
  %5079 = vmatpush.msra.mxu0 0.0
  %5080 = vmatpush.msra.mxu0 %v5064
  %5081 = vmatpush.msra.mxu0 %v5063
  %5082 = vmatpush.msra.mxu0 %v5062
  %5083 = vmatpush.msra.mxu0 %v5061
  %5084 = vmatmul.f32.gmra.mxu0 %v5066
  %v5085 = vpop.f32.mrf.mxu0
  %v5086 = vadd.f32 0.0, %v5085
  %5087 = vdwg.mxu0
  %vm5088 = vcmask 8192
  %5089 = vst.msk [vmem:[%s59] sm:$0x1] %vm5088, %v5086
  // Predicated region
  $region114: #{t5sentinel_forward.1} parent=0 // pred_check
    _
  $region115: #{t5sentinel_forward.1} parent=0 // pred_check_branch
    %5091 = sbr.rel (0) target = $region117
  $region116: #{t5sentinel_forward.1} parent=0 // pred_region
    _
  $region117: #{t5sentinel_forward.1} parent=0 // pred_fallthru
    _
  // Predicated region
  $region118: #{t5sentinel_forward.1} parent=0 // pred_check
    _
  $region119: #{t5sentinel_forward.1} parent=0 // pred_check_branch
    %5093 = sbr.rel (0) target = $region121
  $region120: #{t5sentinel_forward.1} parent=0 // pred_region
    _
  $region121: #{t5sentinel_forward.1} parent=0 // pred_fallthru
    _
  // Predicated region
  $region122: #{t5sentinel_forward.1} parent=0 // pred_check
    _
  $region123: #{t5sentinel_forward.1} parent=0 // pred_check_branch
    %5095 = sbr.rel (0) target = $region125
  $region124: #{t5sentinel_forward.1} parent=0 // pred_region
    _
  $region125: #{t5sentinel_forward.1} parent=0 // pred_fallthru
    _
  // Predicated region
  $region126: #{t5sentinel_forward.1} parent=0 // pred_check
    _
  $region127: #{t5sentinel_forward.1} parent=0 // pred_check_branch
    %5097 = sbr.rel (0) target = $region129
  $region128: #{t5sentinel_forward.1} parent=0 // pred_region
    _
  $region129: #{t5sentinel_forward.1} parent=0 // pred_fallthru
    _

</llo_original>
